<compile_context>
chip_gen: v7x
topology: tpu7x:2x2x1
jax: 0.10.0
libtpu: 0.0.40
codegen_flags: <defaults>
</compile_context>

<pallas_src>
import jax
import jax.numpy as jnp
from jax.experimental import pallas as pl
from jax.experimental.pallas import tpu as pltpu


# ----------------------------- Pallas kernel -----------------------------
def _make_kernel(T, H1, H2, H3):
    def _cell(xp_t, h, c, whh, H):
        # xp_t already contains x_t @ W_ih + (b_ih + b_hh); only the recurrent
        # matmul sits on the serial chain.  Packed gate order is [i, f, o, g].
        gates = xp_t + jnp.dot(h, whh, preferred_element_type=jnp.float32)   # (1, 4H)
        ifo = jax.nn.sigmoid(gates[:, :3 * H])      # one contiguous sigmoid slice
        g = jnp.tanh(gates[:, 3 * H:])              # one contiguous tanh slice
        c_new = ifo[:, H:2 * H] * c + ifo[:, :H] * g
        h_new = ifo[:, 2 * H:3 * H] * jnp.tanh(c_new)
        return h_new, c_new

    def kernel(x_ref,
               wih1_ref, whh1_ref, b1_ref,
               wih2_ref, whh2_ref, b2_ref,
               wih3_ref, whh3_ref, b3_ref,
               wfc_ref, bfc_ref,
               out_ref, h1_scr, h2_scr):
        # Hoist weight loads out of the (fully unrolled) time loops.
        whh1 = whh1_ref[...]
        whh2 = whh2_ref[...]
        whh3 = whh3_ref[...]
        wfc = wfc_ref[...]            # (1, H3) row
        bfc = bfc_ref[0, 0]           # scalar (SMEM)

        # ---- layer 1: one batched (T, I) @ (I, 4H1) input projection ----
        xp1 = jnp.dot(x_ref[...], wih1_ref[...],
                      preferred_element_type=jnp.float32) + b1_ref[...]      # (T, 4H1)
        h = jnp.zeros((1, H1), jnp.float32)
        c = jnp.zeros((1, H1), jnp.float32)
        for t in range(T):            # T is static & small -> fully unrolled
            h, c = _cell(xp1[t:t + 1, :], h, c, whh1, H1)
            h1_scr[t:t + 1, :] = h    # row store into VMEM scratch (no concat)
        # dropout_hidden: identity at inference (eval-mode nn.Dropout)

        # ---- layer 2: batched (T, H1) @ (H1, 4H2) input projection ----
        xp2 = jnp.dot(h1_scr[...], wih2_ref[...],
                      preferred_element_type=jnp.float32) + b2_ref[...]      # (T, 4H2)
        h = jnp.zeros((1, H2), jnp.float32)
        c = jnp.zeros((1, H2), jnp.float32)
        for t in range(T):
            h, c = _cell(xp2[t:t + 1, :], h, c, whh2, H2)
            h2_scr[t:t + 1, :] = h

        # ---- layer 3 + fused fc1 (lane-dense (1, T) output row) ----
        xp3 = jnp.dot(h2_scr[...], wih3_ref[...],
                      preferred_element_type=jnp.float32) + b3_ref[...]      # (T, 4H3)
        h = jnp.zeros((1, H3), jnp.float32)
        c = jnp.zeros((1, H3), jnp.float32)
        lane = jax.lax.broadcasted_iota(jnp.int32, (1, T), 1)
        out_row = jnp.zeros((1, T), jnp.float32)
        for t in range(T):
            h, c = _cell(xp3[t:t + 1, :], h, c, whh3, H3)
            y_t = jnp.sum(h * wfc, axis=-1, keepdims=True)   # (1, 1), off crit path
            out_row = jnp.where(lane == t, y_t, out_row)
        out_ref[...] = out_row + bfc                          # single (1, T) writeback

    return kernel


def lstm_forward(x, packed_layers, packed_fc):
    """x: (T, I) array. Returns (T, 1, 1), matching the torch module output."""
    x = x.astype(jnp.float32)
    T, _ = x.shape
    (wih1, whh1, b1), (wih2, whh2, b2), (wih3, whh3, b3) = packed_layers
    wfc, bfc = packed_fc
    H1, H2, H3 = whh1.shape[0], whh2.shape[0], whh3.shape[0]

    vmem = pl.BlockSpec(memory_space=pltpu.MemorySpace.VMEM)
    smem = pl.BlockSpec(memory_space=pltpu.MemorySpace.SMEM)

    out = pl.pallas_call(
        _make_kernel(T, H1, H2, H3),
        out_shape=jax.ShapeDtypeStruct((1, T), jnp.float32),
        in_specs=[vmem,                       # x
                  vmem, vmem, vmem,           # layer 1: W_ih, W_hh, b
                  vmem, vmem, vmem,           # layer 2
                  vmem, vmem, vmem,           # layer 3
                  vmem, smem],                # fc: w row (VMEM), bias scalar (SMEM)
        out_specs=vmem,
        scratch_shapes=[pltpu.VMEM((T, H1), jnp.float32),    # layer-1 hidden states
                        pltpu.VMEM((T, H2), jnp.float32)],   # layer-2 hidden states
    )(x, wih1, whh1, b1, wih2, whh2, b2, wih3, whh3, b3, wfc, bfc)
    return out.reshape(T, 1, 1)


# ------------------- parameter construction & repacking -------------------
def init_torch_params(key, input_size, H1, H2, H3):
    """PyTorch-convention parameters with torch default init:
    each LSTM tensor ~ U(-1/sqrt(H), 1/sqrt(H)), bias_ih and bias_hh drawn
    separately (so the merged bias has the correct triangular distribution)."""
    def uni(k, shape, bound):
        return jax.random.uniform(k, shape, jnp.float32, -bound, bound)

    keys = jax.random.split(key, 14)
    idx = 0
    layers = []
    for I, H in [(input_size, H1), (H1, H2), (H2, H3)]:
        bound = 1.0 / (float(H) ** 0.5)
        wih = uni(keys[idx], (4 * H, I), bound); idx += 1   # gate rows [i,f,g,o]
        whh = uni(keys[idx], (4 * H, H), bound); idx += 1
        bih = uni(keys[idx], (4 * H,), bound); idx += 1
        bhh = uni(keys[idx], (4 * H,), bound); idx += 1
        layers.append((wih, whh, bih, bhh))
    bound_fc = 1.0 / (float(H3) ** 0.5)
    wfc = uni(keys[idx], (1, H3), bound_fc); idx += 1       # nn.Linear: (out, in)
    bfc = uni(keys[idx], (1,), bound_fc)
    return layers, (wfc, bfc)


def pack_params(torch_layers, torch_fc):
    """Repack torch-convention weights into the kernel layout:
    W_ih.T (I, 4H) and W_hh.T (H, 4H) kept SEPARATE (batched x-projection +
    recurrent matmul), merged bias (1, 4H), gate columns reordered from torch
    [i,f,g,o] to kernel [i,f,o,g]."""
    packed = []
    for wih, whh, bih, bhh in torch_layers:
        H = whh.shape[1]
        order = jnp.concatenate([jnp.arange(2 * H),          # i, f
                                 jnp.arange(3 * H, 4 * H),   # o
                                 jnp.arange(2 * H, 3 * H)])  # g
        w_ih = wih.T[:, order]                               # (I, 4H)
        w_hh = whh.T[:, order]                               # (H, 4H)
        b = (bih + bhh)[None, :][:, order]                   # (1, 4H)
        packed.append((w_ih, w_hh, b))
    wfc, bfc = torch_fc
    return packed, (wfc, bfc.reshape(1, 1))


# ---------------- pure-JAX reference (torch layout, for checking) ----------
def lstm_ref(x, torch_layers, torch_fc):
    x = x.astype(jnp.float32)[:, None, :]                    # (T, 1, I)

    def run_layer(xs, wih, whh, bih, bhh):
        H = whh.shape[1]

        def step(carry, x_t):
            h, c = carry
            gates = x_t @ wih.T + h @ whh.T + bih + bhh      # torch order i,f,g,o
            i = jax.nn.sigmoid(gates[:, 0 * H:1 * H])
            f = jax.nn.sigmoid(gates[:, 1 * H:2 * H])
            g = jnp.tanh(gates[:, 2 * H:3 * H])
            o = jax.nn.sigmoid(gates[:, 3 * H:4 * H])
            c_new = f * c + i * g
            h_new = o * jnp.tanh(c_new)
            return (h_new, c_new), h_new

        B = xs.shape[1]
        h0 = jnp.zeros((B, H), jnp.float32)
        c0 = jnp.zeros((B, H), jnp.float32)
        _, hs = jax.lax.scan(step, (h0, c0), xs)
        return hs

    h = x
    for wih, whh, bih, bhh in torch_layers:
        h = run_layer(h, wih, whh, bih, bhh)
    wfc, bfc = torch_fc
    return jnp.einsum("tbh,oh->tbo", h, wfc) + bfc           # (T, 1, 1)


if __name__ == "__main__":
    SEQ, INPUT, H1, H2, H3 = 8, 16, 32, 32, 32
    key = jax.random.PRNGKey(0)
    kx, kp = jax.random.split(key)
    x = jax.random.normal(kx, (SEQ, INPUT), jnp.float32)

    torch_layers, torch_fc = init_torch_params(kp, INPUT, H1, H2, H3)
    packed_layers, packed_fc = pack_params(torch_layers, torch_fc)

    out = jax.block_until_ready(lstm_forward(x, packed_layers, packed_fc))
    ref = jax.block_until_ready(lstm_ref(x, torch_layers, torch_fc))

    assert out.shape == (SEQ, 1, 1), out.shape
    assert jnp.allclose(out, ref, atol=1e-5, rtol=1e-5), (out, ref)
    print("KERNEL_OK")
</pallas_src>

<mosaic_0001>
module attributes {stable_mosaic.version = 11 : i64} {
  func.func @kernel(%arg0: memref<8x16xf32, #tpu.memory_space<vmem>>, %arg1: memref<16x128xf32, #tpu.memory_space<vmem>>, %arg2: memref<32x128xf32, #tpu.memory_space<vmem>>, %arg3: memref<1x128xf32, #tpu.memory_space<vmem>>, %arg4: memref<32x128xf32, #tpu.memory_space<vmem>>, %arg5: memref<32x128xf32, #tpu.memory_space<vmem>>, %arg6: memref<1x128xf32, #tpu.memory_space<vmem>>, %arg7: memref<32x128xf32, #tpu.memory_space<vmem>>, %arg8: memref<32x128xf32, #tpu.memory_space<vmem>>, %arg9: memref<1x128xf32, #tpu.memory_space<vmem>>, %arg10: memref<1x32xf32, #tpu.memory_space<vmem>>, %arg11: memref<1x1xf32, #tpu.memory_space<smem>>, %arg12: memref<1x8xf32, #tpu.memory_space<vmem>>, %arg13: memref<8x32xf32, #tpu.memory_space<vmem>>, %arg14: memref<8x32xf32, #tpu.memory_space<vmem>>) attributes {dimension_semantics = [], scalar_prefetch = 0 : i64, scratch_operands = 2 : i64, tpu.core_type = #tpu.core_type<tc>} {
    %c0 = arith.constant 0 : index
    %c0_0 = arith.constant 0 : index
    %0 = vector.load %arg2[%c0, %c0_0] : memref<32x128xf32, #tpu.memory_space<vmem>>, vector<32x128xf32>
    %c0_1 = arith.constant 0 : index
    %c0_2 = arith.constant 0 : index
    %1 = vector.load %arg5[%c0_1, %c0_2] : memref<32x128xf32, #tpu.memory_space<vmem>>, vector<32x128xf32>
    %c0_3 = arith.constant 0 : index
    %c0_4 = arith.constant 0 : index
    %2 = vector.load %arg8[%c0_3, %c0_4] : memref<32x128xf32, #tpu.memory_space<vmem>>, vector<32x128xf32>
    %c0_5 = arith.constant 0 : index
    %c0_6 = arith.constant 0 : index
    %3 = vector.load %arg10[%c0_5, %c0_6] : memref<1x32xf32, #tpu.memory_space<vmem>>, vector<1x32xf32>
    %c0_7 = arith.constant 0 : index
    %c0_8 = arith.constant 0 : index
    %4 = memref.load %arg11[%c0_7, %c0_8] : memref<1x1xf32, #tpu.memory_space<smem>>
    %c0_9 = arith.constant 0 : index
    %c0_10 = arith.constant 0 : index
    %5 = vector.load %arg0[%c0_9, %c0_10] : memref<8x16xf32, #tpu.memory_space<vmem>>, vector<8x16xf32>
    %c0_11 = arith.constant 0 : index
    %c0_12 = arith.constant 0 : index
    %6 = vector.load %arg1[%c0_11, %c0_12] : memref<16x128xf32, #tpu.memory_space<vmem>>, vector<16x128xf32>
    %cst = arith.constant dense<0.000000e+00> : vector<8x128xf32>
    %7 = tpu.matmul %5, %6, %cst {dimension_numbers = #tpu.dot_dimension_numbers<[1], [0], [0], [1], [0, 0, 1, 1], [], []>} : vector<8x16xf32>, vector<16x128xf32>, vector<8x128xf32> -> vector<8x128xf32>
    %c0_13 = arith.constant 0 : index
    %c0_14 = arith.constant 0 : index
    %8 = vector.load %arg3[%c0_13, %c0_14] : memref<1x128xf32, #tpu.memory_space<vmem>>, vector<1x128xf32>
    %9 = vector.broadcast %8 : vector<1x128xf32> to vector<8x128xf32>
    %10 = arith.addf %7, %9 : vector<8x128xf32>
    %cst_15 = arith.constant 0.000000e+00 : f32
    %11 = vector.broadcast %cst_15 : f32 to vector<1x32xf32>
    %cst_16 = arith.constant 0.000000e+00 : f32
    %12 = vector.broadcast %cst_16 : f32 to vector<1x32xf32>
    %13 = vector.extract_strided_slice %10 {offsets = [0, 0], sizes = [1, 128], strides = [1, 1]} : vector<8x128xf32> to vector<1x128xf32>
    %cst_17 = arith.constant dense<0.000000e+00> : vector<1x128xf32>
    %14 = tpu.matmul %11, %0, %cst_17 {dimension_numbers = #tpu.dot_dimension_numbers<[1], [0], [0], [1], [0, 0, 1, 1], [], []>} : vector<1x32xf32>, vector<32x128xf32>, vector<1x128xf32> -> vector<1x128xf32>
    %15 = arith.addf %13, %14 : vector<1x128xf32>
    %16 = vector.extract_strided_slice %15 {offsets = [0, 0], sizes = [1, 96], strides = [1, 1]} : vector<1x128xf32> to vector<1x96xf32>
    %17 = arith.negf %16 : vector<1x96xf32>
    %18 = math.exp %17 : vector<1x96xf32>
    %cst_18 = arith.constant 1.000000e+00 : f32
    %19 = vector.broadcast %cst_18 : f32 to vector<1x96xf32>
    %20 = arith.addf %19, %18 : vector<1x96xf32>
    %21 = arith.divf %19, %20 : vector<1x96xf32>
    %22 = vector.extract_strided_slice %15 {offsets = [0, 96], sizes = [1, 32], strides = [1, 1]} : vector<1x128xf32> to vector<1x32xf32>
    %23 = math.tanh %22 : vector<1x32xf32>
    %24 = vector.extract_strided_slice %21 {offsets = [0, 32], sizes = [1, 32], strides = [1, 1]} : vector<1x96xf32> to vector<1x32xf32>
    %25 = arith.mulf %24, %12 : vector<1x32xf32>
    %26 = vector.extract_strided_slice %21 {offsets = [0, 0], sizes = [1, 32], strides = [1, 1]} : vector<1x96xf32> to vector<1x32xf32>
    %27 = arith.mulf %26, %23 : vector<1x32xf32>
    %28 = arith.addf %25, %27 : vector<1x32xf32>
    %29 = vector.extract_strided_slice %21 {offsets = [0, 64], sizes = [1, 32], strides = [1, 1]} : vector<1x96xf32> to vector<1x32xf32>
    %30 = math.tanh %28 : vector<1x32xf32>
    %31 = arith.mulf %29, %30 : vector<1x32xf32>
    %c0_19 = arith.constant 0 : index
    %c0_20 = arith.constant 0 : index
    %32 = vector.load %arg13[%c0_19, %c0_20] : memref<8x32xf32, #tpu.memory_space<vmem>>, vector<1x32xf32>
    tpu.vector_store %arg13[%c0_19, %c0_20], %31 {strides = array<i32>} : memref<8x32xf32, #tpu.memory_space<vmem>>, vector<1x32xf32>,
    %33 = vector.extract_strided_slice %10 {offsets = [1, 0], sizes = [1, 128], strides = [1, 1]} : vector<8x128xf32> to vector<1x128xf32>
    %cst_21 = arith.constant dense<0.000000e+00> : vector<1x128xf32>
    %34 = tpu.matmul %31, %0, %cst_21 {dimension_numbers = #tpu.dot_dimension_numbers<[1], [0], [0], [1], [0, 0, 1, 1], [], []>} : vector<1x32xf32>, vector<32x128xf32>, vector<1x128xf32> -> vector<1x128xf32>
    %35 = arith.addf %33, %34 : vector<1x128xf32>
    %36 = vector.extract_strided_slice %35 {offsets = [0, 0], sizes = [1, 96], strides = [1, 1]} : vector<1x128xf32> to vector<1x96xf32>
    %37 = arith.negf %36 : vector<1x96xf32>
    %38 = math.exp %37 : vector<1x96xf32>
    %cst_22 = arith.constant 1.000000e+00 : f32
    %39 = vector.broadcast %cst_22 : f32 to vector<1x96xf32>
    %40 = arith.addf %39, %38 : vector<1x96xf32>
    %41 = arith.divf %39, %40 : vector<1x96xf32>
    %42 = vector.extract_strided_slice %35 {offsets = [0, 96], sizes = [1, 32], strides = [1, 1]} : vector<1x128xf32> to vector<1x32xf32>
    %43 = math.tanh %42 : vector<1x32xf32>
    %44 = vector.extract_strided_slice %41 {offsets = [0, 32], sizes = [1, 32], strides = [1, 1]} : vector<1x96xf32> to vector<1x32xf32>
    %45 = arith.mulf %44, %28 : vector<1x32xf32>
    %46 = vector.extract_strided_slice %41 {offsets = [0, 0], sizes = [1, 32], strides = [1, 1]} : vector<1x96xf32> to vector<1x32xf32>
    %47 = arith.mulf %46, %43 : vector<1x32xf32>
    %48 = arith.addf %45, %47 : vector<1x32xf32>
    %49 = vector.extract_strided_slice %41 {offsets = [0, 64], sizes = [1, 32], strides = [1, 1]} : vector<1x96xf32> to vector<1x32xf32>
    %50 = math.tanh %48 : vector<1x32xf32>
    %51 = arith.mulf %49, %50 : vector<1x32xf32>
    %c1 = arith.constant 1 : index
    %c0_23 = arith.constant 0 : index
    %52 = vector.load %arg13[%c1, %c0_23] : memref<8x32xf32, #tpu.memory_space<vmem>>, vector<1x32xf32>
    tpu.vector_store %arg13[%c1, %c0_23], %51 {strides = array<i32>} : memref<8x32xf32, #tpu.memory_space<vmem>>, vector<1x32xf32>,
    %53 = vector.extract_strided_slice %10 {offsets = [2, 0], sizes = [1, 128], strides = [1, 1]} : vector<8x128xf32> to vector<1x128xf32>
    %cst_24 = arith.constant dense<0.000000e+00> : vector<1x128xf32>
    %54 = tpu.matmul %51, %0, %cst_24 {dimension_numbers = #tpu.dot_dimension_numbers<[1], [0], [0], [1], [0, 0, 1, 1], [], []>} : vector<1x32xf32>, vector<32x128xf32>, vector<1x128xf32> -> vector<1x128xf32>
    %55 = arith.addf %53, %54 : vector<1x128xf32>
    %56 = vector.extract_strided_slice %55 {offsets = [0, 0], sizes = [1, 96], strides = [1, 1]} : vector<1x128xf32> to vector<1x96xf32>
    %57 = arith.negf %56 : vector<1x96xf32>
    %58 = math.exp %57 : vector<1x96xf32>
    %cst_25 = arith.constant 1.000000e+00 : f32
    %59 = vector.broadcast %cst_25 : f32 to vector<1x96xf32>
    %60 = arith.addf %59, %58 : vector<1x96xf32>
    %61 = arith.divf %59, %60 : vector<1x96xf32>
    %62 = vector.extract_strided_slice %55 {offsets = [0, 96], sizes = [1, 32], strides = [1, 1]} : vector<1x128xf32> to vector<1x32xf32>
    %63 = math.tanh %62 : vector<1x32xf32>
    %64 = vector.extract_strided_slice %61 {offsets = [0, 32], sizes = [1, 32], strides = [1, 1]} : vector<1x96xf32> to vector<1x32xf32>
    %65 = arith.mulf %64, %48 : vector<1x32xf32>
    %66 = vector.extract_strided_slice %61 {offsets = [0, 0], sizes = [1, 32], strides = [1, 1]} : vector<1x96xf32> to vector<1x32xf32>
    %67 = arith.mulf %66, %63 : vector<1x32xf32>
    %68 = arith.addf %65, %67 : vector<1x32xf32>
    %69 = vector.extract_strided_slice %61 {offsets = [0, 64], sizes = [1, 32], strides = [1, 1]} : vector<1x96xf32> to vector<1x32xf32>
    %70 = math.tanh %68 : vector<1x32xf32>
    %71 = arith.mulf %69, %70 : vector<1x32xf32>
    %c2 = arith.constant 2 : index
    %c0_26 = arith.constant 0 : index
    %72 = vector.load %arg13[%c2, %c0_26] : memref<8x32xf32, #tpu.memory_space<vmem>>, vector<1x32xf32>
    tpu.vector_store %arg13[%c2, %c0_26], %71 {strides = array<i32>} : memref<8x32xf32, #tpu.memory_space<vmem>>, vector<1x32xf32>,
    %73 = vector.extract_strided_slice %10 {offsets = [3, 0], sizes = [1, 128], strides = [1, 1]} : vector<8x128xf32> to vector<1x128xf32>
    %cst_27 = arith.constant dense<0.000000e+00> : vector<1x128xf32>
    %74 = tpu.matmul %71, %0, %cst_27 {dimension_numbers = #tpu.dot_dimension_numbers<[1], [0], [0], [1], [0, 0, 1, 1], [], []>} : vector<1x32xf32>, vector<32x128xf32>, vector<1x128xf32> -> vector<1x128xf32>
    %75 = arith.addf %73, %74 : vector<1x128xf32>
    %76 = vector.extract_strided_slice %75 {offsets = [0, 0], sizes = [1, 96], strides = [1, 1]} : vector<1x128xf32> to vector<1x96xf32>
    %77 = arith.negf %76 : vector<1x96xf32>
    %78 = math.exp %77 : vector<1x96xf32>
    %cst_28 = arith.constant 1.000000e+00 : f32
    %79 = vector.broadcast %cst_28 : f32 to vector<1x96xf32>
    %80 = arith.addf %79, %78 : vector<1x96xf32>
    %81 = arith.divf %79, %80 : vector<1x96xf32>
    %82 = vector.extract_strided_slice %75 {offsets = [0, 96], sizes = [1, 32], strides = [1, 1]} : vector<1x128xf32> to vector<1x32xf32>
    %83 = math.tanh %82 : vector<1x32xf32>
    %84 = vector.extract_strided_slice %81 {offsets = [0, 32], sizes = [1, 32], strides = [1, 1]} : vector<1x96xf32> to vector<1x32xf32>
    %85 = arith.mulf %84, %68 : vector<1x32xf32>
    %86 = vector.extract_strided_slice %81 {offsets = [0, 0], sizes = [1, 32], strides = [1, 1]} : vector<1x96xf32> to vector<1x32xf32>
    %87 = arith.mulf %86, %83 : vector<1x32xf32>
    %88 = arith.addf %85, %87 : vector<1x32xf32>
    %89 = vector.extract_strided_slice %81 {offsets = [0, 64], sizes = [1, 32], strides = [1, 1]} : vector<1x96xf32> to vector<1x32xf32>
    %90 = math.tanh %88 : vector<1x32xf32>
    %91 = arith.mulf %89, %90 : vector<1x32xf32>
    %c3 = arith.constant 3 : index
    %c0_29 = arith.constant 0 : index
    %92 = vector.load %arg13[%c3, %c0_29] : memref<8x32xf32, #tpu.memory_space<vmem>>, vector<1x32xf32>
    tpu.vector_store %arg13[%c3, %c0_29], %91 {strides = array<i32>} : memref<8x32xf32, #tpu.memory_space<vmem>>, vector<1x32xf32>,
    %93 = vector.extract_strided_slice %10 {offsets = [4, 0], sizes = [1, 128], strides = [1, 1]} : vector<8x128xf32> to vector<1x128xf32>
    %cst_30 = arith.constant dense<0.000000e+00> : vector<1x128xf32>
    %94 = tpu.matmul %91, %0, %cst_30 {dimension_numbers = #tpu.dot_dimension_numbers<[1], [0], [0], [1], [0, 0, 1, 1], [], []>} : vector<1x32xf32>, vector<32x128xf32>, vector<1x128xf32> -> vector<1x128xf32>
    %95 = arith.addf %93, %94 : vector<1x128xf32>
    %96 = vector.extract_strided_slice %95 {offsets = [0, 0], sizes = [1, 96], strides = [1, 1]} : vector<1x128xf32> to vector<1x96xf32>
    %97 = arith.negf %96 : vector<1x96xf32>
    %98 = math.exp %97 : vector<1x96xf32>
    %cst_31 = arith.constant 1.000000e+00 : f32
    %99 = vector.broadcast %cst_31 : f32 to vector<1x96xf32>
    %100 = arith.addf %99, %98 : vector<1x96xf32>
    %101 = arith.divf %99, %100 : vector<1x96xf32>
    %102 = vector.extract_strided_slice %95 {offsets = [0, 96], sizes = [1, 32], strides = [1, 1]} : vector<1x128xf32> to vector<1x32xf32>
    %103 = math.tanh %102 : vector<1x32xf32>
    %104 = vector.extract_strided_slice %101 {offsets = [0, 32], sizes = [1, 32], strides = [1, 1]} : vector<1x96xf32> to vector<1x32xf32>
    %105 = arith.mulf %104, %88 : vector<1x32xf32>
    %106 = vector.extract_strided_slice %101 {offsets = [0, 0], sizes = [1, 32], strides = [1, 1]} : vector<1x96xf32> to vector<1x32xf32>
    %107 = arith.mulf %106, %103 : vector<1x32xf32>
    %108 = arith.addf %105, %107 : vector<1x32xf32>
    %109 = vector.extract_strided_slice %101 {offsets = [0, 64], sizes = [1, 32], strides = [1, 1]} : vector<1x96xf32> to vector<1x32xf32>
    %110 = math.tanh %108 : vector<1x32xf32>
    %111 = arith.mulf %109, %110 : vector<1x32xf32>
    %c4 = arith.constant 4 : index
    %c0_32 = arith.constant 0 : index
    %112 = vector.load %arg13[%c4, %c0_32] : memref<8x32xf32, #tpu.memory_space<vmem>>, vector<1x32xf32>
    tpu.vector_store %arg13[%c4, %c0_32], %111 {strides = array<i32>} : memref<8x32xf32, #tpu.memory_space<vmem>>, vector<1x32xf32>,
    %113 = vector.extract_strided_slice %10 {offsets = [5, 0], sizes = [1, 128], strides = [1, 1]} : vector<8x128xf32> to vector<1x128xf32>
    %cst_33 = arith.constant dense<0.000000e+00> : vector<1x128xf32>
    %114 = tpu.matmul %111, %0, %cst_33 {dimension_numbers = #tpu.dot_dimension_numbers<[1], [0], [0], [1], [0, 0, 1, 1], [], []>} : vector<1x32xf32>, vector<32x128xf32>, vector<1x128xf32> -> vector<1x128xf32>
    %115 = arith.addf %113, %114 : vector<1x128xf32>
    %116 = vector.extract_strided_slice %115 {offsets = [0, 0], sizes = [1, 96], strides = [1, 1]} : vector<1x128xf32> to vector<1x96xf32>
    %117 = arith.negf %116 : vector<1x96xf32>
    %118 = math.exp %117 : vector<1x96xf32>
    %cst_34 = arith.constant 1.000000e+00 : f32
    %119 = vector.broadcast %cst_34 : f32 to vector<1x96xf32>
    %120 = arith.addf %119, %118 : vector<1x96xf32>
    %121 = arith.divf %119, %120 : vector<1x96xf32>
    %122 = vector.extract_strided_slice %115 {offsets = [0, 96], sizes = [1, 32], strides = [1, 1]} : vector<1x128xf32> to vector<1x32xf32>
    %123 = math.tanh %122 : vector<1x32xf32>
    %124 = vector.extract_strided_slice %121 {offsets = [0, 32], sizes = [1, 32], strides = [1, 1]} : vector<1x96xf32> to vector<1x32xf32>
    %125 = arith.mulf %124, %108 : vector<1x32xf32>
    %126 = vector.extract_strided_slice %121 {offsets = [0, 0], sizes = [1, 32], strides = [1, 1]} : vector<1x96xf32> to vector<1x32xf32>
    %127 = arith.mulf %126, %123 : vector<1x32xf32>
    %128 = arith.addf %125, %127 : vector<1x32xf32>
    %129 = vector.extract_strided_slice %121 {offsets = [0, 64], sizes = [1, 32], strides = [1, 1]} : vector<1x96xf32> to vector<1x32xf32>
    %130 = math.tanh %128 : vector<1x32xf32>
    %131 = arith.mulf %129, %130 : vector<1x32xf32>
    %c5 = arith.constant 5 : index
    %c0_35 = arith.constant 0 : index
    %132 = vector.load %arg13[%c5, %c0_35] : memref<8x32xf32, #tpu.memory_space<vmem>>, vector<1x32xf32>
    tpu.vector_store %arg13[%c5, %c0_35], %131 {strides = array<i32>} : memref<8x32xf32, #tpu.memory_space<vmem>>, vector<1x32xf32>,
    %133 = vector.extract_strided_slice %10 {offsets = [6, 0], sizes = [1, 128], strides = [1, 1]} : vector<8x128xf32> to vector<1x128xf32>
    %cst_36 = arith.constant dense<0.000000e+00> : vector<1x128xf32>
    %134 = tpu.matmul %131, %0, %cst_36 {dimension_numbers = #tpu.dot_dimension_numbers<[1], [0], [0], [1], [0, 0, 1, 1], [], []>} : vector<1x32xf32>, vector<32x128xf32>, vector<1x128xf32> -> vector<1x128xf32>
    %135 = arith.addf %133, %134 : vector<1x128xf32>
    %136 = vector.extract_strided_slice %135 {offsets = [0, 0], sizes = [1, 96], strides = [1, 1]} : vector<1x128xf32> to vector<1x96xf32>
    %137 = arith.negf %136 : vector<1x96xf32>
    %138 = math.exp %137 : vector<1x96xf32>
    %cst_37 = arith.constant 1.000000e+00 : f32
    %139 = vector.broadcast %cst_37 : f32 to vector<1x96xf32>
    %140 = arith.addf %139, %138 : vector<1x96xf32>
    %141 = arith.divf %139, %140 : vector<1x96xf32>
    %142 = vector.extract_strided_slice %135 {offsets = [0, 96], sizes = [1, 32], strides = [1, 1]} : vector<1x128xf32> to vector<1x32xf32>
    %143 = math.tanh %142 : vector<1x32xf32>
    %144 = vector.extract_strided_slice %141 {offsets = [0, 32], sizes = [1, 32], strides = [1, 1]} : vector<1x96xf32> to vector<1x32xf32>
    %145 = arith.mulf %144, %128 : vector<1x32xf32>
    %146 = vector.extract_strided_slice %141 {offsets = [0, 0], sizes = [1, 32], strides = [1, 1]} : vector<1x96xf32> to vector<1x32xf32>
    %147 = arith.mulf %146, %143 : vector<1x32xf32>
    %148 = arith.addf %145, %147 : vector<1x32xf32>
    %149 = vector.extract_strided_slice %141 {offsets = [0, 64], sizes = [1, 32], strides = [1, 1]} : vector<1x96xf32> to vector<1x32xf32>
    %150 = math.tanh %148 : vector<1x32xf32>
    %151 = arith.mulf %149, %150 : vector<1x32xf32>
    %c6 = arith.constant 6 : index
    %c0_38 = arith.constant 0 : index
    %152 = vector.load %arg13[%c6, %c0_38] : memref<8x32xf32, #tpu.memory_space<vmem>>, vector<1x32xf32>
    tpu.vector_store %arg13[%c6, %c0_38], %151 {strides = array<i32>} : memref<8x32xf32, #tpu.memory_space<vmem>>, vector<1x32xf32>,
    %153 = vector.extract_strided_slice %10 {offsets = [7, 0], sizes = [1, 128], strides = [1, 1]} : vector<8x128xf32> to vector<1x128xf32>
    %cst_39 = arith.constant dense<0.000000e+00> : vector<1x128xf32>
    %154 = tpu.matmul %151, %0, %cst_39 {dimension_numbers = #tpu.dot_dimension_numbers<[1], [0], [0], [1], [0, 0, 1, 1], [], []>} : vector<1x32xf32>, vector<32x128xf32>, vector<1x128xf32> -> vector<1x128xf32>
    %155 = arith.addf %153, %154 : vector<1x128xf32>
    %156 = vector.extract_strided_slice %155 {offsets = [0, 0], sizes = [1, 96], strides = [1, 1]} : vector<1x128xf32> to vector<1x96xf32>
    %157 = arith.negf %156 : vector<1x96xf32>
    %158 = math.exp %157 : vector<1x96xf32>
    %cst_40 = arith.constant 1.000000e+00 : f32
    %159 = vector.broadcast %cst_40 : f32 to vector<1x96xf32>
    %160 = arith.addf %159, %158 : vector<1x96xf32>
    %161 = arith.divf %159, %160 : vector<1x96xf32>
    %162 = vector.extract_strided_slice %155 {offsets = [0, 96], sizes = [1, 32], strides = [1, 1]} : vector<1x128xf32> to vector<1x32xf32>
    %163 = math.tanh %162 : vector<1x32xf32>
    %164 = vector.extract_strided_slice %161 {offsets = [0, 32], sizes = [1, 32], strides = [1, 1]} : vector<1x96xf32> to vector<1x32xf32>
    %165 = arith.mulf %164, %148 : vector<1x32xf32>
    %166 = vector.extract_strided_slice %161 {offsets = [0, 0], sizes = [1, 32], strides = [1, 1]} : vector<1x96xf32> to vector<1x32xf32>
    %167 = arith.mulf %166, %163 : vector<1x32xf32>
    %168 = arith.addf %165, %167 : vector<1x32xf32>
    %169 = vector.extract_strided_slice %161 {offsets = [0, 64], sizes = [1, 32], strides = [1, 1]} : vector<1x96xf32> to vector<1x32xf32>
    %170 = math.tanh %168 : vector<1x32xf32>
    %171 = arith.mulf %169, %170 : vector<1x32xf32>
    %c7 = arith.constant 7 : index
    %c0_41 = arith.constant 0 : index
    %172 = vector.load %arg13[%c7, %c0_41] : memref<8x32xf32, #tpu.memory_space<vmem>>, vector<1x32xf32>
    tpu.vector_store %arg13[%c7, %c0_41], %171 {strides = array<i32>} : memref<8x32xf32, #tpu.memory_space<vmem>>, vector<1x32xf32>,
    %c0_42 = arith.constant 0 : index
    %c0_43 = arith.constant 0 : index
    %173 = vector.load %arg13[%c0_42, %c0_43] : memref<8x32xf32, #tpu.memory_space<vmem>>, vector<8x32xf32>
    %c0_44 = arith.constant 0 : index
    %c0_45 = arith.constant 0 : index
    %174 = vector.load %arg4[%c0_44, %c0_45] : memref<32x128xf32, #tpu.memory_space<vmem>>, vector<32x128xf32>
    %cst_46 = arith.constant dense<0.000000e+00> : vector<8x128xf32>
    %175 = tpu.matmul %173, %174, %cst_46 {dimension_numbers = #tpu.dot_dimension_numbers<[1], [0], [0], [1], [0, 0, 1, 1], [], []>} : vector<8x32xf32>, vector<32x128xf32>, vector<8x128xf32> -> vector<8x128xf32>
    %c0_47 = arith.constant 0 : index
    %c0_48 = arith.constant 0 : index
    %176 = vector.load %arg6[%c0_47, %c0_48] : memref<1x128xf32, #tpu.memory_space<vmem>>, vector<1x128xf32>
    %177 = vector.broadcast %176 : vector<1x128xf32> to vector<8x128xf32>
    %178 = arith.addf %175, %177 : vector<8x128xf32>
    %cst_49 = arith.constant 0.000000e+00 : f32
    %179 = vector.broadcast %cst_49 : f32 to vector<1x32xf32>
    %cst_50 = arith.constant 0.000000e+00 : f32
    %180 = vector.broadcast %cst_50 : f32 to vector<1x32xf32>
    %181 = vector.extract_strided_slice %178 {offsets = [0, 0], sizes = [1, 128], strides = [1, 1]} : vector<8x128xf32> to vector<1x128xf32>
    %cst_51 = arith.constant dense<0.000000e+00> : vector<1x128xf32>
    %182 = tpu.matmul %179, %1, %cst_51 {dimension_numbers = #tpu.dot_dimension_numbers<[1], [0], [0], [1], [0, 0, 1, 1], [], []>} : vector<1x32xf32>, vector<32x128xf32>, vector<1x128xf32> -> vector<1x128xf32>
    %183 = arith.addf %181, %182 : vector<1x128xf32>
    %184 = vector.extract_strided_slice %183 {offsets = [0, 0], sizes = [1, 96], strides = [1, 1]} : vector<1x128xf32> to vector<1x96xf32>
    %185 = arith.negf %184 : vector<1x96xf32>
    %186 = math.exp %185 : vector<1x96xf32>
    %cst_52 = arith.constant 1.000000e+00 : f32
    %187 = vector.broadcast %cst_52 : f32 to vector<1x96xf32>
    %188 = arith.addf %187, %186 : vector<1x96xf32>
    %189 = arith.divf %187, %188 : vector<1x96xf32>
    %190 = vector.extract_strided_slice %183 {offsets = [0, 96], sizes = [1, 32], strides = [1, 1]} : vector<1x128xf32> to vector<1x32xf32>
    %191 = math.tanh %190 : vector<1x32xf32>
    %192 = vector.extract_strided_slice %189 {offsets = [0, 32], sizes = [1, 32], strides = [1, 1]} : vector<1x96xf32> to vector<1x32xf32>
    %193 = arith.mulf %192, %180 : vector<1x32xf32>
    %194 = vector.extract_strided_slice %189 {offsets = [0, 0], sizes = [1, 32], strides = [1, 1]} : vector<1x96xf32> to vector<1x32xf32>
    %195 = arith.mulf %194, %191 : vector<1x32xf32>
    %196 = arith.addf %193, %195 : vector<1x32xf32>
    %197 = vector.extract_strided_slice %189 {offsets = [0, 64], sizes = [1, 32], strides = [1, 1]} : vector<1x96xf32> to vector<1x32xf32>
    %198 = math.tanh %196 : vector<1x32xf32>
    %199 = arith.mulf %197, %198 : vector<1x32xf32>
    %c0_53 = arith.constant 0 : index
    %c0_54 = arith.constant 0 : index
    %200 = vector.load %arg14[%c0_53, %c0_54] : memref<8x32xf32, #tpu.memory_space<vmem>>, vector<1x32xf32>
    tpu.vector_store %arg14[%c0_53, %c0_54], %199 {strides = array<i32>} : memref<8x32xf32, #tpu.memory_space<vmem>>, vector<1x32xf32>,
    %201 = vector.extract_strided_slice %178 {offsets = [1, 0], sizes = [1, 128], strides = [1, 1]} : vector<8x128xf32> to vector<1x128xf32>
    %cst_55 = arith.constant dense<0.000000e+00> : vector<1x128xf32>
    %202 = tpu.matmul %199, %1, %cst_55 {dimension_numbers = #tpu.dot_dimension_numbers<[1], [0], [0], [1], [0, 0, 1, 1], [], []>} : vector<1x32xf32>, vector<32x128xf32>, vector<1x128xf32> -> vector<1x128xf32>
    %203 = arith.addf %201, %202 : vector<1x128xf32>
    %204 = vector.extract_strided_slice %203 {offsets = [0, 0], sizes = [1, 96], strides = [1, 1]} : vector<1x128xf32> to vector<1x96xf32>
    %205 = arith.negf %204 : vector<1x96xf32>
    %206 = math.exp %205 : vector<1x96xf32>
    %cst_56 = arith.constant 1.000000e+00 : f32
    %207 = vector.broadcast %cst_56 : f32 to vector<1x96xf32>
    %208 = arith.addf %207, %206 : vector<1x96xf32>
    %209 = arith.divf %207, %208 : vector<1x96xf32>
    %210 = vector.extract_strided_slice %203 {offsets = [0, 96], sizes = [1, 32], strides = [1, 1]} : vector<1x128xf32> to vector<1x32xf32>
    %211 = math.tanh %210 : vector<1x32xf32>
    %212 = vector.extract_strided_slice %209 {offsets = [0, 32], sizes = [1, 32], strides = [1, 1]} : vector<1x96xf32> to vector<1x32xf32>
    %213 = arith.mulf %212, %196 : vector<1x32xf32>
    %214 = vector.extract_strided_slice %209 {offsets = [0, 0], sizes = [1, 32], strides = [1, 1]} : vector<1x96xf32> to vector<1x32xf32>
    %215 = arith.mulf %214, %211 : vector<1x32xf32>
    %216 = arith.addf %213, %215 : vector<1x32xf32>
    %217 = vector.extract_strided_slice %209 {offsets = [0, 64], sizes = [1, 32], strides = [1, 1]} : vector<1x96xf32> to vector<1x32xf32>
    %218 = math.tanh %216 : vector<1x32xf32>
    %219 = arith.mulf %217, %218 : vector<1x32xf32>
    %c1_57 = arith.constant 1 : index
    %c0_58 = arith.constant 0 : index
    %220 = vector.load %arg14[%c1_57, %c0_58] : memref<8x32xf32, #tpu.memory_space<vmem>>, vector<1x32xf32>
    tpu.vector_store %arg14[%c1_57, %c0_58], %219 {strides = array<i32>} : memref<8x32xf32, #tpu.memory_space<vmem>>, vector<1x32xf32>,
    %221 = vector.extract_strided_slice %178 {offsets = [2, 0], sizes = [1, 128], strides = [1, 1]} : vector<8x128xf32> to vector<1x128xf32>
    %cst_59 = arith.constant dense<0.000000e+00> : vector<1x128xf32>
    %222 = tpu.matmul %219, %1, %cst_59 {dimension_numbers = #tpu.dot_dimension_numbers<[1], [0], [0], [1], [0, 0, 1, 1], [], []>} : vector<1x32xf32>, vector<32x128xf32>, vector<1x128xf32> -> vector<1x128xf32>
    %223 = arith.addf %221, %222 : vector<1x128xf32>
    %224 = vector.extract_strided_slice %223 {offsets = [0, 0], sizes = [1, 96], strides = [1, 1]} : vector<1x128xf32> to vector<1x96xf32>
    %225 = arith.negf %224 : vector<1x96xf32>
    %226 = math.exp %225 : vector<1x96xf32>
    %cst_60 = arith.constant 1.000000e+00 : f32
    %227 = vector.broadcast %cst_60 : f32 to vector<1x96xf32>
    %228 = arith.addf %227, %226 : vector<1x96xf32>
    %229 = arith.divf %227, %228 : vector<1x96xf32>
    %230 = vector.extract_strided_slice %223 {offsets = [0, 96], sizes = [1, 32], strides = [1, 1]} : vector<1x128xf32> to vector<1x32xf32>
    %231 = math.tanh %230 : vector<1x32xf32>
    %232 = vector.extract_strided_slice %229 {offsets = [0, 32], sizes = [1, 32], strides = [1, 1]} : vector<1x96xf32> to vector<1x32xf32>
    %233 = arith.mulf %232, %216 : vector<1x32xf32>
    %234 = vector.extract_strided_slice %229 {offsets = [0, 0], sizes = [1, 32], strides = [1, 1]} : vector<1x96xf32> to vector<1x32xf32>
    %235 = arith.mulf %234, %231 : vector<1x32xf32>
    %236 = arith.addf %233, %235 : vector<1x32xf32>
    %237 = vector.extract_strided_slice %229 {offsets = [0, 64], sizes = [1, 32], strides = [1, 1]} : vector<1x96xf32> to vector<1x32xf32>
    %238 = math.tanh %236 : vector<1x32xf32>
    %239 = arith.mulf %237, %238 : vector<1x32xf32>
    %c2_61 = arith.constant 2 : index
    %c0_62 = arith.constant 0 : index
    %240 = vector.load %arg14[%c2_61, %c0_62] : memref<8x32xf32, #tpu.memory_space<vmem>>, vector<1x32xf32>
    tpu.vector_store %arg14[%c2_61, %c0_62], %239 {strides = array<i32>} : memref<8x32xf32, #tpu.memory_space<vmem>>, vector<1x32xf32>,
    %241 = vector.extract_strided_slice %178 {offsets = [3, 0], sizes = [1, 128], strides = [1, 1]} : vector<8x128xf32> to vector<1x128xf32>
    %cst_63 = arith.constant dense<0.000000e+00> : vector<1x128xf32>
    %242 = tpu.matmul %239, %1, %cst_63 {dimension_numbers = #tpu.dot_dimension_numbers<[1], [0], [0], [1], [0, 0, 1, 1], [], []>} : vector<1x32xf32>, vector<32x128xf32>, vector<1x128xf32> -> vector<1x128xf32>
    %243 = arith.addf %241, %242 : vector<1x128xf32>
    %244 = vector.extract_strided_slice %243 {offsets = [0, 0], sizes = [1, 96], strides = [1, 1]} : vector<1x128xf32> to vector<1x96xf32>
    %245 = arith.negf %244 : vector<1x96xf32>
    %246 = math.exp %245 : vector<1x96xf32>
    %cst_64 = arith.constant 1.000000e+00 : f32
    %247 = vector.broadcast %cst_64 : f32 to vector<1x96xf32>
    %248 = arith.addf %247, %246 : vector<1x96xf32>
    %249 = arith.divf %247, %248 : vector<1x96xf32>
    %250 = vector.extract_strided_slice %243 {offsets = [0, 96], sizes = [1, 32], strides = [1, 1]} : vector<1x128xf32> to vector<1x32xf32>
    %251 = math.tanh %250 : vector<1x32xf32>
    %252 = vector.extract_strided_slice %249 {offsets = [0, 32], sizes = [1, 32], strides = [1, 1]} : vector<1x96xf32> to vector<1x32xf32>
    %253 = arith.mulf %252, %236 : vector<1x32xf32>
    %254 = vector.extract_strided_slice %249 {offsets = [0, 0], sizes = [1, 32], strides = [1, 1]} : vector<1x96xf32> to vector<1x32xf32>
    %255 = arith.mulf %254, %251 : vector<1x32xf32>
    %256 = arith.addf %253, %255 : vector<1x32xf32>
    %257 = vector.extract_strided_slice %249 {offsets = [0, 64], sizes = [1, 32], strides = [1, 1]} : vector<1x96xf32> to vector<1x32xf32>
    %258 = math.tanh %256 : vector<1x32xf32>
    %259 = arith.mulf %257, %258 : vector<1x32xf32>
    %c3_65 = arith.constant 3 : index
    %c0_66 = arith.constant 0 : index
    %260 = vector.load %arg14[%c3_65, %c0_66] : memref<8x32xf32, #tpu.memory_space<vmem>>, vector<1x32xf32>
    tpu.vector_store %arg14[%c3_65, %c0_66], %259 {strides = array<i32>} : memref<8x32xf32, #tpu.memory_space<vmem>>, vector<1x32xf32>,
    %261 = vector.extract_strided_slice %178 {offsets = [4, 0], sizes = [1, 128], strides = [1, 1]} : vector<8x128xf32> to vector<1x128xf32>
    %cst_67 = arith.constant dense<0.000000e+00> : vector<1x128xf32>
    %262 = tpu.matmul %259, %1, %cst_67 {dimension_numbers = #tpu.dot_dimension_numbers<[1], [0], [0], [1], [0, 0, 1, 1], [], []>} : vector<1x32xf32>, vector<32x128xf32>, vector<1x128xf32> -> vector<1x128xf32>
    %263 = arith.addf %261, %262 : vector<1x128xf32>
    %264 = vector.extract_strided_slice %263 {offsets = [0, 0], sizes = [1, 96], strides = [1, 1]} : vector<1x128xf32> to vector<1x96xf32>
    %265 = arith.negf %264 : vector<1x96xf32>
    %266 = math.exp %265 : vector<1x96xf32>
    %cst_68 = arith.constant 1.000000e+00 : f32
    %267 = vector.broadcast %cst_68 : f32 to vector<1x96xf32>
    %268 = arith.addf %267, %266 : vector<1x96xf32>
    %269 = arith.divf %267, %268 : vector<1x96xf32>
    %270 = vector.extract_strided_slice %263 {offsets = [0, 96], sizes = [1, 32], strides = [1, 1]} : vector<1x128xf32> to vector<1x32xf32>
    %271 = math.tanh %270 : vector<1x32xf32>
    %272 = vector.extract_strided_slice %269 {offsets = [0, 32], sizes = [1, 32], strides = [1, 1]} : vector<1x96xf32> to vector<1x32xf32>
    %273 = arith.mulf %272, %256 : vector<1x32xf32>
    %274 = vector.extract_strided_slice %269 {offsets = [0, 0], sizes = [1, 32], strides = [1, 1]} : vector<1x96xf32> to vector<1x32xf32>
    %275 = arith.mulf %274, %271 : vector<1x32xf32>
    %276 = arith.addf %273, %275 : vector<1x32xf32>
    %277 = vector.extract_strided_slice %269 {offsets = [0, 64], sizes = [1, 32], strides = [1, 1]} : vector<1x96xf32> to vector<1x32xf32>
    %278 = math.tanh %276 : vector<1x32xf32>
    %279 = arith.mulf %277, %278 : vector<1x32xf32>
    %c4_69 = arith.constant 4 : index
    %c0_70 = arith.constant 0 : index
    %280 = vector.load %arg14[%c4_69, %c0_70] : memref<8x32xf32, #tpu.memory_space<vmem>>, vector<1x32xf32>
    tpu.vector_store %arg14[%c4_69, %c0_70], %279 {strides = array<i32>} : memref<8x32xf32, #tpu.memory_space<vmem>>, vector<1x32xf32>,
    %281 = vector.extract_strided_slice %178 {offsets = [5, 0], sizes = [1, 128], strides = [1, 1]} : vector<8x128xf32> to vector<1x128xf32>
    %cst_71 = arith.constant dense<0.000000e+00> : vector<1x128xf32>
    %282 = tpu.matmul %279, %1, %cst_71 {dimension_numbers = #tpu.dot_dimension_numbers<[1], [0], [0], [1], [0, 0, 1, 1], [], []>} : vector<1x32xf32>, vector<32x128xf32>, vector<1x128xf32> -> vector<1x128xf32>
    %283 = arith.addf %281, %282 : vector<1x128xf32>
    %284 = vector.extract_strided_slice %283 {offsets = [0, 0], sizes = [1, 96], strides = [1, 1]} : vector<1x128xf32> to vector<1x96xf32>
    %285 = arith.negf %284 : vector<1x96xf32>
    %286 = math.exp %285 : vector<1x96xf32>
    %cst_72 = arith.constant 1.000000e+00 : f32
    %287 = vector.broadcast %cst_72 : f32 to vector<1x96xf32>
    %288 = arith.addf %287, %286 : vector<1x96xf32>
    %289 = arith.divf %287, %288 : vector<1x96xf32>
    %290 = vector.extract_strided_slice %283 {offsets = [0, 96], sizes = [1, 32], strides = [1, 1]} : vector<1x128xf32> to vector<1x32xf32>
    %291 = math.tanh %290 : vector<1x32xf32>
    %292 = vector.extract_strided_slice %289 {offsets = [0, 32], sizes = [1, 32], strides = [1, 1]} : vector<1x96xf32> to vector<1x32xf32>
    %293 = arith.mulf %292, %276 : vector<1x32xf32>
    %294 = vector.extract_strided_slice %289 {offsets = [0, 0], sizes = [1, 32], strides = [1, 1]} : vector<1x96xf32> to vector<1x32xf32>
    %295 = arith.mulf %294, %291 : vector<1x32xf32>
    %296 = arith.addf %293, %295 : vector<1x32xf32>
    %297 = vector.extract_strided_slice %289 {offsets = [0, 64], sizes = [1, 32], strides = [1, 1]} : vector<1x96xf32> to vector<1x32xf32>
    %298 = math.tanh %296 : vector<1x32xf32>
    %299 = arith.mulf %297, %298 : vector<1x32xf32>
    %c5_73 = arith.constant 5 : index
    %c0_74 = arith.constant 0 : index
    %300 = vector.load %arg14[%c5_73, %c0_74] : memref<8x32xf32, #tpu.memory_space<vmem>>, vector<1x32xf32>
    tpu.vector_store %arg14[%c5_73, %c0_74], %299 {strides = array<i32>} : memref<8x32xf32, #tpu.memory_space<vmem>>, vector<1x32xf32>,
    %301 = vector.extract_strided_slice %178 {offsets = [6, 0], sizes = [1, 128], strides = [1, 1]} : vector<8x128xf32> to vector<1x128xf32>
    %cst_75 = arith.constant dense<0.000000e+00> : vector<1x128xf32>
    %302 = tpu.matmul %299, %1, %cst_75 {dimension_numbers = #tpu.dot_dimension_numbers<[1], [0], [0], [1], [0, 0, 1, 1], [], []>} : vector<1x32xf32>, vector<32x128xf32>, vector<1x128xf32> -> vector<1x128xf32>
    %303 = arith.addf %301, %302 : vector<1x128xf32>
    %304 = vector.extract_strided_slice %303 {offsets = [0, 0], sizes = [1, 96], strides = [1, 1]} : vector<1x128xf32> to vector<1x96xf32>
    %305 = arith.negf %304 : vector<1x96xf32>
    %306 = math.exp %305 : vector<1x96xf32>
    %cst_76 = arith.constant 1.000000e+00 : f32
    %307 = vector.broadcast %cst_76 : f32 to vector<1x96xf32>
    %308 = arith.addf %307, %306 : vector<1x96xf32>
    %309 = arith.divf %307, %308 : vector<1x96xf32>
    %310 = vector.extract_strided_slice %303 {offsets = [0, 96], sizes = [1, 32], strides = [1, 1]} : vector<1x128xf32> to vector<1x32xf32>
    %311 = math.tanh %310 : vector<1x32xf32>
    %312 = vector.extract_strided_slice %309 {offsets = [0, 32], sizes = [1, 32], strides = [1, 1]} : vector<1x96xf32> to vector<1x32xf32>
    %313 = arith.mulf %312, %296 : vector<1x32xf32>
    %314 = vector.extract_strided_slice %309 {offsets = [0, 0], sizes = [1, 32], strides = [1, 1]} : vector<1x96xf32> to vector<1x32xf32>
    %315 = arith.mulf %314, %311 : vector<1x32xf32>
    %316 = arith.addf %313, %315 : vector<1x32xf32>
    %317 = vector.extract_strided_slice %309 {offsets = [0, 64], sizes = [1, 32], strides = [1, 1]} : vector<1x96xf32> to vector<1x32xf32>
    %318 = math.tanh %316 : vector<1x32xf32>
    %319 = arith.mulf %317, %318 : vector<1x32xf32>
    %c6_77 = arith.constant 6 : index
    %c0_78 = arith.constant 0 : index
    %320 = vector.load %arg14[%c6_77, %c0_78] : memref<8x32xf32, #tpu.memory_space<vmem>>, vector<1x32xf32>
    tpu.vector_store %arg14[%c6_77, %c0_78], %319 {strides = array<i32>} : memref<8x32xf32, #tpu.memory_space<vmem>>, vector<1x32xf32>,
    %321 = vector.extract_strided_slice %178 {offsets = [7, 0], sizes = [1, 128], strides = [1, 1]} : vector<8x128xf32> to vector<1x128xf32>
    %cst_79 = arith.constant dense<0.000000e+00> : vector<1x128xf32>
    %322 = tpu.matmul %319, %1, %cst_79 {dimension_numbers = #tpu.dot_dimension_numbers<[1], [0], [0], [1], [0, 0, 1, 1], [], []>} : vector<1x32xf32>, vector<32x128xf32>, vector<1x128xf32> -> vector<1x128xf32>
    %323 = arith.addf %321, %322 : vector<1x128xf32>
    %324 = vector.extract_strided_slice %323 {offsets = [0, 0], sizes = [1, 96], strides = [1, 1]} : vector<1x128xf32> to vector<1x96xf32>
    %325 = arith.negf %324 : vector<1x96xf32>
    %326 = math.exp %325 : vector<1x96xf32>
    %cst_80 = arith.constant 1.000000e+00 : f32
    %327 = vector.broadcast %cst_80 : f32 to vector<1x96xf32>
    %328 = arith.addf %327, %326 : vector<1x96xf32>
    %329 = arith.divf %327, %328 : vector<1x96xf32>
    %330 = vector.extract_strided_slice %323 {offsets = [0, 96], sizes = [1, 32], strides = [1, 1]} : vector<1x128xf32> to vector<1x32xf32>
    %331 = math.tanh %330 : vector<1x32xf32>
    %332 = vector.extract_strided_slice %329 {offsets = [0, 32], sizes = [1, 32], strides = [1, 1]} : vector<1x96xf32> to vector<1x32xf32>
    %333 = arith.mulf %332, %316 : vector<1x32xf32>
    %334 = vector.extract_strided_slice %329 {offsets = [0, 0], sizes = [1, 32], strides = [1, 1]} : vector<1x96xf32> to vector<1x32xf32>
    %335 = arith.mulf %334, %331 : vector<1x32xf32>
    %336 = arith.addf %333, %335 : vector<1x32xf32>
    %337 = vector.extract_strided_slice %329 {offsets = [0, 64], sizes = [1, 32], strides = [1, 1]} : vector<1x96xf32> to vector<1x32xf32>
    %338 = math.tanh %336 : vector<1x32xf32>
    %339 = arith.mulf %337, %338 : vector<1x32xf32>
    %c7_81 = arith.constant 7 : index
    %c0_82 = arith.constant 0 : index
    %340 = vector.load %arg14[%c7_81, %c0_82] : memref<8x32xf32, #tpu.memory_space<vmem>>, vector<1x32xf32>
    tpu.vector_store %arg14[%c7_81, %c0_82], %339 {strides = array<i32>} : memref<8x32xf32, #tpu.memory_space<vmem>>, vector<1x32xf32>,
    %c0_83 = arith.constant 0 : index
    %c0_84 = arith.constant 0 : index
    %341 = vector.load %arg14[%c0_83, %c0_84] : memref<8x32xf32, #tpu.memory_space<vmem>>, vector<8x32xf32>
    %c0_85 = arith.constant 0 : index
    %c0_86 = arith.constant 0 : index
    %342 = vector.load %arg7[%c0_85, %c0_86] : memref<32x128xf32, #tpu.memory_space<vmem>>, vector<32x128xf32>
    %cst_87 = arith.constant dense<0.000000e+00> : vector<8x128xf32>
    %343 = tpu.matmul %341, %342, %cst_87 {dimension_numbers = #tpu.dot_dimension_numbers<[1], [0], [0], [1], [0, 0, 1, 1], [], []>} : vector<8x32xf32>, vector<32x128xf32>, vector<8x128xf32> -> vector<8x128xf32>
    %c0_88 = arith.constant 0 : index
    %c0_89 = arith.constant 0 : index
    %344 = vector.load %arg9[%c0_88, %c0_89] : memref<1x128xf32, #tpu.memory_space<vmem>>, vector<1x128xf32>
    %345 = vector.broadcast %344 : vector<1x128xf32> to vector<8x128xf32>
    %346 = arith.addf %343, %345 : vector<8x128xf32>
    %cst_90 = arith.constant 0.000000e+00 : f32
    %347 = vector.broadcast %cst_90 : f32 to vector<1x32xf32>
    %cst_91 = arith.constant 0.000000e+00 : f32
    %348 = vector.broadcast %cst_91 : f32 to vector<1x32xf32>
    %349 = tpu.iota {dimensions = array<i32: 1>} : vector<1x8xi32>
    %cst_92 = arith.constant 0.000000e+00 : f32
    %350 = vector.broadcast %cst_92 : f32 to vector<1x8xf32>
    %351 = vector.extract_strided_slice %346 {offsets = [0, 0], sizes = [1, 128], strides = [1, 1]} : vector<8x128xf32> to vector<1x128xf32>
    %cst_93 = arith.constant dense<0.000000e+00> : vector<1x128xf32>
    %352 = tpu.matmul %347, %2, %cst_93 {dimension_numbers = #tpu.dot_dimension_numbers<[1], [0], [0], [1], [0, 0, 1, 1], [], []>} : vector<1x32xf32>, vector<32x128xf32>, vector<1x128xf32> -> vector<1x128xf32>
    %353 = arith.addf %351, %352 : vector<1x128xf32>
    %354 = vector.extract_strided_slice %353 {offsets = [0, 0], sizes = [1, 96], strides = [1, 1]} : vector<1x128xf32> to vector<1x96xf32>
    %355 = arith.negf %354 : vector<1x96xf32>
    %356 = math.exp %355 : vector<1x96xf32>
    %cst_94 = arith.constant 1.000000e+00 : f32
    %357 = vector.broadcast %cst_94 : f32 to vector<1x96xf32>
    %358 = arith.addf %357, %356 : vector<1x96xf32>
    %359 = arith.divf %357, %358 : vector<1x96xf32>
    %360 = vector.extract_strided_slice %353 {offsets = [0, 96], sizes = [1, 32], strides = [1, 1]} : vector<1x128xf32> to vector<1x32xf32>
    %361 = math.tanh %360 : vector<1x32xf32>
    %362 = vector.extract_strided_slice %359 {offsets = [0, 32], sizes = [1, 32], strides = [1, 1]} : vector<1x96xf32> to vector<1x32xf32>
    %363 = arith.mulf %362, %348 : vector<1x32xf32>
    %364 = vector.extract_strided_slice %359 {offsets = [0, 0], sizes = [1, 32], strides = [1, 1]} : vector<1x96xf32> to vector<1x32xf32>
    %365 = arith.mulf %364, %361 : vector<1x32xf32>
    %366 = arith.addf %363, %365 : vector<1x32xf32>
    %367 = vector.extract_strided_slice %359 {offsets = [0, 64], sizes = [1, 32], strides = [1, 1]} : vector<1x96xf32> to vector<1x32xf32>
    %368 = math.tanh %366 : vector<1x32xf32>
    %369 = arith.mulf %367, %368 : vector<1x32xf32>
    %370 = arith.mulf %369, %3 : vector<1x32xf32>
    %cst_95 = arith.constant dense<0.000000e+00> : vector<1xf32>
    %371 = vector.multi_reduction <add>, %370, %cst_95 [1] : vector<1x32xf32> to vector<1xf32>
    %372 = vector.shape_cast %371 : vector<1xf32> to vector<1x1xf32>
    %c0_i32 = arith.constant 0 : i32
    %373 = vector.broadcast %c0_i32 : i32 to vector<1x8xi32>
    %374 = arith.cmpi eq, %349, %373 : vector<1x8xi32>
    %375 = vector.shape_cast %372 : vector<1x1xf32> to vector<1x1xf32>
    %376 = vector.broadcast %375 : vector<1x1xf32> to vector<1x8xf32>
    %377 = arith.select %374, %376, %350 : vector<1x8xi1>, vector<1x8xf32>
    %378 = vector.extract_strided_slice %346 {offsets = [1, 0], sizes = [1, 128], strides = [1, 1]} : vector<8x128xf32> to vector<1x128xf32>
    %cst_96 = arith.constant dense<0.000000e+00> : vector<1x128xf32>
    %379 = tpu.matmul %369, %2, %cst_96 {dimension_numbers = #tpu.dot_dimension_numbers<[1], [0], [0], [1], [0, 0, 1, 1], [], []>} : vector<1x32xf32>, vector<32x128xf32>, vector<1x128xf32> -> vector<1x128xf32>
    %380 = arith.addf %378, %379 : vector<1x128xf32>
    %381 = vector.extract_strided_slice %380 {offsets = [0, 0], sizes = [1, 96], strides = [1, 1]} : vector<1x128xf32> to vector<1x96xf32>
    %382 = arith.negf %381 : vector<1x96xf32>
    %383 = math.exp %382 : vector<1x96xf32>
    %cst_97 = arith.constant 1.000000e+00 : f32
    %384 = vector.broadcast %cst_97 : f32 to vector<1x96xf32>
    %385 = arith.addf %384, %383 : vector<1x96xf32>
    %386 = arith.divf %384, %385 : vector<1x96xf32>
    %387 = vector.extract_strided_slice %380 {offsets = [0, 96], sizes = [1, 32], strides = [1, 1]} : vector<1x128xf32> to vector<1x32xf32>
    %388 = math.tanh %387 : vector<1x32xf32>
    %389 = vector.extract_strided_slice %386 {offsets = [0, 32], sizes = [1, 32], strides = [1, 1]} : vector<1x96xf32> to vector<1x32xf32>
    %390 = arith.mulf %389, %366 : vector<1x32xf32>
    %391 = vector.extract_strided_slice %386 {offsets = [0, 0], sizes = [1, 32], strides = [1, 1]} : vector<1x96xf32> to vector<1x32xf32>
    %392 = arith.mulf %391, %388 : vector<1x32xf32>
    %393 = arith.addf %390, %392 : vector<1x32xf32>
    %394 = vector.extract_strided_slice %386 {offsets = [0, 64], sizes = [1, 32], strides = [1, 1]} : vector<1x96xf32> to vector<1x32xf32>
    %395 = math.tanh %393 : vector<1x32xf32>
    %396 = arith.mulf %394, %395 : vector<1x32xf32>
    %397 = arith.mulf %396, %3 : vector<1x32xf32>
    %cst_98 = arith.constant dense<0.000000e+00> : vector<1xf32>
    %398 = vector.multi_reduction <add>, %397, %cst_98 [1] : vector<1x32xf32> to vector<1xf32>
    %399 = vector.shape_cast %398 : vector<1xf32> to vector<1x1xf32>
    %c1_i32 = arith.constant 1 : i32
    %400 = vector.broadcast %c1_i32 : i32 to vector<1x8xi32>
    %401 = arith.cmpi eq, %349, %400 : vector<1x8xi32>
    %402 = vector.shape_cast %399 : vector<1x1xf32> to vector<1x1xf32>
    %403 = vector.broadcast %402 : vector<1x1xf32> to vector<1x8xf32>
    %404 = arith.select %401, %403, %377 : vector<1x8xi1>, vector<1x8xf32>
    %405 = vector.extract_strided_slice %346 {offsets = [2, 0], sizes = [1, 128], strides = [1, 1]} : vector<8x128xf32> to vector<1x128xf32>
    %cst_99 = arith.constant dense<0.000000e+00> : vector<1x128xf32>
    %406 = tpu.matmul %396, %2, %cst_99 {dimension_numbers = #tpu.dot_dimension_numbers<[1], [0], [0], [1], [0, 0, 1, 1], [], []>} : vector<1x32xf32>, vector<32x128xf32>, vector<1x128xf32> -> vector<1x128xf32>
    %407 = arith.addf %405, %406 : vector<1x128xf32>
    %408 = vector.extract_strided_slice %407 {offsets = [0, 0], sizes = [1, 96], strides = [1, 1]} : vector<1x128xf32> to vector<1x96xf32>
    %409 = arith.negf %408 : vector<1x96xf32>
    %410 = math.exp %409 : vector<1x96xf32>
    %cst_100 = arith.constant 1.000000e+00 : f32
    %411 = vector.broadcast %cst_100 : f32 to vector<1x96xf32>
    %412 = arith.addf %411, %410 : vector<1x96xf32>
    %413 = arith.divf %411, %412 : vector<1x96xf32>
    %414 = vector.extract_strided_slice %407 {offsets = [0, 96], sizes = [1, 32], strides = [1, 1]} : vector<1x128xf32> to vector<1x32xf32>
    %415 = math.tanh %414 : vector<1x32xf32>
    %416 = vector.extract_strided_slice %413 {offsets = [0, 32], sizes = [1, 32], strides = [1, 1]} : vector<1x96xf32> to vector<1x32xf32>
    %417 = arith.mulf %416, %393 : vector<1x32xf32>
    %418 = vector.extract_strided_slice %413 {offsets = [0, 0], sizes = [1, 32], strides = [1, 1]} : vector<1x96xf32> to vector<1x32xf32>
    %419 = arith.mulf %418, %415 : vector<1x32xf32>
    %420 = arith.addf %417, %419 : vector<1x32xf32>
    %421 = vector.extract_strided_slice %413 {offsets = [0, 64], sizes = [1, 32], strides = [1, 1]} : vector<1x96xf32> to vector<1x32xf32>
    %422 = math.tanh %420 : vector<1x32xf32>
    %423 = arith.mulf %421, %422 : vector<1x32xf32>
    %424 = arith.mulf %423, %3 : vector<1x32xf32>
    %cst_101 = arith.constant dense<0.000000e+00> : vector<1xf32>
    %425 = vector.multi_reduction <add>, %424, %cst_101 [1] : vector<1x32xf32> to vector<1xf32>
    %426 = vector.shape_cast %425 : vector<1xf32> to vector<1x1xf32>
    %c2_i32 = arith.constant 2 : i32
    %427 = vector.broadcast %c2_i32 : i32 to vector<1x8xi32>
    %428 = arith.cmpi eq, %349, %427 : vector<1x8xi32>
    %429 = vector.shape_cast %426 : vector<1x1xf32> to vector<1x1xf32>
    %430 = vector.broadcast %429 : vector<1x1xf32> to vector<1x8xf32>
    %431 = arith.select %428, %430, %404 : vector<1x8xi1>, vector<1x8xf32>
    %432 = vector.extract_strided_slice %346 {offsets = [3, 0], sizes = [1, 128], strides = [1, 1]} : vector<8x128xf32> to vector<1x128xf32>
    %cst_102 = arith.constant dense<0.000000e+00> : vector<1x128xf32>
    %433 = tpu.matmul %423, %2, %cst_102 {dimension_numbers = #tpu.dot_dimension_numbers<[1], [0], [0], [1], [0, 0, 1, 1], [], []>} : vector<1x32xf32>, vector<32x128xf32>, vector<1x128xf32> -> vector<1x128xf32>
    %434 = arith.addf %432, %433 : vector<1x128xf32>
    %435 = vector.extract_strided_slice %434 {offsets = [0, 0], sizes = [1, 96], strides = [1, 1]} : vector<1x128xf32> to vector<1x96xf32>
    %436 = arith.negf %435 : vector<1x96xf32>
    %437 = math.exp %436 : vector<1x96xf32>
    %cst_103 = arith.constant 1.000000e+00 : f32
    %438 = vector.broadcast %cst_103 : f32 to vector<1x96xf32>
    %439 = arith.addf %438, %437 : vector<1x96xf32>
    %440 = arith.divf %438, %439 : vector<1x96xf32>
    %441 = vector.extract_strided_slice %434 {offsets = [0, 96], sizes = [1, 32], strides = [1, 1]} : vector<1x128xf32> to vector<1x32xf32>
    %442 = math.tanh %441 : vector<1x32xf32>
    %443 = vector.extract_strided_slice %440 {offsets = [0, 32], sizes = [1, 32], strides = [1, 1]} : vector<1x96xf32> to vector<1x32xf32>
    %444 = arith.mulf %443, %420 : vector<1x32xf32>
    %445 = vector.extract_strided_slice %440 {offsets = [0, 0], sizes = [1, 32], strides = [1, 1]} : vector<1x96xf32> to vector<1x32xf32>
    %446 = arith.mulf %445, %442 : vector<1x32xf32>
    %447 = arith.addf %444, %446 : vector<1x32xf32>
    %448 = vector.extract_strided_slice %440 {offsets = [0, 64], sizes = [1, 32], strides = [1, 1]} : vector<1x96xf32> to vector<1x32xf32>
    %449 = math.tanh %447 : vector<1x32xf32>
    %450 = arith.mulf %448, %449 : vector<1x32xf32>
    %451 = arith.mulf %450, %3 : vector<1x32xf32>
    %cst_104 = arith.constant dense<0.000000e+00> : vector<1xf32>
    %452 = vector.multi_reduction <add>, %451, %cst_104 [1] : vector<1x32xf32> to vector<1xf32>
    %453 = vector.shape_cast %452 : vector<1xf32> to vector<1x1xf32>
    %c3_i32 = arith.constant 3 : i32
    %454 = vector.broadcast %c3_i32 : i32 to vector<1x8xi32>
    %455 = arith.cmpi eq, %349, %454 : vector<1x8xi32>
    %456 = vector.shape_cast %453 : vector<1x1xf32> to vector<1x1xf32>
    %457 = vector.broadcast %456 : vector<1x1xf32> to vector<1x8xf32>
    %458 = arith.select %455, %457, %431 : vector<1x8xi1>, vector<1x8xf32>
    %459 = vector.extract_strided_slice %346 {offsets = [4, 0], sizes = [1, 128], strides = [1, 1]} : vector<8x128xf32> to vector<1x128xf32>
    %cst_105 = arith.constant dense<0.000000e+00> : vector<1x128xf32>
    %460 = tpu.matmul %450, %2, %cst_105 {dimension_numbers = #tpu.dot_dimension_numbers<[1], [0], [0], [1], [0, 0, 1, 1], [], []>} : vector<1x32xf32>, vector<32x128xf32>, vector<1x128xf32> -> vector<1x128xf32>
    %461 = arith.addf %459, %460 : vector<1x128xf32>
    %462 = vector.extract_strided_slice %461 {offsets = [0, 0], sizes = [1, 96], strides = [1, 1]} : vector<1x128xf32> to vector<1x96xf32>
    %463 = arith.negf %462 : vector<1x96xf32>
    %464 = math.exp %463 : vector<1x96xf32>
    %cst_106 = arith.constant 1.000000e+00 : f32
    %465 = vector.broadcast %cst_106 : f32 to vector<1x96xf32>
    %466 = arith.addf %465, %464 : vector<1x96xf32>
    %467 = arith.divf %465, %466 : vector<1x96xf32>
    %468 = vector.extract_strided_slice %461 {offsets = [0, 96], sizes = [1, 32], strides = [1, 1]} : vector<1x128xf32> to vector<1x32xf32>
    %469 = math.tanh %468 : vector<1x32xf32>
    %470 = vector.extract_strided_slice %467 {offsets = [0, 32], sizes = [1, 32], strides = [1, 1]} : vector<1x96xf32> to vector<1x32xf32>
    %471 = arith.mulf %470, %447 : vector<1x32xf32>
    %472 = vector.extract_strided_slice %467 {offsets = [0, 0], sizes = [1, 32], strides = [1, 1]} : vector<1x96xf32> to vector<1x32xf32>
    %473 = arith.mulf %472, %469 : vector<1x32xf32>
    %474 = arith.addf %471, %473 : vector<1x32xf32>
    %475 = vector.extract_strided_slice %467 {offsets = [0, 64], sizes = [1, 32], strides = [1, 1]} : vector<1x96xf32> to vector<1x32xf32>
    %476 = math.tanh %474 : vector<1x32xf32>
    %477 = arith.mulf %475, %476 : vector<1x32xf32>
    %478 = arith.mulf %477, %3 : vector<1x32xf32>
    %cst_107 = arith.constant dense<0.000000e+00> : vector<1xf32>
    %479 = vector.multi_reduction <add>, %478, %cst_107 [1] : vector<1x32xf32> to vector<1xf32>
    %480 = vector.shape_cast %479 : vector<1xf32> to vector<1x1xf32>
    %c4_i32 = arith.constant 4 : i32
    %481 = vector.broadcast %c4_i32 : i32 to vector<1x8xi32>
    %482 = arith.cmpi eq, %349, %481 : vector<1x8xi32>
    %483 = vector.shape_cast %480 : vector<1x1xf32> to vector<1x1xf32>
    %484 = vector.broadcast %483 : vector<1x1xf32> to vector<1x8xf32>
    %485 = arith.select %482, %484, %458 : vector<1x8xi1>, vector<1x8xf32>
    %486 = vector.extract_strided_slice %346 {offsets = [5, 0], sizes = [1, 128], strides = [1, 1]} : vector<8x128xf32> to vector<1x128xf32>
    %cst_108 = arith.constant dense<0.000000e+00> : vector<1x128xf32>
    %487 = tpu.matmul %477, %2, %cst_108 {dimension_numbers = #tpu.dot_dimension_numbers<[1], [0], [0], [1], [0, 0, 1, 1], [], []>} : vector<1x32xf32>, vector<32x128xf32>, vector<1x128xf32> -> vector<1x128xf32>
    %488 = arith.addf %486, %487 : vector<1x128xf32>
    %489 = vector.extract_strided_slice %488 {offsets = [0, 0], sizes = [1, 96], strides = [1, 1]} : vector<1x128xf32> to vector<1x96xf32>
    %490 = arith.negf %489 : vector<1x96xf32>
    %491 = math.exp %490 : vector<1x96xf32>
    %cst_109 = arith.constant 1.000000e+00 : f32
    %492 = vector.broadcast %cst_109 : f32 to vector<1x96xf32>
    %493 = arith.addf %492, %491 : vector<1x96xf32>
    %494 = arith.divf %492, %493 : vector<1x96xf32>
    %495 = vector.extract_strided_slice %488 {offsets = [0, 96], sizes = [1, 32], strides = [1, 1]} : vector<1x128xf32> to vector<1x32xf32>
    %496 = math.tanh %495 : vector<1x32xf32>
    %497 = vector.extract_strided_slice %494 {offsets = [0, 32], sizes = [1, 32], strides = [1, 1]} : vector<1x96xf32> to vector<1x32xf32>
    %498 = arith.mulf %497, %474 : vector<1x32xf32>
    %499 = vector.extract_strided_slice %494 {offsets = [0, 0], sizes = [1, 32], strides = [1, 1]} : vector<1x96xf32> to vector<1x32xf32>
    %500 = arith.mulf %499, %496 : vector<1x32xf32>
    %501 = arith.addf %498, %500 : vector<1x32xf32>
    %502 = vector.extract_strided_slice %494 {offsets = [0, 64], sizes = [1, 32], strides = [1, 1]} : vector<1x96xf32> to vector<1x32xf32>
    %503 = math.tanh %501 : vector<1x32xf32>
    %504 = arith.mulf %502, %503 : vector<1x32xf32>
    %505 = arith.mulf %504, %3 : vector<1x32xf32>
    %cst_110 = arith.constant dense<0.000000e+00> : vector<1xf32>
    %506 = vector.multi_reduction <add>, %505, %cst_110 [1] : vector<1x32xf32> to vector<1xf32>
    %507 = vector.shape_cast %506 : vector<1xf32> to vector<1x1xf32>
    %c5_i32 = arith.constant 5 : i32
    %508 = vector.broadcast %c5_i32 : i32 to vector<1x8xi32>
    %509 = arith.cmpi eq, %349, %508 : vector<1x8xi32>
    %510 = vector.shape_cast %507 : vector<1x1xf32> to vector<1x1xf32>
    %511 = vector.broadcast %510 : vector<1x1xf32> to vector<1x8xf32>
    %512 = arith.select %509, %511, %485 : vector<1x8xi1>, vector<1x8xf32>
    %513 = vector.extract_strided_slice %346 {offsets = [6, 0], sizes = [1, 128], strides = [1, 1]} : vector<8x128xf32> to vector<1x128xf32>
    %cst_111 = arith.constant dense<0.000000e+00> : vector<1x128xf32>
    %514 = tpu.matmul %504, %2, %cst_111 {dimension_numbers = #tpu.dot_dimension_numbers<[1], [0], [0], [1], [0, 0, 1, 1], [], []>} : vector<1x32xf32>, vector<32x128xf32>, vector<1x128xf32> -> vector<1x128xf32>
    %515 = arith.addf %513, %514 : vector<1x128xf32>
    %516 = vector.extract_strided_slice %515 {offsets = [0, 0], sizes = [1, 96], strides = [1, 1]} : vector<1x128xf32> to vector<1x96xf32>
    %517 = arith.negf %516 : vector<1x96xf32>
    %518 = math.exp %517 : vector<1x96xf32>
    %cst_112 = arith.constant 1.000000e+00 : f32
    %519 = vector.broadcast %cst_112 : f32 to vector<1x96xf32>
    %520 = arith.addf %519, %518 : vector<1x96xf32>
    %521 = arith.divf %519, %520 : vector<1x96xf32>
    %522 = vector.extract_strided_slice %515 {offsets = [0, 96], sizes = [1, 32], strides = [1, 1]} : vector<1x128xf32> to vector<1x32xf32>
    %523 = math.tanh %522 : vector<1x32xf32>
    %524 = vector.extract_strided_slice %521 {offsets = [0, 32], sizes = [1, 32], strides = [1, 1]} : vector<1x96xf32> to vector<1x32xf32>
    %525 = arith.mulf %524, %501 : vector<1x32xf32>
    %526 = vector.extract_strided_slice %521 {offsets = [0, 0], sizes = [1, 32], strides = [1, 1]} : vector<1x96xf32> to vector<1x32xf32>
    %527 = arith.mulf %526, %523 : vector<1x32xf32>
    %528 = arith.addf %525, %527 : vector<1x32xf32>
    %529 = vector.extract_strided_slice %521 {offsets = [0, 64], sizes = [1, 32], strides = [1, 1]} : vector<1x96xf32> to vector<1x32xf32>
    %530 = math.tanh %528 : vector<1x32xf32>
    %531 = arith.mulf %529, %530 : vector<1x32xf32>
    %532 = arith.mulf %531, %3 : vector<1x32xf32>
    %cst_113 = arith.constant dense<0.000000e+00> : vector<1xf32>
    %533 = vector.multi_reduction <add>, %532, %cst_113 [1] : vector<1x32xf32> to vector<1xf32>
    %534 = vector.shape_cast %533 : vector<1xf32> to vector<1x1xf32>
    %c6_i32 = arith.constant 6 : i32
    %535 = vector.broadcast %c6_i32 : i32 to vector<1x8xi32>
    %536 = arith.cmpi eq, %349, %535 : vector<1x8xi32>
    %537 = vector.shape_cast %534 : vector<1x1xf32> to vector<1x1xf32>
    %538 = vector.broadcast %537 : vector<1x1xf32> to vector<1x8xf32>
    %539 = arith.select %536, %538, %512 : vector<1x8xi1>, vector<1x8xf32>
    %540 = vector.extract_strided_slice %346 {offsets = [7, 0], sizes = [1, 128], strides = [1, 1]} : vector<8x128xf32> to vector<1x128xf32>
    %cst_114 = arith.constant dense<0.000000e+00> : vector<1x128xf32>
    %541 = tpu.matmul %531, %2, %cst_114 {dimension_numbers = #tpu.dot_dimension_numbers<[1], [0], [0], [1], [0, 0, 1, 1], [], []>} : vector<1x32xf32>, vector<32x128xf32>, vector<1x128xf32> -> vector<1x128xf32>
    %542 = arith.addf %540, %541 : vector<1x128xf32>
    %543 = vector.extract_strided_slice %542 {offsets = [0, 0], sizes = [1, 96], strides = [1, 1]} : vector<1x128xf32> to vector<1x96xf32>
    %544 = arith.negf %543 : vector<1x96xf32>
    %545 = math.exp %544 : vector<1x96xf32>
    %cst_115 = arith.constant 1.000000e+00 : f32
    %546 = vector.broadcast %cst_115 : f32 to vector<1x96xf32>
    %547 = arith.addf %546, %545 : vector<1x96xf32>
    %548 = arith.divf %546, %547 : vector<1x96xf32>
    %549 = vector.extract_strided_slice %542 {offsets = [0, 96], sizes = [1, 32], strides = [1, 1]} : vector<1x128xf32> to vector<1x32xf32>
    %550 = math.tanh %549 : vector<1x32xf32>
    %551 = vector.extract_strided_slice %548 {offsets = [0, 32], sizes = [1, 32], strides = [1, 1]} : vector<1x96xf32> to vector<1x32xf32>
    %552 = arith.mulf %551, %528 : vector<1x32xf32>
    %553 = vector.extract_strided_slice %548 {offsets = [0, 0], sizes = [1, 32], strides = [1, 1]} : vector<1x96xf32> to vector<1x32xf32>
    %554 = arith.mulf %553, %550 : vector<1x32xf32>
    %555 = arith.addf %552, %554 : vector<1x32xf32>
    %556 = vector.extract_strided_slice %548 {offsets = [0, 64], sizes = [1, 32], strides = [1, 1]} : vector<1x96xf32> to vector<1x32xf32>
    %557 = math.tanh %555 : vector<1x32xf32>
    %558 = arith.mulf %556, %557 : vector<1x32xf32>
    %559 = arith.mulf %558, %3 : vector<1x32xf32>
    %cst_116 = arith.constant dense<0.000000e+00> : vector<1xf32>
    %560 = vector.multi_reduction <add>, %559, %cst_116 [1] : vector<1x32xf32> to vector<1xf32>
    %561 = vector.shape_cast %560 : vector<1xf32> to vector<1x1xf32>
    %c7_i32 = arith.constant 7 : i32
    %562 = vector.broadcast %c7_i32 : i32 to vector<1x8xi32>
    %563 = arith.cmpi eq, %349, %562 : vector<1x8xi32>
    %564 = vector.shape_cast %561 : vector<1x1xf32> to vector<1x1xf32>
    %565 = vector.broadcast %564 : vector<1x1xf32> to vector<1x8xf32>
    %566 = arith.select %563, %565, %539 : vector<1x8xi1>, vector<1x8xf32>
    %567 = vector.broadcast %4 : f32 to vector<1x8xf32>
    %568 = arith.addf %566, %567 : vector<1x8xf32>
    %c0_117 = arith.constant 0 : index
    %c0_118 = arith.constant 0 : index
    %569 = vector.load %arg12[%c0_117, %c0_118] : memref<1x8xf32, #tpu.memory_space<vmem>>, vector<1x8xf32>
    tpu.vector_store %arg12[%c0_117, %c0_118], %568 {strides = array<i32>} : memref<1x8xf32, #tpu.memory_space<vmem>>, vector<1x8xf32>,
    return
  }
}

</mosaic_0001>

<llo_original>
// kernel: tpu_custom_call.1
$region0: #{tpu_custom_call.1}
  #allocation0 [shape = 'u32[]', space=smem, size = 0x4, offset = 0x4, fixed_abs, tag = 'smem constant byte address 0x4 - core index']
  #allocation1 [shape = 'u32[144,128]{1,0:T(1,128)}', space=vmem, size = 0x12000, scoped, tag = 'internal scratch']
  #allocation2 [shape = 'f32[8,32]{1,0:T(8,128)}', space=vmem, size = 0x1000, scoped, tag = 'scratch operand']
  #allocation3 [shape = 'f32[8,32]{1,0:T(8,128)}', space=vmem, size = 0x1000, scoped, tag = 'scratch operand']
  #allocation4 [shape = 'f32[1,1]{1,0:T(1,128)S(6)}', space=smem, size = 0x200, scoped, tag = 'scoped memory for tpu_custom_call.1']
  %s0 = inlined_call_operand.hbm [shape: f32[8,16], index: 0, kind: input, shape index: {}]
  %s1 = inlined_call_operand.hbm [shape: f32[16,128], index: 1, kind: input, shape index: {}]
  %s2 = inlined_call_operand.hbm [shape: f32[32,128], index: 2, kind: input, shape index: {}]
  %s3 = inlined_call_operand.vmem [shape: f32[1,128], index: 3, kind: input, shape index: {}]
  %s4 = inlined_call_operand.hbm [shape: f32[32,128], index: 4, kind: input, shape index: {}]
  %s5 = inlined_call_operand.hbm [shape: f32[32,128], index: 5, kind: input, shape index: {}]
  %s6 = inlined_call_operand.vmem [shape: f32[1,128], index: 6, kind: input, shape index: {}]
  %s7 = inlined_call_operand.hbm [shape: f32[32,128], index: 7, kind: input, shape index: {}]
  %s8 = inlined_call_operand.vmem [shape: f32[32,128], index: 8, kind: input, shape index: {}]
  %s9 = inlined_call_operand.vmem [shape: f32[1,128], index: 9, kind: input, shape index: {}]
  %s10 = inlined_call_operand.vmem [shape: f32[1,32], index: 10, kind: input, shape index: {}]
  %s11 = inlined_call_operand.<no memory space> [shape: f32[1,1], index: 11, kind: input, shape index: {}]
  %s12 = inlined_call_operand.hbm [shape: f32[1,8], index: 12, kind: output, shape index: {}]
  %s13 = sld [smem:[#allocation0]]
  $region82: #{tpu_custom_call.1} parent=0
    _
  %s15 = ssub.s32 1, %s13
  %s16 = scalar_select 0, %s15, %s13
  %17 = sst [smem:[#allocation4]] %s11
  $region1: #{tpu_custom_call.1} parent=0
    #allocation5 [shape = 'u8[4096]{0}', space=vmem, size = 0x1000, scoped, tag = 'input window, operand 0, single buffered']
    #allocation6 [shape = 's32[1]{0}', space=sflag, size = 0x4, scoped, tag = 'scoped memory for tpu_custom_call.1']
    #allocation7 [shape = 's32[1]{0}', space=sflag, size = 0x4, scoped, tag = 'scoped memory for tpu_custom_call.1']
    #allocation8 [shape = 'u8[8192]{0}', space=vmem, size = 0x2000, scoped, tag = 'input window, operand 1, single buffered']
    #allocation9 [shape = 's32[1]{0}', space=sflag, size = 0x4, scoped, tag = 'scoped memory for tpu_custom_call.1']
    #allocation10 [shape = 'u8[16384]{0}', space=vmem, size = 0x4000, scoped, tag = 'input window, operand 2, single buffered']
    #allocation11 [shape = 'u8[16384]{0}', space=vmem, size = 0x4000, scoped, tag = 'input window, operand 4, single buffered']
    #allocation12 [shape = 's32[1]{0}', space=sflag, size = 0x4, scoped, tag = 'scoped memory for tpu_custom_call.1']
    #allocation13 [shape = 'u8[16384]{0}', space=vmem, size = 0x4000, scoped, tag = 'input window, operand 5, single buffered']
    #allocation14 [shape = 'u8[16384]{0}', space=vmem, size = 0x4000, scoped, tag = 'input window, operand 7, single buffered']
    #allocation15 [shape = 's32[1]{0}', space=sflag, size = 0x4, scoped, tag = 'scoped memory for tpu_custom_call.1']
    #allocation16 [shape = 'u8[512]{0}', space=vmem, size = 0x400, scoped, tag = 'output window, operand 0, single buffered']
    %18 = vsyncpa [#allocation6], 0
    %19 = vsyncpa [#allocation9], 0
    %20 = vsyncpa [#allocation12], 0
    %21 = vsyncpa [#allocation15], 0
    %22 = vsyncpa [#allocation7], 0
    // Predicated region
    $region2: #{tpu_custom_call.1} parent=1 // pred_check
      _
    $region3: #{tpu_custom_call.1} parent=1 // pred_check_branch
      %24 = sbr.rel (0) target = $region5
    $region4: #{tpu_custom_call.1} parent=1 // pred_region
      %s26 = ssub.s32 128, 128
      %27 = vsyncadd [#allocation6], %s26
      %s29 = sshll.u32 [#allocation5], 4
      %s30 = int_to_ptr.vmem [resolvable:$true] %s29
      %32 = dma.hbm_to_vmem [thread:$0]  %s0, 128, %s30, [#allocation6]
    $region5: #{tpu_custom_call.1} parent=1 // pred_fallthru
      _
    // Predicated region
    $region6: #{tpu_custom_call.1} parent=1 // pred_check
      _
    $region7: #{tpu_custom_call.1} parent=1 // pred_check_branch
      %34 = sbr.rel (0) target = $region9
    $region8: #{tpu_custom_call.1} parent=1 // pred_region
      %s36 = ssub.s32 256, 256
      %37 = vsyncadd [#allocation9], %s36
      %s38 = sshll.u32 [#allocation8], 4
      %s39 = int_to_ptr.vmem [resolvable:$true] %s38
      %44 = dma.hbm_to_vmem [thread:$0]  %s1, 256, %s39, [#allocation9], 128, 128, 8
    $region9: #{tpu_custom_call.1} parent=1 // pred_fallthru
      _
    // Predicated region
    $region10: #{tpu_custom_call.1} parent=1 // pred_check
      _
    $region11: #{tpu_custom_call.1} parent=1 // pred_check_branch
      %46 = sbr.rel (0) target = $region13
    $region12: #{tpu_custom_call.1} parent=1 // pred_region
      %s48 = ssub.s32 512, 512
      %49 = vsyncadd [#allocation9], %s48
      %s50 = sshll.u32 [#allocation10], 4
      %s51 = int_to_ptr.vmem [resolvable:$true] %s50
      %56 = dma.hbm_to_vmem [thread:$0]  %s2, 512, %s51, [#allocation9], 128, 128, 8
    $region13: #{tpu_custom_call.1} parent=1 // pred_fallthru
      _
    // Predicated region
    $region14: #{tpu_custom_call.1} parent=1 // pred_check
      _
    $region15: #{tpu_custom_call.1} parent=1 // pred_check_branch
      %58 = sbr.rel (0) target = $region17
    $region16: #{tpu_custom_call.1} parent=1 // pred_region
      _
    $region17: #{tpu_custom_call.1} parent=1 // pred_fallthru
      _
    // Predicated region
    $region18: #{tpu_custom_call.1} parent=1 // pred_check
      _
    $region19: #{tpu_custom_call.1} parent=1 // pred_check_branch
      %60 = sbr.rel (0) target = $region21
    $region20: #{tpu_custom_call.1} parent=1 // pred_region
      %s62 = ssub.s32 512, 512
      %63 = vsyncadd [#allocation12], %s62
      %s64 = sshll.u32 [#allocation11], 4
      %s65 = int_to_ptr.vmem [resolvable:$true] %s64
      %70 = dma.hbm_to_vmem [thread:$0]  %s4, 512, %s65, [#allocation12], 128, 128, 8
    $region21: #{tpu_custom_call.1} parent=1 // pred_fallthru
      _
    // Predicated region
    $region22: #{tpu_custom_call.1} parent=1 // pred_check
      _
    $region23: #{tpu_custom_call.1} parent=1 // pred_check_branch
      %72 = sbr.rel (0) target = $region25
    $region24: #{tpu_custom_call.1} parent=1 // pred_region
      %s74 = ssub.s32 512, 512
      %75 = vsyncadd [#allocation12], %s74
      %s76 = sshll.u32 [#allocation13], 4
      %s77 = int_to_ptr.vmem [resolvable:$true] %s76
      %82 = dma.hbm_to_vmem [thread:$0]  %s5, 512, %s77, [#allocation12], 128, 128, 8
    $region25: #{tpu_custom_call.1} parent=1 // pred_fallthru
      _
    // Predicated region
    $region26: #{tpu_custom_call.1} parent=1 // pred_check
      _
    $region27: #{tpu_custom_call.1} parent=1 // pred_check_branch
      %84 = sbr.rel (0) target = $region29
    $region28: #{tpu_custom_call.1} parent=1 // pred_region
      _
    $region29: #{tpu_custom_call.1} parent=1 // pred_fallthru
      _
    // Predicated region
    $region30: #{tpu_custom_call.1} parent=1 // pred_check
      _
    $region31: #{tpu_custom_call.1} parent=1 // pred_check_branch
      %86 = sbr.rel (0) target = $region33
    $region32: #{tpu_custom_call.1} parent=1 // pred_region
      %s88 = ssub.s32 512, 512
      %89 = vsyncadd [#allocation15], %s88
      %s90 = sshll.u32 [#allocation14], 4
      %s91 = int_to_ptr.vmem [resolvable:$true] %s90
      %96 = dma.hbm_to_vmem [thread:$0]  %s7, 512, %s91, [#allocation15], 128, 128, 8
    $region33: #{tpu_custom_call.1} parent=1 // pred_fallthru
      _
    // Predicated region
    $region34: #{tpu_custom_call.1} parent=1 // pred_check
      _
    $region35: #{tpu_custom_call.1} parent=1 // pred_check_branch
      %98 = sbr.rel (0) target = $region37
    $region36: #{tpu_custom_call.1} parent=1 // pred_region
      _
    $region37: #{tpu_custom_call.1} parent=1 // pred_fallthru
      _
    // Predicated region
    $region38: #{tpu_custom_call.1} parent=1 // pred_check
      _
    $region39: #{tpu_custom_call.1} parent=1 // pred_check_branch
      %100 = sbr.rel (0) target = $region41
    $region40: #{tpu_custom_call.1} parent=1 // pred_region
      _
    $region41: #{tpu_custom_call.1} parent=1 // pred_fallthru
      _
    // Predicated region
    $region42: #{tpu_custom_call.1} parent=1 // pred_check
      _
    $region43: #{tpu_custom_call.1} parent=1 // pred_check_branch
      %102 = sbr.rel (0) target = $region45
    $region44: #{tpu_custom_call.1} parent=1 // pred_region
      _
    $region45: #{tpu_custom_call.1} parent=1 // pred_fallthru
      _
    // Predicated region
    $region46: #{tpu_custom_call.1} parent=1 // pred_check
      _
    $region47: #{tpu_custom_call.1} parent=1 // pred_check_branch
      %104 = sbr.rel (0) target = $region49
    $region48: #{tpu_custom_call.1} parent=1 // pred_region
      _
    $region49: #{tpu_custom_call.1} parent=1 // pred_fallthru
      _
    // Predicated region
    $region50: #{tpu_custom_call.1} parent=1 // pred_check
      _
    $region51: #{tpu_custom_call.1} parent=1 // pred_check_branch
      %106 = sbr.rel (0) target = $region53
    $region52: #{tpu_custom_call.1} parent=1 // pred_region
      %107 = dma.done [#allocation6], 128
    $region53: #{tpu_custom_call.1} parent=1 // pred_fallthru
      _
    // Predicated region
    $region54: #{tpu_custom_call.1} parent=1 // pred_check
      _
    $region55: #{tpu_custom_call.1} parent=1 // pred_check_branch
      %109 = sbr.rel (0) target = $region57
    $region56: #{tpu_custom_call.1} parent=1 // pred_region
      %110 = dma.done [#allocation9], 256
    $region57: #{tpu_custom_call.1} parent=1 // pred_fallthru
      _
    // Predicated region
    $region58: #{tpu_custom_call.1} parent=1 // pred_check
      _
    $region59: #{tpu_custom_call.1} parent=1 // pred_check_branch
      %112 = sbr.rel (0) target = $region61
    $region60: #{tpu_custom_call.1} parent=1 // pred_region
      %113 = dma.done [#allocation9], 512
    $region61: #{tpu_custom_call.1} parent=1 // pred_fallthru
      _
    // Predicated region
    $region62: #{tpu_custom_call.1} parent=1 // pred_check
      _
    $region63: #{tpu_custom_call.1} parent=1 // pred_check_branch
      %115 = sbr.rel (0) target = $region65
    $region64: #{tpu_custom_call.1} parent=1 // pred_region
      %116 = dma.done [#allocation12], 512
    $region65: #{tpu_custom_call.1} parent=1 // pred_fallthru
      _
    // Predicated region
    $region66: #{tpu_custom_call.1} parent=1 // pred_check
      _
    $region67: #{tpu_custom_call.1} parent=1 // pred_check_branch
      %118 = sbr.rel (0) target = $region69
    $region68: #{tpu_custom_call.1} parent=1 // pred_region
      %119 = dma.done [#allocation12], 512
    $region69: #{tpu_custom_call.1} parent=1 // pred_fallthru
      _
    // Predicated region
    $region70: #{tpu_custom_call.1} parent=1 // pred_check
      _
    $region71: #{tpu_custom_call.1} parent=1 // pred_check_branch
      %121 = sbr.rel (0) target = $region73
    $region72: #{tpu_custom_call.1} parent=1 // pred_region
      %122 = dma.done [#allocation15], 512
    $region73: #{tpu_custom_call.1} parent=1 // pred_fallthru
      _
    %v123 = vld [vmem:[#allocation10] sm:$0xff]
    %v124 = vld [vmem:[#allocation10 + $0x8] sm:$0xff]
    %v125 = vld [vmem:[#allocation10 + $0x10] sm:$0xff]
    %v126 = vld [vmem:[#allocation10 + $0x18] sm:$0xff]
    %v127 = vld [vmem:[#allocation13] sm:$0xff]
    %v128 = vld [vmem:[#allocation13 + $0x8] sm:$0xff]
    %v129 = vld [vmem:[#allocation13 + $0x10] sm:$0xff]
    %v130 = vld [vmem:[#allocation13 + $0x18] sm:$0xff]
    %v131 = vld [vmem:[%s8] sm:$0xff]
    %v132 = vld [vmem:[%s8 + $0x8] sm:$0xff]
    %v133 = vld [vmem:[%s8 + $0x10] sm:$0xff]
    %v134 = vld [vmem:[%s8 + $0x18] sm:$0xff]
    %v135 = vld [vmem:[%s10] sm:$0x1]
    %s136 = sld [smem:[#allocation4]]
    %v137 = vld [vmem:[#allocation5] sm:$0xff]
    %v138 = vld [vmem:[#allocation8] sm:$0xff]
    %v139 = vld [vmem:[#allocation8 + $0x8] sm:$0xff]
    %v140 = vld [vmem:[%s3] sm:$0x1]
    %v142 = vlaneseq
    %v143 = vshrl.u32 %v142, 7
    %v144 = vsub.s32 0, %v143
    %v145 = vrot.slane %v140, %v144
    %vm147 = vcmask 130048
    %v149 = vsel %vm147, %v137, 0
    %151 = vmatprep.subr.mxu0 0.0
    %152 = vmatpush1.msra.mxu0 %v138
    %153 = vmatprep.subr.mxu0 0.0
    %154 = vmatpush1.msra.mxu0 %v139
    %155 = vmatprep.subr.mxu0 0.0
    %156 = vmatpush1.msra.mxu0 0.0
    %157 = vmatprep.subr.mxu0 0.0
    %158 = vmatpush1.msra.mxu0 0.0
    %159 = vmatprep.subr.mxu0 0.0
    %160 = vmatpush1.msra.mxu0 0.0
    %161 = vmatprep.subr.mxu0 0.0
    %162 = vmatpush1.msra.mxu0 0.0
    %163 = vmatprep.subr.mxu0 0.0
    %164 = vmatpush1.msra.mxu0 0.0
    %165 = vmatprep.subr.mxu0 0.0
    %166 = vmatpush1.msra.mxu0 0.0
    %167 = vmatprep.subr.mxu0 0.0
    %168 = vmatpush1.msra.mxu0 0.0
    %169 = vmatprep.subr.mxu0 0.0
    %170 = vmatpush1.msra.mxu0 0.0
    %171 = vmatprep.subr.mxu0 0.0
    %172 = vmatpush1.msra.mxu0 0.0
    %173 = vmatprep.subr.mxu0 0.0
    %174 = vmatpush1.msra.mxu0 0.0
    %175 = vmatprep.subr.mxu0 0.0
    %176 = vmatpush1.msra.mxu0 0.0
    %177 = vmatprep.subr.mxu0 0.0
    %178 = vmatpush1.msra.mxu0 0.0
    %179 = vmatprep.subr.mxu0 0.0
    %180 = vmatpush1.msra.mxu0 0.0
    %181 = vmatprep.subr.mxu0 0.0
    %182 = vmatpush1.msra.mxu0 0.0
    %183 = vmatprep.subr.mxu0 0.0
    %184 = vmatpush1.msra.mxu0 0.0
    %185 = vmatprep.subr.mxu0 0.0
    %186 = vmatpush1.msra.mxu0 0.0
    %187 = vmatprep.subr.mxu0 0.0
    %188 = vmatpush1.msra.mxu0 0.0
    %189 = vmatprep.subr.mxu0 0.0
    %190 = vmatpush1.msra.mxu0 0.0
    %191 = vmatprep.subr.mxu0 0.0
    %192 = vmatpush1.msra.mxu0 0.0
    %193 = vmatprep.subr.mxu0 0.0
    %194 = vmatpush1.msra.mxu0 0.0
    %195 = vmatprep.subr.mxu0 0.0
    %196 = vmatpush1.msra.mxu0 0.0
    %197 = vmatprep.subr.mxu0 0.0
    %198 = vmatpush1.msra.mxu0 0.0
    %199 = vmatprep.subr.mxu0 0.0
    %200 = vmatpush1.msra.mxu0 0.0
    %201 = vmatprep.subr.mxu0 0.0
    %202 = vmatpush1.msra.mxu0 0.0
    %203 = vmatprep.subr.mxu0 0.0
    %204 = vmatpush1.msra.mxu0 0.0
    %205 = vmatprep.subr.mxu0 0.0
    %206 = vmatpush1.msra.mxu0 0.0
    %207 = vmatprep.subr.mxu0 0.0
    %208 = vmatpush1.msra.mxu0 0.0
    %209 = vmatprep.subr.mxu0 0.0
    %210 = vmatpush1.msra.mxu0 0.0
    %211 = vmatprep.subr.mxu0 0.0
    %212 = vmatpush1.msra.mxu0 0.0
    %213 = vmatprep.subr.mxu0 0.0
    %214 = vmatpush1.msra.mxu0 0.0
    %215 = vmatprep.mubr.f32.mxu0 0.0
    %216 = vmatmul.mubr.f32.gmra.mrb[0].mxu0 %v149
    %v217 = vpop.f32.mrb[0].mxu0
    %v218 = vadd.f32 %v145, %v217
    %v219 = vpop.f32.mrb[0].mxu0
    %220 = vdwg.mxu0
    %vm221 = vcmask 261120
    %v223 = vsel %vm221, 0.0, 0
    %225 = vmatprep.subr.mxu0 0.0
    %226 = vmatpush1.msra.mxu0 %v123
    %227 = vmatprep.subr.mxu0 0.0
    %228 = vmatpush1.msra.mxu0 %v124
    %229 = vmatprep.subr.mxu0 0.0
    %230 = vmatpush1.msra.mxu0 %v125
    %231 = vmatprep.subr.mxu0 0.0
    %232 = vmatpush1.msra.mxu0 %v126
    %233 = vmatprep.subr.mxu0 0.0
    %234 = vmatpush1.msra.mxu0 0.0
    %235 = vmatprep.subr.mxu0 0.0
    %236 = vmatpush1.msra.mxu0 0.0
    %237 = vmatprep.subr.mxu0 0.0
    %238 = vmatpush1.msra.mxu0 0.0
    %239 = vmatprep.subr.mxu0 0.0
    %240 = vmatpush1.msra.mxu0 0.0
    %241 = vmatprep.subr.mxu0 0.0
    %242 = vmatpush1.msra.mxu0 0.0
    %243 = vmatprep.subr.mxu0 0.0
    %244 = vmatpush1.msra.mxu0 0.0
    %245 = vmatprep.subr.mxu0 0.0
    %246 = vmatpush1.msra.mxu0 0.0
    %247 = vmatprep.subr.mxu0 0.0
    %248 = vmatpush1.msra.mxu0 0.0
    %249 = vmatprep.subr.mxu0 0.0
    %250 = vmatpush1.msra.mxu0 0.0
    %251 = vmatprep.subr.mxu0 0.0
    %252 = vmatpush1.msra.mxu0 0.0
    %253 = vmatprep.subr.mxu0 0.0
    %254 = vmatpush1.msra.mxu0 0.0
    %255 = vmatprep.subr.mxu0 0.0
    %256 = vmatpush1.msra.mxu0 0.0
    %257 = vmatprep.subr.mxu0 0.0
    %258 = vmatpush1.msra.mxu0 0.0
    %259 = vmatprep.subr.mxu0 0.0
    %260 = vmatpush1.msra.mxu0 0.0
    %261 = vmatprep.subr.mxu0 0.0
    %262 = vmatpush1.msra.mxu0 0.0
    %263 = vmatprep.subr.mxu0 0.0
    %264 = vmatpush1.msra.mxu0 0.0
    %265 = vmatprep.subr.mxu0 0.0
    %266 = vmatpush1.msra.mxu0 0.0
    %267 = vmatprep.subr.mxu0 0.0
    %268 = vmatpush1.msra.mxu0 0.0
    %269 = vmatprep.subr.mxu0 0.0
    %270 = vmatpush1.msra.mxu0 0.0
    %271 = vmatprep.subr.mxu0 0.0
    %272 = vmatpush1.msra.mxu0 0.0
    %273 = vmatprep.subr.mxu0 0.0
    %274 = vmatpush1.msra.mxu0 0.0
    %275 = vmatprep.subr.mxu0 0.0
    %276 = vmatpush1.msra.mxu0 0.0
    %277 = vmatprep.subr.mxu0 0.0
    %278 = vmatpush1.msra.mxu0 0.0
    %279 = vmatprep.subr.mxu0 0.0
    %280 = vmatpush1.msra.mxu0 0.0
    %281 = vmatprep.subr.mxu0 0.0
    %282 = vmatpush1.msra.mxu0 0.0
    %283 = vmatprep.subr.mxu0 0.0
    %284 = vmatpush1.msra.mxu0 0.0
    %285 = vmatprep.subr.mxu0 0.0
    %286 = vmatpush1.msra.mxu0 0.0
    %287 = vmatprep.subr.mxu0 0.0
    %288 = vmatpush1.msra.mxu0 0.0
    %289 = vmatprep.mubr.f32.mxu0 0.0
    %290 = vmatmul.mubr.f32.gmra.mrb[0].mxu0 %v223
    %v291 = vpop.f32.mrb[0].mxu0
    %v292 = vadd.f32 0.0, %v291
    %v293 = vpop.f32.mrb[0].mxu0
    %294 = vdwg.mxu0
    %v295 = vadd.f32 %v218, %v292
    %v296 = vxor.u32 %v295, 2147483648
    %v297 = vmul.f32 %v296, 1.442695
    %v298 = vpow.pop %v297
    %v299 = vadd.f32 %v298, 1.0
    %v300 = vrcp.pop %v299
    %v301 = vmul.f32 1.0, %v300
    %v302 = vtanh.pop %v295
    %v303 = vmul.f32 %v301, 0.0
    %305 = vrot.lane.b32.xlu0 %v302, 32
    %v306 = vpop.permute.xlu0 %305
    %v308 = vmul.f32 %v301, %v306
    %310 = vrot.lane.b32.xlu0 %v308, 32
    %v311 = vpop.permute.xlu0 %310
    %v313 = vadd.f32 %v303, %v311
    %v314 = vtanh.pop %v313
    %316 = vrot.lane.b32.xlu0 %v314, 32
    %v317 = vpop.permute.xlu0 %316
    %v319 = vmul.f32 %v301, %v317
    %321 = vrot.lane.b32.xlu0 %v319, 64
    %v322 = vpop.permute.xlu0 %321
    %vm324 = vcmask 253952
    %325 = vst.msk [vmem:[#allocation2] sm:$0x1] %vm324, %v322
    %v326 = vsel %vm221, %v322, 0
    %328 = vmatprep.subr.mxu0 0.0
    %329 = vmatpush1.msra.mxu0 %v123
    %330 = vmatprep.subr.mxu0 0.0
    %331 = vmatpush1.msra.mxu0 %v124
    %332 = vmatprep.subr.mxu0 0.0
    %333 = vmatpush1.msra.mxu0 %v125
    %334 = vmatprep.subr.mxu0 0.0
    %335 = vmatpush1.msra.mxu0 %v126
    %336 = vmatprep.subr.mxu0 0.0
    %337 = vmatpush1.msra.mxu0 0.0
    %338 = vmatprep.subr.mxu0 0.0
    %339 = vmatpush1.msra.mxu0 0.0
    %340 = vmatprep.subr.mxu0 0.0
    %341 = vmatpush1.msra.mxu0 0.0
    %342 = vmatprep.subr.mxu0 0.0
    %343 = vmatpush1.msra.mxu0 0.0
    %344 = vmatprep.subr.mxu0 0.0
    %345 = vmatpush1.msra.mxu0 0.0
    %346 = vmatprep.subr.mxu0 0.0
    %347 = vmatpush1.msra.mxu0 0.0
    %348 = vmatprep.subr.mxu0 0.0
    %349 = vmatpush1.msra.mxu0 0.0
    %350 = vmatprep.subr.mxu0 0.0
    %351 = vmatpush1.msra.mxu0 0.0
    %352 = vmatprep.subr.mxu0 0.0
    %353 = vmatpush1.msra.mxu0 0.0
    %354 = vmatprep.subr.mxu0 0.0
    %355 = vmatpush1.msra.mxu0 0.0
    %356 = vmatprep.subr.mxu0 0.0
    %357 = vmatpush1.msra.mxu0 0.0
    %358 = vmatprep.subr.mxu0 0.0
    %359 = vmatpush1.msra.mxu0 0.0
    %360 = vmatprep.subr.mxu0 0.0
    %361 = vmatpush1.msra.mxu0 0.0
    %362 = vmatprep.subr.mxu0 0.0
    %363 = vmatpush1.msra.mxu0 0.0
    %364 = vmatprep.subr.mxu0 0.0
    %365 = vmatpush1.msra.mxu0 0.0
    %366 = vmatprep.subr.mxu0 0.0
    %367 = vmatpush1.msra.mxu0 0.0
    %368 = vmatprep.subr.mxu0 0.0
    %369 = vmatpush1.msra.mxu0 0.0
    %370 = vmatprep.subr.mxu0 0.0
    %371 = vmatpush1.msra.mxu0 0.0
    %372 = vmatprep.subr.mxu0 0.0
    %373 = vmatpush1.msra.mxu0 0.0
    %374 = vmatprep.subr.mxu0 0.0
    %375 = vmatpush1.msra.mxu0 0.0
    %376 = vmatprep.subr.mxu0 0.0
    %377 = vmatpush1.msra.mxu0 0.0
    %378 = vmatprep.subr.mxu0 0.0
    %379 = vmatpush1.msra.mxu0 0.0
    %380 = vmatprep.subr.mxu0 0.0
    %381 = vmatpush1.msra.mxu0 0.0
    %382 = vmatprep.subr.mxu0 0.0
    %383 = vmatpush1.msra.mxu0 0.0
    %384 = vmatprep.subr.mxu0 0.0
    %385 = vmatpush1.msra.mxu0 0.0
    %386 = vmatprep.subr.mxu0 0.0
    %387 = vmatpush1.msra.mxu0 0.0
    %388 = vmatprep.subr.mxu0 0.0
    %389 = vmatpush1.msra.mxu0 0.0
    %390 = vmatprep.subr.mxu0 0.0
    %391 = vmatpush1.msra.mxu0 0.0
    %392 = vmatprep.mubr.f32.mxu0 0.0
    %393 = vmatmul.mubr.f32.gmra.mrb[0].mxu0 %v326
    %v394 = vpop.f32.mrb[0].mxu0
    %v395 = vadd.f32 0.0, %v394
    %v396 = vpop.f32.mrb[0].mxu0
    %397 = vdwg.mxu0
    %v399 = vrot.slane %v395, 7
    %v401 = vadd.f32 %v218, %v399
    %v402 = vxor.u32 %v401, 2147483648
    %v403 = vmul.f32 %v402, 1.442695
    %v404 = vpow.pop %v403
    %v405 = vadd.f32 %v404, 1.0
    %v406 = vrcp.pop %v405
    %v407 = vmul.f32 1.0, %v406
    %v408 = vtanh.pop %v401
    %v410 = vrot.slane %v313, 7
    %v412 = vmul.f32 %v407, %v410
    %414 = vrot.lane.b32.xlu0 %v408, 32
    %v415 = vpop.permute.xlu0 %414
    %v417 = vmul.f32 %v407, %v415
    %419 = vrot.lane.b32.xlu0 %v417, 32
    %v420 = vpop.permute.xlu0 %419
    %v422 = vadd.f32 %v412, %v420
    %v423 = vtanh.pop %v422
    %425 = vrot.lane.b32.xlu0 %v423, 32
    %v426 = vpop.permute.xlu0 %425
    %v428 = vmul.f32 %v407, %v426
    %430 = vrot.lane.b32.xlu0 %v428, 64
    %v431 = vpop.permute.xlu0 %430
    %vm433 = vcmask 254977
    %434 = vst.msk [vmem:[#allocation2] sm:$0x2] %vm433, %v431
    %v435 = vrot.slane %v428, 1
    %436 = vrot.lane.b32.xlu0 %v435, 64
    %v437 = vpop.permute.xlu0 %436
    %v438 = vsel %vm221, %v437, 0
    %440 = vmatprep.subr.mxu0 0.0
    %441 = vmatpush1.msra.mxu0 %v123
    %442 = vmatprep.subr.mxu0 0.0
    %443 = vmatpush1.msra.mxu0 %v124
    %444 = vmatprep.subr.mxu0 0.0
    %445 = vmatpush1.msra.mxu0 %v125
    %446 = vmatprep.subr.mxu0 0.0
    %447 = vmatpush1.msra.mxu0 %v126
    %448 = vmatprep.subr.mxu0 0.0
    %449 = vmatpush1.msra.mxu0 0.0
    %450 = vmatprep.subr.mxu0 0.0
    %451 = vmatpush1.msra.mxu0 0.0
    %452 = vmatprep.subr.mxu0 0.0
    %453 = vmatpush1.msra.mxu0 0.0
    %454 = vmatprep.subr.mxu0 0.0
    %455 = vmatpush1.msra.mxu0 0.0
    %456 = vmatprep.subr.mxu0 0.0
    %457 = vmatpush1.msra.mxu0 0.0
    %458 = vmatprep.subr.mxu0 0.0
    %459 = vmatpush1.msra.mxu0 0.0
    %460 = vmatprep.subr.mxu0 0.0
    %461 = vmatpush1.msra.mxu0 0.0
    %462 = vmatprep.subr.mxu0 0.0
    %463 = vmatpush1.msra.mxu0 0.0
    %464 = vmatprep.subr.mxu0 0.0
    %465 = vmatpush1.msra.mxu0 0.0
    %466 = vmatprep.subr.mxu0 0.0
    %467 = vmatpush1.msra.mxu0 0.0
    %468 = vmatprep.subr.mxu0 0.0
    %469 = vmatpush1.msra.mxu0 0.0
    %470 = vmatprep.subr.mxu0 0.0
    %471 = vmatpush1.msra.mxu0 0.0
    %472 = vmatprep.subr.mxu0 0.0
    %473 = vmatpush1.msra.mxu0 0.0
    %474 = vmatprep.subr.mxu0 0.0
    %475 = vmatpush1.msra.mxu0 0.0
    %476 = vmatprep.subr.mxu0 0.0
    %477 = vmatpush1.msra.mxu0 0.0
    %478 = vmatprep.subr.mxu0 0.0
    %479 = vmatpush1.msra.mxu0 0.0
    %480 = vmatprep.subr.mxu0 0.0
    %481 = vmatpush1.msra.mxu0 0.0
    %482 = vmatprep.subr.mxu0 0.0
    %483 = vmatpush1.msra.mxu0 0.0
    %484 = vmatprep.subr.mxu0 0.0
    %485 = vmatpush1.msra.mxu0 0.0
    %486 = vmatprep.subr.mxu0 0.0
    %487 = vmatpush1.msra.mxu0 0.0
    %488 = vmatprep.subr.mxu0 0.0
    %489 = vmatpush1.msra.mxu0 0.0
    %490 = vmatprep.subr.mxu0 0.0
    %491 = vmatpush1.msra.mxu0 0.0
    %492 = vmatprep.subr.mxu0 0.0
    %493 = vmatpush1.msra.mxu0 0.0
    %494 = vmatprep.subr.mxu0 0.0
    %495 = vmatpush1.msra.mxu0 0.0
    %496 = vmatprep.subr.mxu0 0.0
    %497 = vmatpush1.msra.mxu0 0.0
    %498 = vmatprep.subr.mxu0 0.0
    %499 = vmatpush1.msra.mxu0 0.0
    %500 = vmatprep.subr.mxu0 0.0
    %501 = vmatpush1.msra.mxu0 0.0
    %502 = vmatprep.subr.mxu0 0.0
    %503 = vmatpush1.msra.mxu0 0.0
    %504 = vmatprep.mubr.f32.mxu0 0.0
    %505 = vmatmul.mubr.f32.gmra.mrb[0].mxu0 %v438
    %v506 = vpop.f32.mrb[0].mxu0
    %v507 = vadd.f32 0.0, %v506
    %v508 = vpop.f32.mrb[0].mxu0
    %509 = vdwg.mxu0
    %v511 = vrot.slane %v507, 6
    %v513 = vadd.f32 %v218, %v511
    %v514 = vxor.u32 %v513, 2147483648
    %v515 = vmul.f32 %v514, 1.442695
    %v516 = vpow.pop %v515
    %v517 = vadd.f32 %v516, 1.0
    %v518 = vrcp.pop %v517
    %v519 = vmul.f32 1.0, %v518
    %v520 = vtanh.pop %v513
    %v522 = vrot.slane %v422, 7
    %v524 = vmul.f32 %v519, %v522
    %526 = vrot.lane.b32.xlu0 %v520, 32
    %v527 = vpop.permute.xlu0 %526
    %v529 = vmul.f32 %v519, %v527
    %531 = vrot.lane.b32.xlu0 %v529, 32
    %v532 = vpop.permute.xlu0 %531
    %v534 = vadd.f32 %v524, %v532
    %v535 = vtanh.pop %v534
    %537 = vrot.lane.b32.xlu0 %v535, 32
    %v538 = vpop.permute.xlu0 %537
    %v540 = vmul.f32 %v519, %v538
    %542 = vrot.lane.b32.xlu0 %v540, 64
    %v543 = vpop.permute.xlu0 %542
    %vm545 = vcmask 256002
    %546 = vst.msk [vmem:[#allocation2] sm:$0x4] %vm545, %v543
    %v547 = vrot.slane %v540, 2
    %548 = vrot.lane.b32.xlu0 %v547, 64
    %v549 = vpop.permute.xlu0 %548
    %v550 = vsel %vm221, %v549, 0
    %552 = vmatprep.subr.mxu0 0.0
    %553 = vmatpush1.msra.mxu0 %v123
    %554 = vmatprep.subr.mxu0 0.0
    %555 = vmatpush1.msra.mxu0 %v124
    %556 = vmatprep.subr.mxu0 0.0
    %557 = vmatpush1.msra.mxu0 %v125
    %558 = vmatprep.subr.mxu0 0.0
    %559 = vmatpush1.msra.mxu0 %v126
    %560 = vmatprep.subr.mxu0 0.0
    %561 = vmatpush1.msra.mxu0 0.0
    %562 = vmatprep.subr.mxu0 0.0
    %563 = vmatpush1.msra.mxu0 0.0
    %564 = vmatprep.subr.mxu0 0.0
    %565 = vmatpush1.msra.mxu0 0.0
    %566 = vmatprep.subr.mxu0 0.0
    %567 = vmatpush1.msra.mxu0 0.0
    %568 = vmatprep.subr.mxu0 0.0
    %569 = vmatpush1.msra.mxu0 0.0
    %570 = vmatprep.subr.mxu0 0.0
    %571 = vmatpush1.msra.mxu0 0.0
    %572 = vmatprep.subr.mxu0 0.0
    %573 = vmatpush1.msra.mxu0 0.0
    %574 = vmatprep.subr.mxu0 0.0
    %575 = vmatpush1.msra.mxu0 0.0
    %576 = vmatprep.subr.mxu0 0.0
    %577 = vmatpush1.msra.mxu0 0.0
    %578 = vmatprep.subr.mxu0 0.0
    %579 = vmatpush1.msra.mxu0 0.0
    %580 = vmatprep.subr.mxu0 0.0
    %581 = vmatpush1.msra.mxu0 0.0
    %582 = vmatprep.subr.mxu0 0.0
    %583 = vmatpush1.msra.mxu0 0.0
    %584 = vmatprep.subr.mxu0 0.0
    %585 = vmatpush1.msra.mxu0 0.0
    %586 = vmatprep.subr.mxu0 0.0
    %587 = vmatpush1.msra.mxu0 0.0
    %588 = vmatprep.subr.mxu0 0.0
    %589 = vmatpush1.msra.mxu0 0.0
    %590 = vmatprep.subr.mxu0 0.0
    %591 = vmatpush1.msra.mxu0 0.0
    %592 = vmatprep.subr.mxu0 0.0
    %593 = vmatpush1.msra.mxu0 0.0
    %594 = vmatprep.subr.mxu0 0.0
    %595 = vmatpush1.msra.mxu0 0.0
    %596 = vmatprep.subr.mxu0 0.0
    %597 = vmatpush1.msra.mxu0 0.0
    %598 = vmatprep.subr.mxu0 0.0
    %599 = vmatpush1.msra.mxu0 0.0
    %600 = vmatprep.subr.mxu0 0.0
    %601 = vmatpush1.msra.mxu0 0.0
    %602 = vmatprep.subr.mxu0 0.0
    %603 = vmatpush1.msra.mxu0 0.0
    %604 = vmatprep.subr.mxu0 0.0
    %605 = vmatpush1.msra.mxu0 0.0
    %606 = vmatprep.subr.mxu0 0.0
    %607 = vmatpush1.msra.mxu0 0.0
    %608 = vmatprep.subr.mxu0 0.0
    %609 = vmatpush1.msra.mxu0 0.0
    %610 = vmatprep.subr.mxu0 0.0
    %611 = vmatpush1.msra.mxu0 0.0
    %612 = vmatprep.subr.mxu0 0.0
    %613 = vmatpush1.msra.mxu0 0.0
    %614 = vmatprep.subr.mxu0 0.0
    %615 = vmatpush1.msra.mxu0 0.0
    %616 = vmatprep.mubr.f32.mxu0 0.0
    %617 = vmatmul.mubr.f32.gmra.mrb[0].mxu0 %v550
    %v618 = vpop.f32.mrb[0].mxu0
    %v619 = vadd.f32 0.0, %v618
    %v620 = vpop.f32.mrb[0].mxu0
    %621 = vdwg.mxu0
    %v623 = vrot.slane %v619, 5
    %v625 = vadd.f32 %v218, %v623
    %v626 = vxor.u32 %v625, 2147483648
    %v627 = vmul.f32 %v626, 1.442695
    %v628 = vpow.pop %v627
    %v629 = vadd.f32 %v628, 1.0
    %v630 = vrcp.pop %v629
    %v631 = vmul.f32 1.0, %v630
    %v632 = vtanh.pop %v625
    %v634 = vrot.slane %v534, 7
    %v636 = vmul.f32 %v631, %v634
    %638 = vrot.lane.b32.xlu0 %v632, 32
    %v639 = vpop.permute.xlu0 %638
    %v641 = vmul.f32 %v631, %v639
    %643 = vrot.lane.b32.xlu0 %v641, 32
    %v644 = vpop.permute.xlu0 %643
    %v646 = vadd.f32 %v636, %v644
    %v647 = vtanh.pop %v646
    %649 = vrot.lane.b32.xlu0 %v647, 32
    %v650 = vpop.permute.xlu0 %649
    %v652 = vmul.f32 %v631, %v650
    %654 = vrot.lane.b32.xlu0 %v652, 64
    %v655 = vpop.permute.xlu0 %654
    %vm657 = vcmask 257027
    %658 = vst.msk [vmem:[#allocation2] sm:$0x8] %vm657, %v655
    %v659 = vrot.slane %v652, 3
    %660 = vrot.lane.b32.xlu0 %v659, 64
    %v661 = vpop.permute.xlu0 %660
    %v662 = vsel %vm221, %v661, 0
    %664 = vmatprep.subr.mxu0 0.0
    %665 = vmatpush1.msra.mxu0 %v123
    %666 = vmatprep.subr.mxu0 0.0
    %667 = vmatpush1.msra.mxu0 %v124
    %668 = vmatprep.subr.mxu0 0.0
    %669 = vmatpush1.msra.mxu0 %v125
    %670 = vmatprep.subr.mxu0 0.0
    %671 = vmatpush1.msra.mxu0 %v126
    %672 = vmatprep.subr.mxu0 0.0
    %673 = vmatpush1.msra.mxu0 0.0
    %674 = vmatprep.subr.mxu0 0.0
    %675 = vmatpush1.msra.mxu0 0.0
    %676 = vmatprep.subr.mxu0 0.0
    %677 = vmatpush1.msra.mxu0 0.0
    %678 = vmatprep.subr.mxu0 0.0
    %679 = vmatpush1.msra.mxu0 0.0
    %680 = vmatprep.subr.mxu0 0.0
    %681 = vmatpush1.msra.mxu0 0.0
    %682 = vmatprep.subr.mxu0 0.0
    %683 = vmatpush1.msra.mxu0 0.0
    %684 = vmatprep.subr.mxu0 0.0
    %685 = vmatpush1.msra.mxu0 0.0
    %686 = vmatprep.subr.mxu0 0.0
    %687 = vmatpush1.msra.mxu0 0.0
    %688 = vmatprep.subr.mxu0 0.0
    %689 = vmatpush1.msra.mxu0 0.0
    %690 = vmatprep.subr.mxu0 0.0
    %691 = vmatpush1.msra.mxu0 0.0
    %692 = vmatprep.subr.mxu0 0.0
    %693 = vmatpush1.msra.mxu0 0.0
    %694 = vmatprep.subr.mxu0 0.0
    %695 = vmatpush1.msra.mxu0 0.0
    %696 = vmatprep.subr.mxu0 0.0
    %697 = vmatpush1.msra.mxu0 0.0
    %698 = vmatprep.subr.mxu0 0.0
    %699 = vmatpush1.msra.mxu0 0.0
    %700 = vmatprep.subr.mxu0 0.0
    %701 = vmatpush1.msra.mxu0 0.0
    %702 = vmatprep.subr.mxu0 0.0
    %703 = vmatpush1.msra.mxu0 0.0
    %704 = vmatprep.subr.mxu0 0.0
    %705 = vmatpush1.msra.mxu0 0.0
    %706 = vmatprep.subr.mxu0 0.0
    %707 = vmatpush1.msra.mxu0 0.0
    %708 = vmatprep.subr.mxu0 0.0
    %709 = vmatpush1.msra.mxu0 0.0
    %710 = vmatprep.subr.mxu0 0.0
    %711 = vmatpush1.msra.mxu0 0.0
    %712 = vmatprep.subr.mxu0 0.0
    %713 = vmatpush1.msra.mxu0 0.0
    %714 = vmatprep.subr.mxu0 0.0
    %715 = vmatpush1.msra.mxu0 0.0
    %716 = vmatprep.subr.mxu0 0.0
    %717 = vmatpush1.msra.mxu0 0.0
    %718 = vmatprep.subr.mxu0 0.0
    %719 = vmatpush1.msra.mxu0 0.0
    %720 = vmatprep.subr.mxu0 0.0
    %721 = vmatpush1.msra.mxu0 0.0
    %722 = vmatprep.subr.mxu0 0.0
    %723 = vmatpush1.msra.mxu0 0.0
    %724 = vmatprep.subr.mxu0 0.0
    %725 = vmatpush1.msra.mxu0 0.0
    %726 = vmatprep.subr.mxu0 0.0
    %727 = vmatpush1.msra.mxu0 0.0
    %728 = vmatprep.mubr.f32.mxu0 0.0
    %729 = vmatmul.mubr.f32.gmra.mrb[0].mxu0 %v662
    %v730 = vpop.f32.mrb[0].mxu0
    %v731 = vadd.f32 0.0, %v730
    %v732 = vpop.f32.mrb[0].mxu0
    %733 = vdwg.mxu0
    %v735 = vrot.slane %v731, 4
    %v737 = vadd.f32 %v218, %v735
    %v738 = vxor.u32 %v737, 2147483648
    %v739 = vmul.f32 %v738, 1.442695
    %v740 = vpow.pop %v739
    %v741 = vadd.f32 %v740, 1.0
    %v742 = vrcp.pop %v741
    %v743 = vmul.f32 1.0, %v742
    %v744 = vtanh.pop %v737
    %v746 = vrot.slane %v646, 7
    %v748 = vmul.f32 %v743, %v746
    %750 = vrot.lane.b32.xlu0 %v744, 32
    %v751 = vpop.permute.xlu0 %750
    %v753 = vmul.f32 %v743, %v751
    %755 = vrot.lane.b32.xlu0 %v753, 32
    %v756 = vpop.permute.xlu0 %755
    %v758 = vadd.f32 %v748, %v756
    %v759 = vtanh.pop %v758
    %761 = vrot.lane.b32.xlu0 %v759, 32
    %v762 = vpop.permute.xlu0 %761
    %v764 = vmul.f32 %v743, %v762
    %766 = vrot.lane.b32.xlu0 %v764, 64
    %v767 = vpop.permute.xlu0 %766
    %vm769 = vcmask 258052
    %770 = vst.msk [vmem:[#allocation2] sm:$0x10] %vm769, %v767
    %v771 = vrot.slane %v764, 4
    %772 = vrot.lane.b32.xlu0 %v771, 64
    %v773 = vpop.permute.xlu0 %772
    %v774 = vsel %vm221, %v773, 0
    %776 = vmatprep.subr.mxu0 0.0
    %777 = vmatpush1.msra.mxu0 %v123
    %778 = vmatprep.subr.mxu0 0.0
    %779 = vmatpush1.msra.mxu0 %v124
    %780 = vmatprep.subr.mxu0 0.0
    %781 = vmatpush1.msra.mxu0 %v125
    %782 = vmatprep.subr.mxu0 0.0
    %783 = vmatpush1.msra.mxu0 %v126
    %784 = vmatprep.subr.mxu0 0.0
    %785 = vmatpush1.msra.mxu0 0.0
    %786 = vmatprep.subr.mxu0 0.0
    %787 = vmatpush1.msra.mxu0 0.0
    %788 = vmatprep.subr.mxu0 0.0
    %789 = vmatpush1.msra.mxu0 0.0
    %790 = vmatprep.subr.mxu0 0.0
    %791 = vmatpush1.msra.mxu0 0.0
    %792 = vmatprep.subr.mxu0 0.0
    %793 = vmatpush1.msra.mxu0 0.0
    %794 = vmatprep.subr.mxu0 0.0
    %795 = vmatpush1.msra.mxu0 0.0
    %796 = vmatprep.subr.mxu0 0.0
    %797 = vmatpush1.msra.mxu0 0.0
    %798 = vmatprep.subr.mxu0 0.0
    %799 = vmatpush1.msra.mxu0 0.0
    %800 = vmatprep.subr.mxu0 0.0
    %801 = vmatpush1.msra.mxu0 0.0
    %802 = vmatprep.subr.mxu0 0.0
    %803 = vmatpush1.msra.mxu0 0.0
    %804 = vmatprep.subr.mxu0 0.0
    %805 = vmatpush1.msra.mxu0 0.0
    %806 = vmatprep.subr.mxu0 0.0
    %807 = vmatpush1.msra.mxu0 0.0
    %808 = vmatprep.subr.mxu0 0.0
    %809 = vmatpush1.msra.mxu0 0.0
    %810 = vmatprep.subr.mxu0 0.0
    %811 = vmatpush1.msra.mxu0 0.0
    %812 = vmatprep.subr.mxu0 0.0
    %813 = vmatpush1.msra.mxu0 0.0
    %814 = vmatprep.subr.mxu0 0.0
    %815 = vmatpush1.msra.mxu0 0.0
    %816 = vmatprep.subr.mxu0 0.0
    %817 = vmatpush1.msra.mxu0 0.0
    %818 = vmatprep.subr.mxu0 0.0
    %819 = vmatpush1.msra.mxu0 0.0
    %820 = vmatprep.subr.mxu0 0.0
    %821 = vmatpush1.msra.mxu0 0.0
    %822 = vmatprep.subr.mxu0 0.0
    %823 = vmatpush1.msra.mxu0 0.0
    %824 = vmatprep.subr.mxu0 0.0
    %825 = vmatpush1.msra.mxu0 0.0
    %826 = vmatprep.subr.mxu0 0.0
    %827 = vmatpush1.msra.mxu0 0.0
    %828 = vmatprep.subr.mxu0 0.0
    %829 = vmatpush1.msra.mxu0 0.0
    %830 = vmatprep.subr.mxu0 0.0
    %831 = vmatpush1.msra.mxu0 0.0
    %832 = vmatprep.subr.mxu0 0.0
    %833 = vmatpush1.msra.mxu0 0.0
    %834 = vmatprep.subr.mxu0 0.0
    %835 = vmatpush1.msra.mxu0 0.0
    %836 = vmatprep.subr.mxu0 0.0
    %837 = vmatpush1.msra.mxu0 0.0
    %838 = vmatprep.subr.mxu0 0.0
    %839 = vmatpush1.msra.mxu0 0.0
    %840 = vmatprep.mubr.f32.mxu0 0.0
    %841 = vmatmul.mubr.f32.gmra.mrb[0].mxu0 %v774
    %v842 = vpop.f32.mrb[0].mxu0
    %v843 = vadd.f32 0.0, %v842
    %v844 = vpop.f32.mrb[0].mxu0
    %845 = vdwg.mxu0
    %v847 = vrot.slane %v843, 3
    %v849 = vadd.f32 %v218, %v847
    %v850 = vxor.u32 %v849, 2147483648
    %v851 = vmul.f32 %v850, 1.442695
    %v852 = vpow.pop %v851
    %v853 = vadd.f32 %v852, 1.0
    %v854 = vrcp.pop %v853
    %v855 = vmul.f32 1.0, %v854
    %v856 = vtanh.pop %v849
    %v858 = vrot.slane %v758, 7
    %v860 = vmul.f32 %v855, %v858
    %862 = vrot.lane.b32.xlu0 %v856, 32
    %v863 = vpop.permute.xlu0 %862
    %v865 = vmul.f32 %v855, %v863
    %867 = vrot.lane.b32.xlu0 %v865, 32
    %v868 = vpop.permute.xlu0 %867
    %v870 = vadd.f32 %v860, %v868
    %v871 = vtanh.pop %v870
    %873 = vrot.lane.b32.xlu0 %v871, 32
    %v874 = vpop.permute.xlu0 %873
    %v876 = vmul.f32 %v855, %v874
    %878 = vrot.lane.b32.xlu0 %v876, 64
    %v879 = vpop.permute.xlu0 %878
    %vm881 = vcmask 259077
    %882 = vst.msk [vmem:[#allocation2] sm:$0x20] %vm881, %v879
    %v883 = vrot.slane %v876, 5
    %884 = vrot.lane.b32.xlu0 %v883, 64
    %v885 = vpop.permute.xlu0 %884
    %v886 = vsel %vm221, %v885, 0
    %888 = vmatprep.subr.mxu0 0.0
    %889 = vmatpush1.msra.mxu0 %v123
    %890 = vmatprep.subr.mxu0 0.0
    %891 = vmatpush1.msra.mxu0 %v124
    %892 = vmatprep.subr.mxu0 0.0
    %893 = vmatpush1.msra.mxu0 %v125
    %894 = vmatprep.subr.mxu0 0.0
    %895 = vmatpush1.msra.mxu0 %v126
    %896 = vmatprep.subr.mxu0 0.0
    %897 = vmatpush1.msra.mxu0 0.0
    %898 = vmatprep.subr.mxu0 0.0
    %899 = vmatpush1.msra.mxu0 0.0
    %900 = vmatprep.subr.mxu0 0.0
    %901 = vmatpush1.msra.mxu0 0.0
    %902 = vmatprep.subr.mxu0 0.0
    %903 = vmatpush1.msra.mxu0 0.0
    %904 = vmatprep.subr.mxu0 0.0
    %905 = vmatpush1.msra.mxu0 0.0
    %906 = vmatprep.subr.mxu0 0.0
    %907 = vmatpush1.msra.mxu0 0.0
    %908 = vmatprep.subr.mxu0 0.0
    %909 = vmatpush1.msra.mxu0 0.0
    %910 = vmatprep.subr.mxu0 0.0
    %911 = vmatpush1.msra.mxu0 0.0
    %912 = vmatprep.subr.mxu0 0.0
    %913 = vmatpush1.msra.mxu0 0.0
    %914 = vmatprep.subr.mxu0 0.0
    %915 = vmatpush1.msra.mxu0 0.0
    %916 = vmatprep.subr.mxu0 0.0
    %917 = vmatpush1.msra.mxu0 0.0
    %918 = vmatprep.subr.mxu0 0.0
    %919 = vmatpush1.msra.mxu0 0.0
    %920 = vmatprep.subr.mxu0 0.0
    %921 = vmatpush1.msra.mxu0 0.0
    %922 = vmatprep.subr.mxu0 0.0
    %923 = vmatpush1.msra.mxu0 0.0
    %924 = vmatprep.subr.mxu0 0.0
    %925 = vmatpush1.msra.mxu0 0.0
    %926 = vmatprep.subr.mxu0 0.0
    %927 = vmatpush1.msra.mxu0 0.0
    %928 = vmatprep.subr.mxu0 0.0
    %929 = vmatpush1.msra.mxu0 0.0
    %930 = vmatprep.subr.mxu0 0.0
    %931 = vmatpush1.msra.mxu0 0.0
    %932 = vmatprep.subr.mxu0 0.0
    %933 = vmatpush1.msra.mxu0 0.0
    %934 = vmatprep.subr.mxu0 0.0
    %935 = vmatpush1.msra.mxu0 0.0
    %936 = vmatprep.subr.mxu0 0.0
    %937 = vmatpush1.msra.mxu0 0.0
    %938 = vmatprep.subr.mxu0 0.0
    %939 = vmatpush1.msra.mxu0 0.0
    %940 = vmatprep.subr.mxu0 0.0
    %941 = vmatpush1.msra.mxu0 0.0
    %942 = vmatprep.subr.mxu0 0.0
    %943 = vmatpush1.msra.mxu0 0.0
    %944 = vmatprep.subr.mxu0 0.0
    %945 = vmatpush1.msra.mxu0 0.0
    %946 = vmatprep.subr.mxu0 0.0
    %947 = vmatpush1.msra.mxu0 0.0
    %948 = vmatprep.subr.mxu0 0.0
    %949 = vmatpush1.msra.mxu0 0.0
    %950 = vmatprep.subr.mxu0 0.0
    %951 = vmatpush1.msra.mxu0 0.0
    %952 = vmatprep.mubr.f32.mxu0 0.0
    %953 = vmatmul.mubr.f32.gmra.mrb[0].mxu0 %v886
    %v954 = vpop.f32.mrb[0].mxu0
    %v955 = vadd.f32 0.0, %v954
    %v956 = vpop.f32.mrb[0].mxu0
    %957 = vdwg.mxu0
    %v959 = vrot.slane %v955, 2
    %v961 = vadd.f32 %v218, %v959
    %v962 = vxor.u32 %v961, 2147483648
    %v963 = vmul.f32 %v962, 1.442695
    %v964 = vpow.pop %v963
    %v965 = vadd.f32 %v964, 1.0
    %v966 = vrcp.pop %v965
    %v967 = vmul.f32 1.0, %v966
    %v968 = vtanh.pop %v961
    %v970 = vrot.slane %v870, 7
    %v972 = vmul.f32 %v967, %v970
    %974 = vrot.lane.b32.xlu0 %v968, 32
    %v975 = vpop.permute.xlu0 %974
    %v977 = vmul.f32 %v967, %v975
    %979 = vrot.lane.b32.xlu0 %v977, 32
    %v980 = vpop.permute.xlu0 %979
    %v982 = vadd.f32 %v972, %v980
    %v983 = vtanh.pop %v982
    %985 = vrot.lane.b32.xlu0 %v983, 32
    %v986 = vpop.permute.xlu0 %985
    %v988 = vmul.f32 %v967, %v986
    %990 = vrot.lane.b32.xlu0 %v988, 64
    %v991 = vpop.permute.xlu0 %990
    %vm993 = vcmask 260102
    %994 = vst.msk [vmem:[#allocation2] sm:$0x40] %vm993, %v991
    %v995 = vrot.slane %v988, 6
    %996 = vrot.lane.b32.xlu0 %v995, 64
    %v997 = vpop.permute.xlu0 %996
    %v998 = vsel %vm221, %v997, 0
    %1000 = vmatprep.subr.mxu0 0.0
    %1001 = vmatpush1.msra.mxu0 %v123
    %1002 = vmatprep.subr.mxu0 0.0
    %1003 = vmatpush1.msra.mxu0 %v124
    %1004 = vmatprep.subr.mxu0 0.0
    %1005 = vmatpush1.msra.mxu0 %v125
    %1006 = vmatprep.subr.mxu0 0.0
    %1007 = vmatpush1.msra.mxu0 %v126
    %1008 = vmatprep.subr.mxu0 0.0
    %1009 = vmatpush1.msra.mxu0 0.0
    %1010 = vmatprep.subr.mxu0 0.0
    %1011 = vmatpush1.msra.mxu0 0.0
    %1012 = vmatprep.subr.mxu0 0.0
    %1013 = vmatpush1.msra.mxu0 0.0
    %1014 = vmatprep.subr.mxu0 0.0
    %1015 = vmatpush1.msra.mxu0 0.0
    %1016 = vmatprep.subr.mxu0 0.0
    %1017 = vmatpush1.msra.mxu0 0.0
    %1018 = vmatprep.subr.mxu0 0.0
    %1019 = vmatpush1.msra.mxu0 0.0
    %1020 = vmatprep.subr.mxu0 0.0
    %1021 = vmatpush1.msra.mxu0 0.0
    %1022 = vmatprep.subr.mxu0 0.0
    %1023 = vmatpush1.msra.mxu0 0.0
    %1024 = vmatprep.subr.mxu0 0.0
    %1025 = vmatpush1.msra.mxu0 0.0
    %1026 = vmatprep.subr.mxu0 0.0
    %1027 = vmatpush1.msra.mxu0 0.0
    %1028 = vmatprep.subr.mxu0 0.0
    %1029 = vmatpush1.msra.mxu0 0.0
    %1030 = vmatprep.subr.mxu0 0.0
    %1031 = vmatpush1.msra.mxu0 0.0
    %1032 = vmatprep.subr.mxu0 0.0
    %1033 = vmatpush1.msra.mxu0 0.0
    %1034 = vmatprep.subr.mxu0 0.0
    %1035 = vmatpush1.msra.mxu0 0.0
    %1036 = vmatprep.subr.mxu0 0.0
    %1037 = vmatpush1.msra.mxu0 0.0
    %1038 = vmatprep.subr.mxu0 0.0
    %1039 = vmatpush1.msra.mxu0 0.0
    %1040 = vmatprep.subr.mxu0 0.0
    %1041 = vmatpush1.msra.mxu0 0.0
    %1042 = vmatprep.subr.mxu0 0.0
    %1043 = vmatpush1.msra.mxu0 0.0
    %1044 = vmatprep.subr.mxu0 0.0
    %1045 = vmatpush1.msra.mxu0 0.0
    %1046 = vmatprep.subr.mxu0 0.0
    %1047 = vmatpush1.msra.mxu0 0.0
    %1048 = vmatprep.subr.mxu0 0.0
    %1049 = vmatpush1.msra.mxu0 0.0
    %1050 = vmatprep.subr.mxu0 0.0
    %1051 = vmatpush1.msra.mxu0 0.0
    %1052 = vmatprep.subr.mxu0 0.0
    %1053 = vmatpush1.msra.mxu0 0.0
    %1054 = vmatprep.subr.mxu0 0.0
    %1055 = vmatpush1.msra.mxu0 0.0
    %1056 = vmatprep.subr.mxu0 0.0
    %1057 = vmatpush1.msra.mxu0 0.0
    %1058 = vmatprep.subr.mxu0 0.0
    %1059 = vmatpush1.msra.mxu0 0.0
    %1060 = vmatprep.subr.mxu0 0.0
    %1061 = vmatpush1.msra.mxu0 0.0
    %1062 = vmatprep.subr.mxu0 0.0
    %1063 = vmatpush1.msra.mxu0 0.0
    %1064 = vmatprep.mubr.f32.mxu0 0.0
    %1065 = vmatmul.mubr.f32.gmra.mrb[0].mxu0 %v998
    %v1066 = vpop.f32.mrb[0].mxu0
    %v1067 = vadd.f32 0.0, %v1066
    %v1068 = vpop.f32.mrb[0].mxu0
    %1069 = vdwg.mxu0
    %v1071 = vrot.slane %v1067, 1
    %v1073 = vadd.f32 %v218, %v1071
    %v1074 = vxor.u32 %v1073, 2147483648
    %v1075 = vmul.f32 %v1074, 1.442695
    %v1076 = vpow.pop %v1075
    %v1077 = vadd.f32 %v1076, 1.0
    %v1078 = vrcp.pop %v1077
    %v1079 = vmul.f32 1.0, %v1078
    %v1080 = vtanh.pop %v1073
    %v1082 = vrot.slane %v982, 7
    %v1084 = vmul.f32 %v1079, %v1082
    %1086 = vrot.lane.b32.xlu0 %v1080, 32
    %v1087 = vpop.permute.xlu0 %1086
    %v1089 = vmul.f32 %v1079, %v1087
    %1091 = vrot.lane.b32.xlu0 %v1089, 32
    %v1092 = vpop.permute.xlu0 %1091
    %v1094 = vadd.f32 %v1084, %v1092
    %v1095 = vtanh.pop %v1094
    %1097 = vrot.lane.b32.xlu0 %v1095, 32
    %v1098 = vpop.permute.xlu0 %1097
    %v1100 = vmul.f32 %v1079, %v1098
    %1102 = vrot.lane.b32.xlu0 %v1100, 64
    %v1103 = vpop.permute.xlu0 %1102
    %vm1105 = vcmask 261127
    %1106 = vst.msk [vmem:[#allocation2] sm:$0x80] %vm1105, %v1103
    %v1107 = vld [vmem:[#allocation2] sm:$0xff]
    %v1108 = vld [vmem:[#allocation11] sm:$0xff]
    %v1109 = vld [vmem:[#allocation11 + $0x8] sm:$0xff]
    %v1110 = vld [vmem:[#allocation11 + $0x10] sm:$0xff]
    %v1111 = vld [vmem:[#allocation11 + $0x18] sm:$0xff]
    %v1112 = vld [vmem:[%s6] sm:$0x1]
    %v1114 = vlaneseq
    %v1115 = vshrl.u32 %v1114, 7
    %v1116 = vsub.s32 0, %v1115
    %v1117 = vrot.slane %v1112, %v1116
    %v1120 = vsel %vm221, %v1107, 0
    %1122 = vmatprep.subr.mxu0 0.0
    %1123 = vmatpush1.msra.mxu0 %v1108
    %1124 = vmatprep.subr.mxu0 0.0
    %1125 = vmatpush1.msra.mxu0 %v1109
    %1126 = vmatprep.subr.mxu0 0.0
    %1127 = vmatpush1.msra.mxu0 %v1110
    %1128 = vmatprep.subr.mxu0 0.0
    %1129 = vmatpush1.msra.mxu0 %v1111
    %1130 = vmatprep.subr.mxu0 0.0
    %1131 = vmatpush1.msra.mxu0 0.0
    %1132 = vmatprep.subr.mxu0 0.0
    %1133 = vmatpush1.msra.mxu0 0.0
    %1134 = vmatprep.subr.mxu0 0.0
    %1135 = vmatpush1.msra.mxu0 0.0
    %1136 = vmatprep.subr.mxu0 0.0
    %1137 = vmatpush1.msra.mxu0 0.0
    %1138 = vmatprep.subr.mxu0 0.0
    %1139 = vmatpush1.msra.mxu0 0.0
    %1140 = vmatprep.subr.mxu0 0.0
    %1141 = vmatpush1.msra.mxu0 0.0
    %1142 = vmatprep.subr.mxu0 0.0
    %1143 = vmatpush1.msra.mxu0 0.0
    %1144 = vmatprep.subr.mxu0 0.0
    %1145 = vmatpush1.msra.mxu0 0.0
    %1146 = vmatprep.subr.mxu0 0.0
    %1147 = vmatpush1.msra.mxu0 0.0
    %1148 = vmatprep.subr.mxu0 0.0
    %1149 = vmatpush1.msra.mxu0 0.0
    %1150 = vmatprep.subr.mxu0 0.0
    %1151 = vmatpush1.msra.mxu0 0.0
    %1152 = vmatprep.subr.mxu0 0.0
    %1153 = vmatpush1.msra.mxu0 0.0
    %1154 = vmatprep.subr.mxu0 0.0
    %1155 = vmatpush1.msra.mxu0 0.0
    %1156 = vmatprep.subr.mxu0 0.0
    %1157 = vmatpush1.msra.mxu0 0.0
    %1158 = vmatprep.subr.mxu0 0.0
    %1159 = vmatpush1.msra.mxu0 0.0
    %1160 = vmatprep.subr.mxu0 0.0
    %1161 = vmatpush1.msra.mxu0 0.0
    %1162 = vmatprep.subr.mxu0 0.0
    %1163 = vmatpush1.msra.mxu0 0.0
    %1164 = vmatprep.subr.mxu0 0.0
    %1165 = vmatpush1.msra.mxu0 0.0
    %1166 = vmatprep.subr.mxu0 0.0
    %1167 = vmatpush1.msra.mxu0 0.0
    %1168 = vmatprep.subr.mxu0 0.0
    %1169 = vmatpush1.msra.mxu0 0.0
    %1170 = vmatprep.subr.mxu0 0.0
    %1171 = vmatpush1.msra.mxu0 0.0
    %1172 = vmatprep.subr.mxu0 0.0
    %1173 = vmatpush1.msra.mxu0 0.0
    %1174 = vmatprep.subr.mxu0 0.0
    %1175 = vmatpush1.msra.mxu0 0.0
    %1176 = vmatprep.subr.mxu0 0.0
    %1177 = vmatpush1.msra.mxu0 0.0
    %1178 = vmatprep.subr.mxu0 0.0
    %1179 = vmatpush1.msra.mxu0 0.0
    %1180 = vmatprep.subr.mxu0 0.0
    %1181 = vmatpush1.msra.mxu0 0.0
    %1182 = vmatprep.subr.mxu0 0.0
    %1183 = vmatpush1.msra.mxu0 0.0
    %1184 = vmatprep.subr.mxu0 0.0
    %1185 = vmatpush1.msra.mxu0 0.0
    %1186 = vmatprep.mubr.f32.mxu0 0.0
    %1187 = vmatmul.mubr.f32.gmra.mrb[0].mxu0 %v1120
    %v1188 = vpop.f32.mrb[0].mxu0
    %v1189 = vadd.f32 %v1117, %v1188
    %v1190 = vpop.f32.mrb[0].mxu0
    %1191 = vdwg.mxu0
    %1192 = vmatprep.subr.mxu0 0.0
    %1193 = vmatpush1.msra.mxu0 %v127
    %1194 = vmatprep.subr.mxu0 0.0
    %1195 = vmatpush1.msra.mxu0 %v128
    %1196 = vmatprep.subr.mxu0 0.0
    %1197 = vmatpush1.msra.mxu0 %v129
    %1198 = vmatprep.subr.mxu0 0.0
    %1199 = vmatpush1.msra.mxu0 %v130
    %1200 = vmatprep.subr.mxu0 0.0
    %1201 = vmatpush1.msra.mxu0 0.0
    %1202 = vmatprep.subr.mxu0 0.0
    %1203 = vmatpush1.msra.mxu0 0.0
    %1204 = vmatprep.subr.mxu0 0.0
    %1205 = vmatpush1.msra.mxu0 0.0
    %1206 = vmatprep.subr.mxu0 0.0
    %1207 = vmatpush1.msra.mxu0 0.0
    %1208 = vmatprep.subr.mxu0 0.0
    %1209 = vmatpush1.msra.mxu0 0.0
    %1210 = vmatprep.subr.mxu0 0.0
    %1211 = vmatpush1.msra.mxu0 0.0
    %1212 = vmatprep.subr.mxu0 0.0
    %1213 = vmatpush1.msra.mxu0 0.0
    %1214 = vmatprep.subr.mxu0 0.0
    %1215 = vmatpush1.msra.mxu0 0.0
    %1216 = vmatprep.subr.mxu0 0.0
    %1217 = vmatpush1.msra.mxu0 0.0
    %1218 = vmatprep.subr.mxu0 0.0
    %1219 = vmatpush1.msra.mxu0 0.0
    %1220 = vmatprep.subr.mxu0 0.0
    %1221 = vmatpush1.msra.mxu0 0.0
    %1222 = vmatprep.subr.mxu0 0.0
    %1223 = vmatpush1.msra.mxu0 0.0
    %1224 = vmatprep.subr.mxu0 0.0
    %1225 = vmatpush1.msra.mxu0 0.0
    %1226 = vmatprep.subr.mxu0 0.0
    %1227 = vmatpush1.msra.mxu0 0.0
    %1228 = vmatprep.subr.mxu0 0.0
    %1229 = vmatpush1.msra.mxu0 0.0
    %1230 = vmatprep.subr.mxu0 0.0
    %1231 = vmatpush1.msra.mxu0 0.0
    %1232 = vmatprep.subr.mxu0 0.0
    %1233 = vmatpush1.msra.mxu0 0.0
    %1234 = vmatprep.subr.mxu0 0.0
    %1235 = vmatpush1.msra.mxu0 0.0
    %1236 = vmatprep.subr.mxu0 0.0
    %1237 = vmatpush1.msra.mxu0 0.0
    %1238 = vmatprep.subr.mxu0 0.0
    %1239 = vmatpush1.msra.mxu0 0.0
    %1240 = vmatprep.subr.mxu0 0.0
    %1241 = vmatpush1.msra.mxu0 0.0
    %1242 = vmatprep.subr.mxu0 0.0
    %1243 = vmatpush1.msra.mxu0 0.0
    %1244 = vmatprep.subr.mxu0 0.0
    %1245 = vmatpush1.msra.mxu0 0.0
    %1246 = vmatprep.subr.mxu0 0.0
    %1247 = vmatpush1.msra.mxu0 0.0
    %1248 = vmatprep.subr.mxu0 0.0
    %1249 = vmatpush1.msra.mxu0 0.0
    %1250 = vmatprep.subr.mxu0 0.0
    %1251 = vmatpush1.msra.mxu0 0.0
    %1252 = vmatprep.subr.mxu0 0.0
    %1253 = vmatpush1.msra.mxu0 0.0
    %1254 = vmatprep.subr.mxu0 0.0
    %1255 = vmatpush1.msra.mxu0 0.0
    %1256 = vmatprep.mubr.f32.mxu0 0.0
    %1257 = vmatmul.mubr.f32.gmra.mrb[0].mxu0 %v223
    %v1258 = vpop.f32.mrb[0].mxu0
    %v1259 = vadd.f32 0.0, %v1258
    %v1260 = vpop.f32.mrb[0].mxu0
    %1261 = vdwg.mxu0
    %v1262 = vadd.f32 %v1189, %v1259
    %v1263 = vxor.u32 %v1262, 2147483648
    %v1264 = vmul.f32 %v1263, 1.442695
    %v1265 = vpow.pop %v1264
    %v1266 = vadd.f32 %v1265, 1.0
    %v1267 = vrcp.pop %v1266
    %v1268 = vmul.f32 1.0, %v1267
    %v1269 = vtanh.pop %v1262
    %v1270 = vmul.f32 %v1268, 0.0
    %1272 = vrot.lane.b32.xlu0 %v1269, 32
    %v1273 = vpop.permute.xlu0 %1272
    %v1275 = vmul.f32 %v1268, %v1273
    %1277 = vrot.lane.b32.xlu0 %v1275, 32
    %v1278 = vpop.permute.xlu0 %1277
    %v1280 = vadd.f32 %v1270, %v1278
    %v1281 = vtanh.pop %v1280
    %1283 = vrot.lane.b32.xlu0 %v1281, 32
    %v1284 = vpop.permute.xlu0 %1283
    %v1286 = vmul.f32 %v1268, %v1284
    %1288 = vrot.lane.b32.xlu0 %v1286, 64
    %v1289 = vpop.permute.xlu0 %1288
    %1291 = vst.msk [vmem:[#allocation3] sm:$0x1] %vm324, %v1289
    %v1292 = vsel %vm221, %v1289, 0
    %1294 = vmatprep.subr.mxu0 0.0
    %1295 = vmatpush1.msra.mxu0 %v127
    %1296 = vmatprep.subr.mxu0 0.0
    %1297 = vmatpush1.msra.mxu0 %v128
    %1298 = vmatprep.subr.mxu0 0.0
    %1299 = vmatpush1.msra.mxu0 %v129
    %1300 = vmatprep.subr.mxu0 0.0
    %1301 = vmatpush1.msra.mxu0 %v130
    %1302 = vmatprep.subr.mxu0 0.0
    %1303 = vmatpush1.msra.mxu0 0.0
    %1304 = vmatprep.subr.mxu0 0.0
    %1305 = vmatpush1.msra.mxu0 0.0
    %1306 = vmatprep.subr.mxu0 0.0
    %1307 = vmatpush1.msra.mxu0 0.0
    %1308 = vmatprep.subr.mxu0 0.0
    %1309 = vmatpush1.msra.mxu0 0.0
    %1310 = vmatprep.subr.mxu0 0.0
    %1311 = vmatpush1.msra.mxu0 0.0
    %1312 = vmatprep.subr.mxu0 0.0
    %1313 = vmatpush1.msra.mxu0 0.0
    %1314 = vmatprep.subr.mxu0 0.0
    %1315 = vmatpush1.msra.mxu0 0.0
    %1316 = vmatprep.subr.mxu0 0.0
    %1317 = vmatpush1.msra.mxu0 0.0
    %1318 = vmatprep.subr.mxu0 0.0
    %1319 = vmatpush1.msra.mxu0 0.0
    %1320 = vmatprep.subr.mxu0 0.0
    %1321 = vmatpush1.msra.mxu0 0.0
    %1322 = vmatprep.subr.mxu0 0.0
    %1323 = vmatpush1.msra.mxu0 0.0
    %1324 = vmatprep.subr.mxu0 0.0
    %1325 = vmatpush1.msra.mxu0 0.0
    %1326 = vmatprep.subr.mxu0 0.0
    %1327 = vmatpush1.msra.mxu0 0.0
    %1328 = vmatprep.subr.mxu0 0.0
    %1329 = vmatpush1.msra.mxu0 0.0
    %1330 = vmatprep.subr.mxu0 0.0
    %1331 = vmatpush1.msra.mxu0 0.0
    %1332 = vmatprep.subr.mxu0 0.0
    %1333 = vmatpush1.msra.mxu0 0.0
    %1334 = vmatprep.subr.mxu0 0.0
    %1335 = vmatpush1.msra.mxu0 0.0
    %1336 = vmatprep.subr.mxu0 0.0
    %1337 = vmatpush1.msra.mxu0 0.0
    %1338 = vmatprep.subr.mxu0 0.0
    %1339 = vmatpush1.msra.mxu0 0.0
    %1340 = vmatprep.subr.mxu0 0.0
    %1341 = vmatpush1.msra.mxu0 0.0
    %1342 = vmatprep.subr.mxu0 0.0
    %1343 = vmatpush1.msra.mxu0 0.0
    %1344 = vmatprep.subr.mxu0 0.0
    %1345 = vmatpush1.msra.mxu0 0.0
    %1346 = vmatprep.subr.mxu0 0.0
    %1347 = vmatpush1.msra.mxu0 0.0
    %1348 = vmatprep.subr.mxu0 0.0
    %1349 = vmatpush1.msra.mxu0 0.0
    %1350 = vmatprep.subr.mxu0 0.0
    %1351 = vmatpush1.msra.mxu0 0.0
    %1352 = vmatprep.subr.mxu0 0.0
    %1353 = vmatpush1.msra.mxu0 0.0
    %1354 = vmatprep.subr.mxu0 0.0
    %1355 = vmatpush1.msra.mxu0 0.0
    %1356 = vmatprep.subr.mxu0 0.0
    %1357 = vmatpush1.msra.mxu0 0.0
    %1358 = vmatprep.mubr.f32.mxu0 0.0
    %1359 = vmatmul.mubr.f32.gmra.mrb[0].mxu0 %v1292
    %v1360 = vpop.f32.mrb[0].mxu0
    %v1361 = vadd.f32 0.0, %v1360
    %v1362 = vpop.f32.mrb[0].mxu0
    %1363 = vdwg.mxu0
    %v1365 = vrot.slane %v1361, 7
    %v1367 = vadd.f32 %v1189, %v1365
    %v1368 = vxor.u32 %v1367, 2147483648
    %v1369 = vmul.f32 %v1368, 1.442695
    %v1370 = vpow.pop %v1369
    %v1371 = vadd.f32 %v1370, 1.0
    %v1372 = vrcp.pop %v1371
    %v1373 = vmul.f32 1.0, %v1372
    %v1374 = vtanh.pop %v1367
    %v1376 = vrot.slane %v1280, 7
    %v1378 = vmul.f32 %v1373, %v1376
    %1380 = vrot.lane.b32.xlu0 %v1374, 32
    %v1381 = vpop.permute.xlu0 %1380
    %v1383 = vmul.f32 %v1373, %v1381
    %1385 = vrot.lane.b32.xlu0 %v1383, 32
    %v1386 = vpop.permute.xlu0 %1385
    %v1388 = vadd.f32 %v1378, %v1386
    %v1389 = vtanh.pop %v1388
    %1391 = vrot.lane.b32.xlu0 %v1389, 32
    %v1392 = vpop.permute.xlu0 %1391
    %v1394 = vmul.f32 %v1373, %v1392
    %1396 = vrot.lane.b32.xlu0 %v1394, 64
    %v1397 = vpop.permute.xlu0 %1396
    %1399 = vst.msk [vmem:[#allocation3] sm:$0x2] %vm433, %v1397
    %v1400 = vrot.slane %v1394, 1
    %1401 = vrot.lane.b32.xlu0 %v1400, 64
    %v1402 = vpop.permute.xlu0 %1401
    %v1403 = vsel %vm221, %v1402, 0
    %1405 = vmatprep.subr.mxu0 0.0
    %1406 = vmatpush1.msra.mxu0 %v127
    %1407 = vmatprep.subr.mxu0 0.0
    %1408 = vmatpush1.msra.mxu0 %v128
    %1409 = vmatprep.subr.mxu0 0.0
    %1410 = vmatpush1.msra.mxu0 %v129
    %1411 = vmatprep.subr.mxu0 0.0
    %1412 = vmatpush1.msra.mxu0 %v130
    %1413 = vmatprep.subr.mxu0 0.0
    %1414 = vmatpush1.msra.mxu0 0.0
    %1415 = vmatprep.subr.mxu0 0.0
    %1416 = vmatpush1.msra.mxu0 0.0
    %1417 = vmatprep.subr.mxu0 0.0
    %1418 = vmatpush1.msra.mxu0 0.0
    %1419 = vmatprep.subr.mxu0 0.0
    %1420 = vmatpush1.msra.mxu0 0.0
    %1421 = vmatprep.subr.mxu0 0.0
    %1422 = vmatpush1.msra.mxu0 0.0
    %1423 = vmatprep.subr.mxu0 0.0
    %1424 = vmatpush1.msra.mxu0 0.0
    %1425 = vmatprep.subr.mxu0 0.0
    %1426 = vmatpush1.msra.mxu0 0.0
    %1427 = vmatprep.subr.mxu0 0.0
    %1428 = vmatpush1.msra.mxu0 0.0
    %1429 = vmatprep.subr.mxu0 0.0
    %1430 = vmatpush1.msra.mxu0 0.0
    %1431 = vmatprep.subr.mxu0 0.0
    %1432 = vmatpush1.msra.mxu0 0.0
    %1433 = vmatprep.subr.mxu0 0.0
    %1434 = vmatpush1.msra.mxu0 0.0
    %1435 = vmatprep.subr.mxu0 0.0
    %1436 = vmatpush1.msra.mxu0 0.0
    %1437 = vmatprep.subr.mxu0 0.0
    %1438 = vmatpush1.msra.mxu0 0.0
    %1439 = vmatprep.subr.mxu0 0.0
    %1440 = vmatpush1.msra.mxu0 0.0
    %1441 = vmatprep.subr.mxu0 0.0
    %1442 = vmatpush1.msra.mxu0 0.0
    %1443 = vmatprep.subr.mxu0 0.0
    %1444 = vmatpush1.msra.mxu0 0.0
    %1445 = vmatprep.subr.mxu0 0.0
    %1446 = vmatpush1.msra.mxu0 0.0
    %1447 = vmatprep.subr.mxu0 0.0
    %1448 = vmatpush1.msra.mxu0 0.0
    %1449 = vmatprep.subr.mxu0 0.0
    %1450 = vmatpush1.msra.mxu0 0.0
    %1451 = vmatprep.subr.mxu0 0.0
    %1452 = vmatpush1.msra.mxu0 0.0
    %1453 = vmatprep.subr.mxu0 0.0
    %1454 = vmatpush1.msra.mxu0 0.0
    %1455 = vmatprep.subr.mxu0 0.0
    %1456 = vmatpush1.msra.mxu0 0.0
    %1457 = vmatprep.subr.mxu0 0.0
    %1458 = vmatpush1.msra.mxu0 0.0
    %1459 = vmatprep.subr.mxu0 0.0
    %1460 = vmatpush1.msra.mxu0 0.0
    %1461 = vmatprep.subr.mxu0 0.0
    %1462 = vmatpush1.msra.mxu0 0.0
    %1463 = vmatprep.subr.mxu0 0.0
    %1464 = vmatpush1.msra.mxu0 0.0
    %1465 = vmatprep.subr.mxu0 0.0
    %1466 = vmatpush1.msra.mxu0 0.0
    %1467 = vmatprep.subr.mxu0 0.0
    %1468 = vmatpush1.msra.mxu0 0.0
    %1469 = vmatprep.mubr.f32.mxu0 0.0
    %1470 = vmatmul.mubr.f32.gmra.mrb[0].mxu0 %v1403
    %v1471 = vpop.f32.mrb[0].mxu0
    %v1472 = vadd.f32 0.0, %v1471
    %v1473 = vpop.f32.mrb[0].mxu0
    %1474 = vdwg.mxu0
    %v1476 = vrot.slane %v1472, 6
    %v1478 = vadd.f32 %v1189, %v1476
    %v1479 = vxor.u32 %v1478, 2147483648
    %v1480 = vmul.f32 %v1479, 1.442695
    %v1481 = vpow.pop %v1480
    %v1482 = vadd.f32 %v1481, 1.0
    %v1483 = vrcp.pop %v1482
    %v1484 = vmul.f32 1.0, %v1483
    %v1485 = vtanh.pop %v1478
    %v1487 = vrot.slane %v1388, 7
    %v1489 = vmul.f32 %v1484, %v1487
    %1491 = vrot.lane.b32.xlu0 %v1485, 32
    %v1492 = vpop.permute.xlu0 %1491
    %v1494 = vmul.f32 %v1484, %v1492
    %1496 = vrot.lane.b32.xlu0 %v1494, 32
    %v1497 = vpop.permute.xlu0 %1496
    %v1499 = vadd.f32 %v1489, %v1497
    %v1500 = vtanh.pop %v1499
    %1502 = vrot.lane.b32.xlu0 %v1500, 32
    %v1503 = vpop.permute.xlu0 %1502
    %v1505 = vmul.f32 %v1484, %v1503
    %1507 = vrot.lane.b32.xlu0 %v1505, 64
    %v1508 = vpop.permute.xlu0 %1507
    %1510 = vst.msk [vmem:[#allocation3] sm:$0x4] %vm545, %v1508
    %v1511 = vrot.slane %v1505, 2
    %1512 = vrot.lane.b32.xlu0 %v1511, 64
    %v1513 = vpop.permute.xlu0 %1512
    %v1514 = vsel %vm221, %v1513, 0
    %1516 = vmatprep.subr.mxu0 0.0
    %1517 = vmatpush1.msra.mxu0 %v127
    %1518 = vmatprep.subr.mxu0 0.0
    %1519 = vmatpush1.msra.mxu0 %v128
    %1520 = vmatprep.subr.mxu0 0.0
    %1521 = vmatpush1.msra.mxu0 %v129
    %1522 = vmatprep.subr.mxu0 0.0
    %1523 = vmatpush1.msra.mxu0 %v130
    %1524 = vmatprep.subr.mxu0 0.0
    %1525 = vmatpush1.msra.mxu0 0.0
    %1526 = vmatprep.subr.mxu0 0.0
    %1527 = vmatpush1.msra.mxu0 0.0
    %1528 = vmatprep.subr.mxu0 0.0
    %1529 = vmatpush1.msra.mxu0 0.0
    %1530 = vmatprep.subr.mxu0 0.0
    %1531 = vmatpush1.msra.mxu0 0.0
    %1532 = vmatprep.subr.mxu0 0.0
    %1533 = vmatpush1.msra.mxu0 0.0
    %1534 = vmatprep.subr.mxu0 0.0
    %1535 = vmatpush1.msra.mxu0 0.0
    %1536 = vmatprep.subr.mxu0 0.0
    %1537 = vmatpush1.msra.mxu0 0.0
    %1538 = vmatprep.subr.mxu0 0.0
    %1539 = vmatpush1.msra.mxu0 0.0
    %1540 = vmatprep.subr.mxu0 0.0
    %1541 = vmatpush1.msra.mxu0 0.0
    %1542 = vmatprep.subr.mxu0 0.0
    %1543 = vmatpush1.msra.mxu0 0.0
    %1544 = vmatprep.subr.mxu0 0.0
    %1545 = vmatpush1.msra.mxu0 0.0
    %1546 = vmatprep.subr.mxu0 0.0
    %1547 = vmatpush1.msra.mxu0 0.0
    %1548 = vmatprep.subr.mxu0 0.0
    %1549 = vmatpush1.msra.mxu0 0.0
    %1550 = vmatprep.subr.mxu0 0.0
    %1551 = vmatpush1.msra.mxu0 0.0
    %1552 = vmatprep.subr.mxu0 0.0
    %1553 = vmatpush1.msra.mxu0 0.0
    %1554 = vmatprep.subr.mxu0 0.0
    %1555 = vmatpush1.msra.mxu0 0.0
    %1556 = vmatprep.subr.mxu0 0.0
    %1557 = vmatpush1.msra.mxu0 0.0
    %1558 = vmatprep.subr.mxu0 0.0
    %1559 = vmatpush1.msra.mxu0 0.0
    %1560 = vmatprep.subr.mxu0 0.0
    %1561 = vmatpush1.msra.mxu0 0.0
    %1562 = vmatprep.subr.mxu0 0.0
    %1563 = vmatpush1.msra.mxu0 0.0
    %1564 = vmatprep.subr.mxu0 0.0
    %1565 = vmatpush1.msra.mxu0 0.0
    %1566 = vmatprep.subr.mxu0 0.0
    %1567 = vmatpush1.msra.mxu0 0.0
    %1568 = vmatprep.subr.mxu0 0.0
    %1569 = vmatpush1.msra.mxu0 0.0
    %1570 = vmatprep.subr.mxu0 0.0
    %1571 = vmatpush1.msra.mxu0 0.0
    %1572 = vmatprep.subr.mxu0 0.0
    %1573 = vmatpush1.msra.mxu0 0.0
    %1574 = vmatprep.subr.mxu0 0.0
    %1575 = vmatpush1.msra.mxu0 0.0
    %1576 = vmatprep.subr.mxu0 0.0
    %1577 = vmatpush1.msra.mxu0 0.0
    %1578 = vmatprep.subr.mxu0 0.0
    %1579 = vmatpush1.msra.mxu0 0.0
    %1580 = vmatprep.mubr.f32.mxu0 0.0
    %1581 = vmatmul.mubr.f32.gmra.mrb[0].mxu0 %v1514
    %v1582 = vpop.f32.mrb[0].mxu0
    %v1583 = vadd.f32 0.0, %v1582
    %v1584 = vpop.f32.mrb[0].mxu0
    %1585 = vdwg.mxu0
    %v1587 = vrot.slane %v1583, 5
    %v1589 = vadd.f32 %v1189, %v1587
    %v1590 = vxor.u32 %v1589, 2147483648
    %v1591 = vmul.f32 %v1590, 1.442695
    %v1592 = vpow.pop %v1591
    %v1593 = vadd.f32 %v1592, 1.0
    %v1594 = vrcp.pop %v1593
    %v1595 = vmul.f32 1.0, %v1594
    %v1596 = vtanh.pop %v1589
    %v1598 = vrot.slane %v1499, 7
    %v1600 = vmul.f32 %v1595, %v1598
    %1602 = vrot.lane.b32.xlu0 %v1596, 32
    %v1603 = vpop.permute.xlu0 %1602
    %v1605 = vmul.f32 %v1595, %v1603
    %1607 = vrot.lane.b32.xlu0 %v1605, 32
    %v1608 = vpop.permute.xlu0 %1607
    %v1610 = vadd.f32 %v1600, %v1608
    %v1611 = vtanh.pop %v1610
    %1613 = vrot.lane.b32.xlu0 %v1611, 32
    %v1614 = vpop.permute.xlu0 %1613
    %v1616 = vmul.f32 %v1595, %v1614
    %1618 = vrot.lane.b32.xlu0 %v1616, 64
    %v1619 = vpop.permute.xlu0 %1618
    %1621 = vst.msk [vmem:[#allocation3] sm:$0x8] %vm657, %v1619
    %v1622 = vrot.slane %v1616, 3
    %1623 = vrot.lane.b32.xlu0 %v1622, 64
    %v1624 = vpop.permute.xlu0 %1623
    %v1625 = vsel %vm221, %v1624, 0
    %1627 = vmatprep.subr.mxu0 0.0
    %1628 = vmatpush1.msra.mxu0 %v127
    %1629 = vmatprep.subr.mxu0 0.0
    %1630 = vmatpush1.msra.mxu0 %v128
    %1631 = vmatprep.subr.mxu0 0.0
    %1632 = vmatpush1.msra.mxu0 %v129
    %1633 = vmatprep.subr.mxu0 0.0
    %1634 = vmatpush1.msra.mxu0 %v130
    %1635 = vmatprep.subr.mxu0 0.0
    %1636 = vmatpush1.msra.mxu0 0.0
    %1637 = vmatprep.subr.mxu0 0.0
    %1638 = vmatpush1.msra.mxu0 0.0
    %1639 = vmatprep.subr.mxu0 0.0
    %1640 = vmatpush1.msra.mxu0 0.0
    %1641 = vmatprep.subr.mxu0 0.0
    %1642 = vmatpush1.msra.mxu0 0.0
    %1643 = vmatprep.subr.mxu0 0.0
    %1644 = vmatpush1.msra.mxu0 0.0
    %1645 = vmatprep.subr.mxu0 0.0
    %1646 = vmatpush1.msra.mxu0 0.0
    %1647 = vmatprep.subr.mxu0 0.0
    %1648 = vmatpush1.msra.mxu0 0.0
    %1649 = vmatprep.subr.mxu0 0.0
    %1650 = vmatpush1.msra.mxu0 0.0
    %1651 = vmatprep.subr.mxu0 0.0
    %1652 = vmatpush1.msra.mxu0 0.0
    %1653 = vmatprep.subr.mxu0 0.0
    %1654 = vmatpush1.msra.mxu0 0.0
    %1655 = vmatprep.subr.mxu0 0.0
    %1656 = vmatpush1.msra.mxu0 0.0
    %1657 = vmatprep.subr.mxu0 0.0
    %1658 = vmatpush1.msra.mxu0 0.0
    %1659 = vmatprep.subr.mxu0 0.0
    %1660 = vmatpush1.msra.mxu0 0.0
    %1661 = vmatprep.subr.mxu0 0.0
    %1662 = vmatpush1.msra.mxu0 0.0
    %1663 = vmatprep.subr.mxu0 0.0
    %1664 = vmatpush1.msra.mxu0 0.0
    %1665 = vmatprep.subr.mxu0 0.0
    %1666 = vmatpush1.msra.mxu0 0.0
    %1667 = vmatprep.subr.mxu0 0.0
    %1668 = vmatpush1.msra.mxu0 0.0
    %1669 = vmatprep.subr.mxu0 0.0
    %1670 = vmatpush1.msra.mxu0 0.0
    %1671 = vmatprep.subr.mxu0 0.0
    %1672 = vmatpush1.msra.mxu0 0.0
    %1673 = vmatprep.subr.mxu0 0.0
    %1674 = vmatpush1.msra.mxu0 0.0
    %1675 = vmatprep.subr.mxu0 0.0
    %1676 = vmatpush1.msra.mxu0 0.0
    %1677 = vmatprep.subr.mxu0 0.0
    %1678 = vmatpush1.msra.mxu0 0.0
    %1679 = vmatprep.subr.mxu0 0.0
    %1680 = vmatpush1.msra.mxu0 0.0
    %1681 = vmatprep.subr.mxu0 0.0
    %1682 = vmatpush1.msra.mxu0 0.0
    %1683 = vmatprep.subr.mxu0 0.0
    %1684 = vmatpush1.msra.mxu0 0.0
    %1685 = vmatprep.subr.mxu0 0.0
    %1686 = vmatpush1.msra.mxu0 0.0
    %1687 = vmatprep.subr.mxu0 0.0
    %1688 = vmatpush1.msra.mxu0 0.0
    %1689 = vmatprep.subr.mxu0 0.0
    %1690 = vmatpush1.msra.mxu0 0.0
    %1691 = vmatprep.mubr.f32.mxu0 0.0
    %1692 = vmatmul.mubr.f32.gmra.mrb[0].mxu0 %v1625
    %v1693 = vpop.f32.mrb[0].mxu0
    %v1694 = vadd.f32 0.0, %v1693
    %v1695 = vpop.f32.mrb[0].mxu0
    %1696 = vdwg.mxu0
    %v1698 = vrot.slane %v1694, 4
    %v1700 = vadd.f32 %v1189, %v1698
    %v1701 = vxor.u32 %v1700, 2147483648
    %v1702 = vmul.f32 %v1701, 1.442695
    %v1703 = vpow.pop %v1702
    %v1704 = vadd.f32 %v1703, 1.0
    %v1705 = vrcp.pop %v1704
    %v1706 = vmul.f32 1.0, %v1705
    %v1707 = vtanh.pop %v1700
    %v1709 = vrot.slane %v1610, 7
    %v1711 = vmul.f32 %v1706, %v1709
    %1713 = vrot.lane.b32.xlu0 %v1707, 32
    %v1714 = vpop.permute.xlu0 %1713
    %v1716 = vmul.f32 %v1706, %v1714
    %1718 = vrot.lane.b32.xlu0 %v1716, 32
    %v1719 = vpop.permute.xlu0 %1718
    %v1721 = vadd.f32 %v1711, %v1719
    %v1722 = vtanh.pop %v1721
    %1724 = vrot.lane.b32.xlu0 %v1722, 32
    %v1725 = vpop.permute.xlu0 %1724
    %v1727 = vmul.f32 %v1706, %v1725
    %1729 = vrot.lane.b32.xlu0 %v1727, 64
    %v1730 = vpop.permute.xlu0 %1729
    %1732 = vst.msk [vmem:[#allocation3] sm:$0x10] %vm769, %v1730
    %v1733 = vrot.slane %v1727, 4
    %1734 = vrot.lane.b32.xlu0 %v1733, 64
    %v1735 = vpop.permute.xlu0 %1734
    %v1736 = vsel %vm221, %v1735, 0
    %1738 = vmatprep.subr.mxu0 0.0
    %1739 = vmatpush1.msra.mxu0 %v127
    %1740 = vmatprep.subr.mxu0 0.0
    %1741 = vmatpush1.msra.mxu0 %v128
    %1742 = vmatprep.subr.mxu0 0.0
    %1743 = vmatpush1.msra.mxu0 %v129
    %1744 = vmatprep.subr.mxu0 0.0
    %1745 = vmatpush1.msra.mxu0 %v130
    %1746 = vmatprep.subr.mxu0 0.0
    %1747 = vmatpush1.msra.mxu0 0.0
    %1748 = vmatprep.subr.mxu0 0.0
    %1749 = vmatpush1.msra.mxu0 0.0
    %1750 = vmatprep.subr.mxu0 0.0
    %1751 = vmatpush1.msra.mxu0 0.0
    %1752 = vmatprep.subr.mxu0 0.0
    %1753 = vmatpush1.msra.mxu0 0.0
    %1754 = vmatprep.subr.mxu0 0.0
    %1755 = vmatpush1.msra.mxu0 0.0
    %1756 = vmatprep.subr.mxu0 0.0
    %1757 = vmatpush1.msra.mxu0 0.0
    %1758 = vmatprep.subr.mxu0 0.0
    %1759 = vmatpush1.msra.mxu0 0.0
    %1760 = vmatprep.subr.mxu0 0.0
    %1761 = vmatpush1.msra.mxu0 0.0
    %1762 = vmatprep.subr.mxu0 0.0
    %1763 = vmatpush1.msra.mxu0 0.0
    %1764 = vmatprep.subr.mxu0 0.0
    %1765 = vmatpush1.msra.mxu0 0.0
    %1766 = vmatprep.subr.mxu0 0.0
    %1767 = vmatpush1.msra.mxu0 0.0
    %1768 = vmatprep.subr.mxu0 0.0
    %1769 = vmatpush1.msra.mxu0 0.0
    %1770 = vmatprep.subr.mxu0 0.0
    %1771 = vmatpush1.msra.mxu0 0.0
    %1772 = vmatprep.subr.mxu0 0.0
    %1773 = vmatpush1.msra.mxu0 0.0
    %1774 = vmatprep.subr.mxu0 0.0
    %1775 = vmatpush1.msra.mxu0 0.0
    %1776 = vmatprep.subr.mxu0 0.0
    %1777 = vmatpush1.msra.mxu0 0.0
    %1778 = vmatprep.subr.mxu0 0.0
    %1779 = vmatpush1.msra.mxu0 0.0
    %1780 = vmatprep.subr.mxu0 0.0
    %1781 = vmatpush1.msra.mxu0 0.0
    %1782 = vmatprep.subr.mxu0 0.0
    %1783 = vmatpush1.msra.mxu0 0.0
    %1784 = vmatprep.subr.mxu0 0.0
    %1785 = vmatpush1.msra.mxu0 0.0
    %1786 = vmatprep.subr.mxu0 0.0
    %1787 = vmatpush1.msra.mxu0 0.0
    %1788 = vmatprep.subr.mxu0 0.0
    %1789 = vmatpush1.msra.mxu0 0.0
    %1790 = vmatprep.subr.mxu0 0.0
    %1791 = vmatpush1.msra.mxu0 0.0
    %1792 = vmatprep.subr.mxu0 0.0
    %1793 = vmatpush1.msra.mxu0 0.0
    %1794 = vmatprep.subr.mxu0 0.0
    %1795 = vmatpush1.msra.mxu0 0.0
    %1796 = vmatprep.subr.mxu0 0.0
    %1797 = vmatpush1.msra.mxu0 0.0
    %1798 = vmatprep.subr.mxu0 0.0
    %1799 = vmatpush1.msra.mxu0 0.0
    %1800 = vmatprep.subr.mxu0 0.0
    %1801 = vmatpush1.msra.mxu0 0.0
    %1802 = vmatprep.mubr.f32.mxu0 0.0
    %1803 = vmatmul.mubr.f32.gmra.mrb[0].mxu0 %v1736
    %v1804 = vpop.f32.mrb[0].mxu0
    %v1805 = vadd.f32 0.0, %v1804
    %v1806 = vpop.f32.mrb[0].mxu0
    %1807 = vdwg.mxu0
    %v1809 = vrot.slane %v1805, 3
    %v1811 = vadd.f32 %v1189, %v1809
    %v1812 = vxor.u32 %v1811, 2147483648
    %v1813 = vmul.f32 %v1812, 1.442695
    %v1814 = vpow.pop %v1813
    %v1815 = vadd.f32 %v1814, 1.0
    %v1816 = vrcp.pop %v1815
    %v1817 = vmul.f32 1.0, %v1816
    %v1818 = vtanh.pop %v1811
    %v1820 = vrot.slane %v1721, 7
    %v1822 = vmul.f32 %v1817, %v1820
    %1824 = vrot.lane.b32.xlu0 %v1818, 32
    %v1825 = vpop.permute.xlu0 %1824
    %v1827 = vmul.f32 %v1817, %v1825
    %1829 = vrot.lane.b32.xlu0 %v1827, 32
    %v1830 = vpop.permute.xlu0 %1829
    %v1832 = vadd.f32 %v1822, %v1830
    %v1833 = vtanh.pop %v1832
    %1835 = vrot.lane.b32.xlu0 %v1833, 32
    %v1836 = vpop.permute.xlu0 %1835
    %v1838 = vmul.f32 %v1817, %v1836
    %1840 = vrot.lane.b32.xlu0 %v1838, 64
    %v1841 = vpop.permute.xlu0 %1840
    %1843 = vst.msk [vmem:[#allocation3] sm:$0x20] %vm881, %v1841
    %v1844 = vrot.slane %v1838, 5
    %1845 = vrot.lane.b32.xlu0 %v1844, 64
    %v1846 = vpop.permute.xlu0 %1845
    %v1847 = vsel %vm221, %v1846, 0
    %1849 = vmatprep.subr.mxu0 0.0
    %1850 = vmatpush1.msra.mxu0 %v127
    %1851 = vmatprep.subr.mxu0 0.0
    %1852 = vmatpush1.msra.mxu0 %v128
    %1853 = vmatprep.subr.mxu0 0.0
    %1854 = vmatpush1.msra.mxu0 %v129
    %1855 = vmatprep.subr.mxu0 0.0
    %1856 = vmatpush1.msra.mxu0 %v130
    %1857 = vmatprep.subr.mxu0 0.0
    %1858 = vmatpush1.msra.mxu0 0.0
    %1859 = vmatprep.subr.mxu0 0.0
    %1860 = vmatpush1.msra.mxu0 0.0
    %1861 = vmatprep.subr.mxu0 0.0
    %1862 = vmatpush1.msra.mxu0 0.0
    %1863 = vmatprep.subr.mxu0 0.0
    %1864 = vmatpush1.msra.mxu0 0.0
    %1865 = vmatprep.subr.mxu0 0.0
    %1866 = vmatpush1.msra.mxu0 0.0
    %1867 = vmatprep.subr.mxu0 0.0
    %1868 = vmatpush1.msra.mxu0 0.0
    %1869 = vmatprep.subr.mxu0 0.0
    %1870 = vmatpush1.msra.mxu0 0.0
    %1871 = vmatprep.subr.mxu0 0.0
    %1872 = vmatpush1.msra.mxu0 0.0
    %1873 = vmatprep.subr.mxu0 0.0
    %1874 = vmatpush1.msra.mxu0 0.0
    %1875 = vmatprep.subr.mxu0 0.0
    %1876 = vmatpush1.msra.mxu0 0.0
    %1877 = vmatprep.subr.mxu0 0.0
    %1878 = vmatpush1.msra.mxu0 0.0
    %1879 = vmatprep.subr.mxu0 0.0
    %1880 = vmatpush1.msra.mxu0 0.0
    %1881 = vmatprep.subr.mxu0 0.0
    %1882 = vmatpush1.msra.mxu0 0.0
    %1883 = vmatprep.subr.mxu0 0.0
    %1884 = vmatpush1.msra.mxu0 0.0
    %1885 = vmatprep.subr.mxu0 0.0
    %1886 = vmatpush1.msra.mxu0 0.0
    %1887 = vmatprep.subr.mxu0 0.0
    %1888 = vmatpush1.msra.mxu0 0.0
    %1889 = vmatprep.subr.mxu0 0.0
    %1890 = vmatpush1.msra.mxu0 0.0
    %1891 = vmatprep.subr.mxu0 0.0
    %1892 = vmatpush1.msra.mxu0 0.0
    %1893 = vmatprep.subr.mxu0 0.0
    %1894 = vmatpush1.msra.mxu0 0.0
    %1895 = vmatprep.subr.mxu0 0.0
    %1896 = vmatpush1.msra.mxu0 0.0
    %1897 = vmatprep.subr.mxu0 0.0
    %1898 = vmatpush1.msra.mxu0 0.0
    %1899 = vmatprep.subr.mxu0 0.0
    %1900 = vmatpush1.msra.mxu0 0.0
    %1901 = vmatprep.subr.mxu0 0.0
    %1902 = vmatpush1.msra.mxu0 0.0
    %1903 = vmatprep.subr.mxu0 0.0
    %1904 = vmatpush1.msra.mxu0 0.0
    %1905 = vmatprep.subr.mxu0 0.0
    %1906 = vmatpush1.msra.mxu0 0.0
    %1907 = vmatprep.subr.mxu0 0.0
    %1908 = vmatpush1.msra.mxu0 0.0
    %1909 = vmatprep.subr.mxu0 0.0
    %1910 = vmatpush1.msra.mxu0 0.0
    %1911 = vmatprep.subr.mxu0 0.0
    %1912 = vmatpush1.msra.mxu0 0.0
    %1913 = vmatprep.mubr.f32.mxu0 0.0
    %1914 = vmatmul.mubr.f32.gmra.mrb[0].mxu0 %v1847
    %v1915 = vpop.f32.mrb[0].mxu0
    %v1916 = vadd.f32 0.0, %v1915
    %v1917 = vpop.f32.mrb[0].mxu0
    %1918 = vdwg.mxu0
    %v1920 = vrot.slane %v1916, 2
    %v1922 = vadd.f32 %v1189, %v1920
    %v1923 = vxor.u32 %v1922, 2147483648
    %v1924 = vmul.f32 %v1923, 1.442695
    %v1925 = vpow.pop %v1924
    %v1926 = vadd.f32 %v1925, 1.0
    %v1927 = vrcp.pop %v1926
    %v1928 = vmul.f32 1.0, %v1927
    %v1929 = vtanh.pop %v1922
    %v1931 = vrot.slane %v1832, 7
    %v1933 = vmul.f32 %v1928, %v1931
    %1935 = vrot.lane.b32.xlu0 %v1929, 32
    %v1936 = vpop.permute.xlu0 %1935
    %v1938 = vmul.f32 %v1928, %v1936
    %1940 = vrot.lane.b32.xlu0 %v1938, 32
    %v1941 = vpop.permute.xlu0 %1940
    %v1943 = vadd.f32 %v1933, %v1941
    %v1944 = vtanh.pop %v1943
    %1946 = vrot.lane.b32.xlu0 %v1944, 32
    %v1947 = vpop.permute.xlu0 %1946
    %v1949 = vmul.f32 %v1928, %v1947
    %1951 = vrot.lane.b32.xlu0 %v1949, 64
    %v1952 = vpop.permute.xlu0 %1951
    %1954 = vst.msk [vmem:[#allocation3] sm:$0x40] %vm993, %v1952
    %v1955 = vrot.slane %v1949, 6
    %1956 = vrot.lane.b32.xlu0 %v1955, 64
    %v1957 = vpop.permute.xlu0 %1956
    %v1958 = vsel %vm221, %v1957, 0
    %1960 = vmatprep.subr.mxu0 0.0
    %1961 = vmatpush1.msra.mxu0 %v127
    %1962 = vmatprep.subr.mxu0 0.0
    %1963 = vmatpush1.msra.mxu0 %v128
    %1964 = vmatprep.subr.mxu0 0.0
    %1965 = vmatpush1.msra.mxu0 %v129
    %1966 = vmatprep.subr.mxu0 0.0
    %1967 = vmatpush1.msra.mxu0 %v130
    %1968 = vmatprep.subr.mxu0 0.0
    %1969 = vmatpush1.msra.mxu0 0.0
    %1970 = vmatprep.subr.mxu0 0.0
    %1971 = vmatpush1.msra.mxu0 0.0
    %1972 = vmatprep.subr.mxu0 0.0
    %1973 = vmatpush1.msra.mxu0 0.0
    %1974 = vmatprep.subr.mxu0 0.0
    %1975 = vmatpush1.msra.mxu0 0.0
    %1976 = vmatprep.subr.mxu0 0.0
    %1977 = vmatpush1.msra.mxu0 0.0
    %1978 = vmatprep.subr.mxu0 0.0
    %1979 = vmatpush1.msra.mxu0 0.0
    %1980 = vmatprep.subr.mxu0 0.0
    %1981 = vmatpush1.msra.mxu0 0.0
    %1982 = vmatprep.subr.mxu0 0.0
    %1983 = vmatpush1.msra.mxu0 0.0
    %1984 = vmatprep.subr.mxu0 0.0
    %1985 = vmatpush1.msra.mxu0 0.0
    %1986 = vmatprep.subr.mxu0 0.0
    %1987 = vmatpush1.msra.mxu0 0.0
    %1988 = vmatprep.subr.mxu0 0.0
    %1989 = vmatpush1.msra.mxu0 0.0
    %1990 = vmatprep.subr.mxu0 0.0
    %1991 = vmatpush1.msra.mxu0 0.0
    %1992 = vmatprep.subr.mxu0 0.0
    %1993 = vmatpush1.msra.mxu0 0.0
    %1994 = vmatprep.subr.mxu0 0.0
    %1995 = vmatpush1.msra.mxu0 0.0
    %1996 = vmatprep.subr.mxu0 0.0
    %1997 = vmatpush1.msra.mxu0 0.0
    %1998 = vmatprep.subr.mxu0 0.0
    %1999 = vmatpush1.msra.mxu0 0.0
    %2000 = vmatprep.subr.mxu0 0.0
    %2001 = vmatpush1.msra.mxu0 0.0
    %2002 = vmatprep.subr.mxu0 0.0
    %2003 = vmatpush1.msra.mxu0 0.0
    %2004 = vmatprep.subr.mxu0 0.0
    %2005 = vmatpush1.msra.mxu0 0.0
    %2006 = vmatprep.subr.mxu0 0.0
    %2007 = vmatpush1.msra.mxu0 0.0
    %2008 = vmatprep.subr.mxu0 0.0
    %2009 = vmatpush1.msra.mxu0 0.0
    %2010 = vmatprep.subr.mxu0 0.0
    %2011 = vmatpush1.msra.mxu0 0.0
    %2012 = vmatprep.subr.mxu0 0.0
    %2013 = vmatpush1.msra.mxu0 0.0
    %2014 = vmatprep.subr.mxu0 0.0
    %2015 = vmatpush1.msra.mxu0 0.0
    %2016 = vmatprep.subr.mxu0 0.0
    %2017 = vmatpush1.msra.mxu0 0.0
    %2018 = vmatprep.subr.mxu0 0.0
    %2019 = vmatpush1.msra.mxu0 0.0
    %2020 = vmatprep.subr.mxu0 0.0
    %2021 = vmatpush1.msra.mxu0 0.0
    %2022 = vmatprep.subr.mxu0 0.0
    %2023 = vmatpush1.msra.mxu0 0.0
    %2024 = vmatprep.mubr.f32.mxu0 0.0
    %2025 = vmatmul.mubr.f32.gmra.mrb[0].mxu0 %v1958
    %v2026 = vpop.f32.mrb[0].mxu0
    %v2027 = vadd.f32 0.0, %v2026
    %v2028 = vpop.f32.mrb[0].mxu0
    %2029 = vdwg.mxu0
    %v2031 = vrot.slane %v2027, 1
    %v2033 = vadd.f32 %v1189, %v2031
    %v2034 = vxor.u32 %v2033, 2147483648
    %v2035 = vmul.f32 %v2034, 1.442695
    %v2036 = vpow.pop %v2035
    %v2037 = vadd.f32 %v2036, 1.0
    %v2038 = vrcp.pop %v2037
    %v2039 = vmul.f32 1.0, %v2038
    %v2040 = vtanh.pop %v2033
    %v2042 = vrot.slane %v1943, 7
    %v2044 = vmul.f32 %v2039, %v2042
    %2046 = vrot.lane.b32.xlu0 %v2040, 32
    %v2047 = vpop.permute.xlu0 %2046
    %v2049 = vmul.f32 %v2039, %v2047
    %2051 = vrot.lane.b32.xlu0 %v2049, 32
    %v2052 = vpop.permute.xlu0 %2051
    %v2054 = vadd.f32 %v2044, %v2052
    %v2055 = vtanh.pop %v2054
    %2057 = vrot.lane.b32.xlu0 %v2055, 32
    %v2058 = vpop.permute.xlu0 %2057
    %v2060 = vmul.f32 %v2039, %v2058
    %2062 = vrot.lane.b32.xlu0 %v2060, 64
    %v2063 = vpop.permute.xlu0 %2062
    %2065 = vst.msk [vmem:[#allocation3] sm:$0x80] %vm1105, %v2063
    %v2066 = vld [vmem:[#allocation3] sm:$0xff]
    %v2067 = vld [vmem:[#allocation14] sm:$0xff]
    %v2068 = vld [vmem:[#allocation14 + $0x8] sm:$0xff]
    %v2069 = vld [vmem:[#allocation14 + $0x10] sm:$0xff]
    %v2070 = vld [vmem:[#allocation14 + $0x18] sm:$0xff]
    %v2071 = vld [vmem:[%s9] sm:$0x1]
    %v2073 = vlaneseq
    %v2074 = vshrl.u32 %v2073, 7
    %v2075 = vsub.s32 0, %v2074
    %v2076 = vrot.slane %v2071, %v2075
    %v2079 = vsel %vm221, %v2066, 0
    %2081 = vmatprep.subr.mxu0 0.0
    %2082 = vmatpush1.msra.mxu0 %v2067
    %2083 = vmatprep.subr.mxu0 0.0
    %2084 = vmatpush1.msra.mxu0 %v2068
    %2085 = vmatprep.subr.mxu0 0.0
    %2086 = vmatpush1.msra.mxu0 %v2069
    %2087 = vmatprep.subr.mxu0 0.0
    %2088 = vmatpush1.msra.mxu0 %v2070
    %2089 = vmatprep.subr.mxu0 0.0
    %2090 = vmatpush1.msra.mxu0 0.0
    %2091 = vmatprep.subr.mxu0 0.0
    %2092 = vmatpush1.msra.mxu0 0.0
    %2093 = vmatprep.subr.mxu0 0.0
    %2094 = vmatpush1.msra.mxu0 0.0
    %2095 = vmatprep.subr.mxu0 0.0
    %2096 = vmatpush1.msra.mxu0 0.0
    %2097 = vmatprep.subr.mxu0 0.0
    %2098 = vmatpush1.msra.mxu0 0.0
    %2099 = vmatprep.subr.mxu0 0.0
    %2100 = vmatpush1.msra.mxu0 0.0
    %2101 = vmatprep.subr.mxu0 0.0
    %2102 = vmatpush1.msra.mxu0 0.0
    %2103 = vmatprep.subr.mxu0 0.0
    %2104 = vmatpush1.msra.mxu0 0.0
    %2105 = vmatprep.subr.mxu0 0.0
    %2106 = vmatpush1.msra.mxu0 0.0
    %2107 = vmatprep.subr.mxu0 0.0
    %2108 = vmatpush1.msra.mxu0 0.0
    %2109 = vmatprep.subr.mxu0 0.0
    %2110 = vmatpush1.msra.mxu0 0.0
    %2111 = vmatprep.subr.mxu0 0.0
    %2112 = vmatpush1.msra.mxu0 0.0
    %2113 = vmatprep.subr.mxu0 0.0
    %2114 = vmatpush1.msra.mxu0 0.0
    %2115 = vmatprep.subr.mxu0 0.0
    %2116 = vmatpush1.msra.mxu0 0.0
    %2117 = vmatprep.subr.mxu0 0.0
    %2118 = vmatpush1.msra.mxu0 0.0
    %2119 = vmatprep.subr.mxu0 0.0
    %2120 = vmatpush1.msra.mxu0 0.0
    %2121 = vmatprep.subr.mxu0 0.0
    %2122 = vmatpush1.msra.mxu0 0.0
    %2123 = vmatprep.subr.mxu0 0.0
    %2124 = vmatpush1.msra.mxu0 0.0
    %2125 = vmatprep.subr.mxu0 0.0
    %2126 = vmatpush1.msra.mxu0 0.0
    %2127 = vmatprep.subr.mxu0 0.0
    %2128 = vmatpush1.msra.mxu0 0.0
    %2129 = vmatprep.subr.mxu0 0.0
    %2130 = vmatpush1.msra.mxu0 0.0
    %2131 = vmatprep.subr.mxu0 0.0
    %2132 = vmatpush1.msra.mxu0 0.0
    %2133 = vmatprep.subr.mxu0 0.0
    %2134 = vmatpush1.msra.mxu0 0.0
    %2135 = vmatprep.subr.mxu0 0.0
    %2136 = vmatpush1.msra.mxu0 0.0
    %2137 = vmatprep.subr.mxu0 0.0
    %2138 = vmatpush1.msra.mxu0 0.0
    %2139 = vmatprep.subr.mxu0 0.0
    %2140 = vmatpush1.msra.mxu0 0.0
    %2141 = vmatprep.subr.mxu0 0.0
    %2142 = vmatpush1.msra.mxu0 0.0
    %2143 = vmatprep.subr.mxu0 0.0
    %2144 = vmatpush1.msra.mxu0 0.0
    %2145 = vmatprep.mubr.f32.mxu0 0.0
    %2146 = vmatmul.mubr.f32.gmra.mrb[0].mxu0 %v2079
    %v2147 = vpop.f32.mrb[0].mxu0
    %v2148 = vadd.f32 %v2076, %v2147
    %v2149 = vpop.f32.mrb[0].mxu0
    %2150 = vdwg.mxu0
    %v2151 = vlaneseq
    %v2152 = vand.u32 %v2151, 127
    %2153 = vmatprep.subr.mxu0 0.0
    %2154 = vmatpush1.msra.mxu0 %v131
    %2155 = vmatprep.subr.mxu0 0.0
    %2156 = vmatpush1.msra.mxu0 %v132
    %2157 = vmatprep.subr.mxu0 0.0
    %2158 = vmatpush1.msra.mxu0 %v133
    %2159 = vmatprep.subr.mxu0 0.0
    %2160 = vmatpush1.msra.mxu0 %v134
    %2161 = vmatprep.subr.mxu0 0.0
    %2162 = vmatpush1.msra.mxu0 0.0
    %2163 = vmatprep.subr.mxu0 0.0
    %2164 = vmatpush1.msra.mxu0 0.0
    %2165 = vmatprep.subr.mxu0 0.0
    %2166 = vmatpush1.msra.mxu0 0.0
    %2167 = vmatprep.subr.mxu0 0.0
    %2168 = vmatpush1.msra.mxu0 0.0
    %2169 = vmatprep.subr.mxu0 0.0
    %2170 = vmatpush1.msra.mxu0 0.0
    %2171 = vmatprep.subr.mxu0 0.0
    %2172 = vmatpush1.msra.mxu0 0.0
    %2173 = vmatprep.subr.mxu0 0.0
    %2174 = vmatpush1.msra.mxu0 0.0
    %2175 = vmatprep.subr.mxu0 0.0
    %2176 = vmatpush1.msra.mxu0 0.0
    %2177 = vmatprep.subr.mxu0 0.0
    %2178 = vmatpush1.msra.mxu0 0.0
    %2179 = vmatprep.subr.mxu0 0.0
    %2180 = vmatpush1.msra.mxu0 0.0
    %2181 = vmatprep.subr.mxu0 0.0
    %2182 = vmatpush1.msra.mxu0 0.0
    %2183 = vmatprep.subr.mxu0 0.0
    %2184 = vmatpush1.msra.mxu0 0.0
    %2185 = vmatprep.subr.mxu0 0.0
    %2186 = vmatpush1.msra.mxu0 0.0
    %2187 = vmatprep.subr.mxu0 0.0
    %2188 = vmatpush1.msra.mxu0 0.0
    %2189 = vmatprep.subr.mxu0 0.0
    %2190 = vmatpush1.msra.mxu0 0.0
    %2191 = vmatprep.subr.mxu0 0.0
    %2192 = vmatpush1.msra.mxu0 0.0
    %2193 = vmatprep.subr.mxu0 0.0
    %2194 = vmatpush1.msra.mxu0 0.0
    %2195 = vmatprep.subr.mxu0 0.0
    %2196 = vmatpush1.msra.mxu0 0.0
    %2197 = vmatprep.subr.mxu0 0.0
    %2198 = vmatpush1.msra.mxu0 0.0
    %2199 = vmatprep.subr.mxu0 0.0
    %2200 = vmatpush1.msra.mxu0 0.0
    %2201 = vmatprep.subr.mxu0 0.0
    %2202 = vmatpush1.msra.mxu0 0.0
    %2203 = vmatprep.subr.mxu0 0.0
    %2204 = vmatpush1.msra.mxu0 0.0
    %2205 = vmatprep.subr.mxu0 0.0
    %2206 = vmatpush1.msra.mxu0 0.0
    %2207 = vmatprep.subr.mxu0 0.0
    %2208 = vmatpush1.msra.mxu0 0.0
    %2209 = vmatprep.subr.mxu0 0.0
    %2210 = vmatpush1.msra.mxu0 0.0
    %2211 = vmatprep.subr.mxu0 0.0
    %2212 = vmatpush1.msra.mxu0 0.0
    %2213 = vmatprep.subr.mxu0 0.0
    %2214 = vmatpush1.msra.mxu0 0.0
    %2215 = vmatprep.subr.mxu0 0.0
    %2216 = vmatpush1.msra.mxu0 0.0
    %2217 = vmatprep.mubr.f32.mxu0 0.0
    %2218 = vmatmul.mubr.f32.gmra.mrb[0].mxu0 %v223
    %v2219 = vpop.f32.mrb[0].mxu0
    %v2220 = vadd.f32 0.0, %v2219
    %v2221 = vpop.f32.mrb[0].mxu0
    %2222 = vdwg.mxu0
    %v2223 = vadd.f32 %v2148, %v2220
    %v2224 = vxor.u32 %v2223, 2147483648
    %v2225 = vmul.f32 %v2224, 1.442695
    %v2226 = vpow.pop %v2225
    %v2227 = vadd.f32 %v2226, 1.0
    %v2228 = vrcp.pop %v2227
    %v2229 = vmul.f32 1.0, %v2228
    %v2230 = vtanh.pop %v2223
    %v2231 = vmul.f32 %v2229, 0.0
    %2233 = vrot.lane.b32.xlu0 %v2230, 32
    %v2234 = vpop.permute.xlu0 %2233
    %v2236 = vmul.f32 %v2229, %v2234
    %2238 = vrot.lane.b32.xlu0 %v2236, 32
    %v2239 = vpop.permute.xlu0 %2238
    %v2241 = vadd.f32 %v2231, %v2239
    %v2242 = vtanh.pop %v2241
    %2244 = vrot.lane.b32.xlu0 %v2242, 32
    %v2245 = vpop.permute.xlu0 %2244
    %v2247 = vmul.f32 %v2229, %v2245
    %v2249 = vlaneseq
    %v2250 = vshrl.u32 %v2249, 7
    %v2251 = vsub.s32 0, %v2250
    %v2252 = vrot.slane %v135, %v2251
    %2253 = vrot.lane.b32.xlu0 %v2252, 64
    %v2254 = vpop.permute.xlu0 %2253
    %v2256 = vmul.f32 %v2247, %v2254
    %2258 = vrot.lane.b32.xlu0 %v2256, 64
    %v2259 = vpop.permute.xlu0 %2258
    %v2261 = vsel %vm324, %v2259, 0.0
    %2262 = vadd.xlane.f32.xlu0 %v2261
    %v2263 = vpop.xlane.xlu0 %2262
    %vm2264 = vcmp.eq.s32.totalorder %v2152, 0
    %v2265 = vsel %vm2264, %v2263, 0.0
    %2267 = vrot.lane.b32.xlu0 %v2247, 64
    %v2268 = vpop.permute.xlu0 %2267
    %v2269 = vsel %vm221, %v2268, 0
    %2271 = vmatprep.subr.mxu0 0.0
    %2272 = vmatpush1.msra.mxu0 %v131
    %2273 = vmatprep.subr.mxu0 0.0
    %2274 = vmatpush1.msra.mxu0 %v132
    %2275 = vmatprep.subr.mxu0 0.0
    %2276 = vmatpush1.msra.mxu0 %v133
    %2277 = vmatprep.subr.mxu0 0.0
    %2278 = vmatpush1.msra.mxu0 %v134
    %2279 = vmatprep.subr.mxu0 0.0
    %2280 = vmatpush1.msra.mxu0 0.0
    %2281 = vmatprep.subr.mxu0 0.0
    %2282 = vmatpush1.msra.mxu0 0.0
    %2283 = vmatprep.subr.mxu0 0.0
    %2284 = vmatpush1.msra.mxu0 0.0
    %2285 = vmatprep.subr.mxu0 0.0
    %2286 = vmatpush1.msra.mxu0 0.0
    %2287 = vmatprep.subr.mxu0 0.0
    %2288 = vmatpush1.msra.mxu0 0.0
    %2289 = vmatprep.subr.mxu0 0.0
    %2290 = vmatpush1.msra.mxu0 0.0
    %2291 = vmatprep.subr.mxu0 0.0
    %2292 = vmatpush1.msra.mxu0 0.0
    %2293 = vmatprep.subr.mxu0 0.0
    %2294 = vmatpush1.msra.mxu0 0.0
    %2295 = vmatprep.subr.mxu0 0.0
    %2296 = vmatpush1.msra.mxu0 0.0
    %2297 = vmatprep.subr.mxu0 0.0
    %2298 = vmatpush1.msra.mxu0 0.0
    %2299 = vmatprep.subr.mxu0 0.0
    %2300 = vmatpush1.msra.mxu0 0.0
    %2301 = vmatprep.subr.mxu0 0.0
    %2302 = vmatpush1.msra.mxu0 0.0
    %2303 = vmatprep.subr.mxu0 0.0
    %2304 = vmatpush1.msra.mxu0 0.0
    %2305 = vmatprep.subr.mxu0 0.0
    %2306 = vmatpush1.msra.mxu0 0.0
    %2307 = vmatprep.subr.mxu0 0.0
    %2308 = vmatpush1.msra.mxu0 0.0
    %2309 = vmatprep.subr.mxu0 0.0
    %2310 = vmatpush1.msra.mxu0 0.0
    %2311 = vmatprep.subr.mxu0 0.0
    %2312 = vmatpush1.msra.mxu0 0.0
    %2313 = vmatprep.subr.mxu0 0.0
    %2314 = vmatpush1.msra.mxu0 0.0
    %2315 = vmatprep.subr.mxu0 0.0
    %2316 = vmatpush1.msra.mxu0 0.0
    %2317 = vmatprep.subr.mxu0 0.0
    %2318 = vmatpush1.msra.mxu0 0.0
    %2319 = vmatprep.subr.mxu0 0.0
    %2320 = vmatpush1.msra.mxu0 0.0
    %2321 = vmatprep.subr.mxu0 0.0
    %2322 = vmatpush1.msra.mxu0 0.0
    %2323 = vmatprep.subr.mxu0 0.0
    %2324 = vmatpush1.msra.mxu0 0.0
    %2325 = vmatprep.subr.mxu0 0.0
    %2326 = vmatpush1.msra.mxu0 0.0
    %2327 = vmatprep.subr.mxu0 0.0
    %2328 = vmatpush1.msra.mxu0 0.0
    %2329 = vmatprep.subr.mxu0 0.0
    %2330 = vmatpush1.msra.mxu0 0.0
    %2331 = vmatprep.subr.mxu0 0.0
    %2332 = vmatpush1.msra.mxu0 0.0
    %2333 = vmatprep.subr.mxu0 0.0
    %2334 = vmatpush1.msra.mxu0 0.0
    %2335 = vmatprep.mubr.f32.mxu0 0.0
    %2336 = vmatmul.mubr.f32.gmra.mrb[0].mxu0 %v2269
    %v2337 = vpop.f32.mrb[0].mxu0
    %v2338 = vadd.f32 0.0, %v2337
    %v2339 = vpop.f32.mrb[0].mxu0
    %2340 = vdwg.mxu0
    %v2342 = vrot.slane %v2338, 7
    %v2344 = vadd.f32 %v2148, %v2342
    %v2345 = vxor.u32 %v2344, 2147483648
    %v2346 = vmul.f32 %v2345, 1.442695
    %v2347 = vpow.pop %v2346
    %v2348 = vadd.f32 %v2347, 1.0
    %v2349 = vrcp.pop %v2348
    %v2350 = vmul.f32 1.0, %v2349
    %v2351 = vtanh.pop %v2344
    %v2353 = vrot.slane %v2241, 7
    %v2355 = vmul.f32 %v2350, %v2353
    %2357 = vrot.lane.b32.xlu0 %v2351, 32
    %v2358 = vpop.permute.xlu0 %2357
    %v2360 = vmul.f32 %v2350, %v2358
    %2362 = vrot.lane.b32.xlu0 %v2360, 32
    %v2363 = vpop.permute.xlu0 %2362
    %v2365 = vadd.f32 %v2355, %v2363
    %v2366 = vtanh.pop %v2365
    %2368 = vrot.lane.b32.xlu0 %v2366, 32
    %v2369 = vpop.permute.xlu0 %2368
    %v2371 = vmul.f32 %v2350, %v2369
    %v2372 = vmul.f32 %v2371, %v2254
    %2374 = vrot.lane.b32.xlu0 %v2372, 64
    %v2375 = vpop.permute.xlu0 %2374
    %v2377 = vsel %vm433, %v2375, 0.0
    %2378 = vadd.xlane.f32.xlu0 %v2377
    %v2379 = vpop.xlane.xlu0 %2378
    %vm2380 = vcmp.eq.s32.totalorder %v2152, 1
    %v2382 = vrot.slane %v2265, 7
    %v2384 = vsel %vm2380, %v2379, %v2382
    %v2386 = vrot.slane %v2371, 1
    %2387 = vrot.lane.b32.xlu0 %v2386, 64
    %v2388 = vpop.permute.xlu0 %2387
    %v2389 = vsel %vm221, %v2388, 0
    %2391 = vmatprep.subr.mxu0 0.0
    %2392 = vmatpush1.msra.mxu0 %v131
    %2393 = vmatprep.subr.mxu0 0.0
    %2394 = vmatpush1.msra.mxu0 %v132
    %2395 = vmatprep.subr.mxu0 0.0
    %2396 = vmatpush1.msra.mxu0 %v133
    %2397 = vmatprep.subr.mxu0 0.0
    %2398 = vmatpush1.msra.mxu0 %v134
    %2399 = vmatprep.subr.mxu0 0.0
    %2400 = vmatpush1.msra.mxu0 0.0
    %2401 = vmatprep.subr.mxu0 0.0
    %2402 = vmatpush1.msra.mxu0 0.0
    %2403 = vmatprep.subr.mxu0 0.0
    %2404 = vmatpush1.msra.mxu0 0.0
    %2405 = vmatprep.subr.mxu0 0.0
    %2406 = vmatpush1.msra.mxu0 0.0
    %2407 = vmatprep.subr.mxu0 0.0
    %2408 = vmatpush1.msra.mxu0 0.0
    %2409 = vmatprep.subr.mxu0 0.0
    %2410 = vmatpush1.msra.mxu0 0.0
    %2411 = vmatprep.subr.mxu0 0.0
    %2412 = vmatpush1.msra.mxu0 0.0
    %2413 = vmatprep.subr.mxu0 0.0
    %2414 = vmatpush1.msra.mxu0 0.0
    %2415 = vmatprep.subr.mxu0 0.0
    %2416 = vmatpush1.msra.mxu0 0.0
    %2417 = vmatprep.subr.mxu0 0.0
    %2418 = vmatpush1.msra.mxu0 0.0
    %2419 = vmatprep.subr.mxu0 0.0
    %2420 = vmatpush1.msra.mxu0 0.0
    %2421 = vmatprep.subr.mxu0 0.0
    %2422 = vmatpush1.msra.mxu0 0.0
    %2423 = vmatprep.subr.mxu0 0.0
    %2424 = vmatpush1.msra.mxu0 0.0
    %2425 = vmatprep.subr.mxu0 0.0
    %2426 = vmatpush1.msra.mxu0 0.0
    %2427 = vmatprep.subr.mxu0 0.0
    %2428 = vmatpush1.msra.mxu0 0.0
    %2429 = vmatprep.subr.mxu0 0.0
    %2430 = vmatpush1.msra.mxu0 0.0
    %2431 = vmatprep.subr.mxu0 0.0
    %2432 = vmatpush1.msra.mxu0 0.0
    %2433 = vmatprep.subr.mxu0 0.0
    %2434 = vmatpush1.msra.mxu0 0.0
    %2435 = vmatprep.subr.mxu0 0.0
    %2436 = vmatpush1.msra.mxu0 0.0
    %2437 = vmatprep.subr.mxu0 0.0
    %2438 = vmatpush1.msra.mxu0 0.0
    %2439 = vmatprep.subr.mxu0 0.0
    %2440 = vmatpush1.msra.mxu0 0.0
    %2441 = vmatprep.subr.mxu0 0.0
    %2442 = vmatpush1.msra.mxu0 0.0
    %2443 = vmatprep.subr.mxu0 0.0
    %2444 = vmatpush1.msra.mxu0 0.0
    %2445 = vmatprep.subr.mxu0 0.0
    %2446 = vmatpush1.msra.mxu0 0.0
    %2447 = vmatprep.subr.mxu0 0.0
    %2448 = vmatpush1.msra.mxu0 0.0
    %2449 = vmatprep.subr.mxu0 0.0
    %2450 = vmatpush1.msra.mxu0 0.0
    %2451 = vmatprep.subr.mxu0 0.0
    %2452 = vmatpush1.msra.mxu0 0.0
    %2453 = vmatprep.subr.mxu0 0.0
    %2454 = vmatpush1.msra.mxu0 0.0
    %2455 = vmatprep.mubr.f32.mxu0 0.0
    %2456 = vmatmul.mubr.f32.gmra.mrb[0].mxu0 %v2389
    %v2457 = vpop.f32.mrb[0].mxu0
    %v2458 = vadd.f32 0.0, %v2457
    %v2459 = vpop.f32.mrb[0].mxu0
    %2460 = vdwg.mxu0
    %v2462 = vrot.slane %v2458, 6
    %v2464 = vadd.f32 %v2148, %v2462
    %v2465 = vxor.u32 %v2464, 2147483648
    %v2466 = vmul.f32 %v2465, 1.442695
    %v2467 = vpow.pop %v2466
    %v2468 = vadd.f32 %v2467, 1.0
    %v2469 = vrcp.pop %v2468
    %v2470 = vmul.f32 1.0, %v2469
    %v2471 = vtanh.pop %v2464
    %v2473 = vrot.slane %v2365, 7
    %v2475 = vmul.f32 %v2470, %v2473
    %2477 = vrot.lane.b32.xlu0 %v2471, 32
    %v2478 = vpop.permute.xlu0 %2477
    %v2480 = vmul.f32 %v2470, %v2478
    %2482 = vrot.lane.b32.xlu0 %v2480, 32
    %v2483 = vpop.permute.xlu0 %2482
    %v2485 = vadd.f32 %v2475, %v2483
    %v2486 = vtanh.pop %v2485
    %2488 = vrot.lane.b32.xlu0 %v2486, 32
    %v2489 = vpop.permute.xlu0 %2488
    %v2491 = vmul.f32 %v2470, %v2489
    %v2492 = vmul.f32 %v2491, %v2254
    %2494 = vrot.lane.b32.xlu0 %v2492, 64
    %v2495 = vpop.permute.xlu0 %2494
    %v2497 = vsel %vm545, %v2495, 0.0
    %2498 = vadd.xlane.f32.xlu0 %v2497
    %v2499 = vpop.xlane.xlu0 %2498
    %vm2500 = vcmp.eq.s32.totalorder %v2152, 2
    %v2502 = vrot.slane %v2384, 7
    %v2504 = vsel %vm2500, %v2499, %v2502
    %v2506 = vrot.slane %v2491, 2
    %2507 = vrot.lane.b32.xlu0 %v2506, 64
    %v2508 = vpop.permute.xlu0 %2507
    %v2509 = vsel %vm221, %v2508, 0
    %2511 = vmatprep.subr.mxu0 0.0
    %2512 = vmatpush1.msra.mxu0 %v131
    %2513 = vmatprep.subr.mxu0 0.0
    %2514 = vmatpush1.msra.mxu0 %v132
    %2515 = vmatprep.subr.mxu0 0.0
    %2516 = vmatpush1.msra.mxu0 %v133
    %2517 = vmatprep.subr.mxu0 0.0
    %2518 = vmatpush1.msra.mxu0 %v134
    %2519 = vmatprep.subr.mxu0 0.0
    %2520 = vmatpush1.msra.mxu0 0.0
    %2521 = vmatprep.subr.mxu0 0.0
    %2522 = vmatpush1.msra.mxu0 0.0
    %2523 = vmatprep.subr.mxu0 0.0
    %2524 = vmatpush1.msra.mxu0 0.0
    %2525 = vmatprep.subr.mxu0 0.0
    %2526 = vmatpush1.msra.mxu0 0.0
    %2527 = vmatprep.subr.mxu0 0.0
    %2528 = vmatpush1.msra.mxu0 0.0
    %2529 = vmatprep.subr.mxu0 0.0
    %2530 = vmatpush1.msra.mxu0 0.0
    %2531 = vmatprep.subr.mxu0 0.0
    %2532 = vmatpush1.msra.mxu0 0.0
    %2533 = vmatprep.subr.mxu0 0.0
    %2534 = vmatpush1.msra.mxu0 0.0
    %2535 = vmatprep.subr.mxu0 0.0
    %2536 = vmatpush1.msra.mxu0 0.0
    %2537 = vmatprep.subr.mxu0 0.0
    %2538 = vmatpush1.msra.mxu0 0.0
    %2539 = vmatprep.subr.mxu0 0.0
    %2540 = vmatpush1.msra.mxu0 0.0
    %2541 = vmatprep.subr.mxu0 0.0
    %2542 = vmatpush1.msra.mxu0 0.0
    %2543 = vmatprep.subr.mxu0 0.0
    %2544 = vmatpush1.msra.mxu0 0.0
    %2545 = vmatprep.subr.mxu0 0.0
    %2546 = vmatpush1.msra.mxu0 0.0
    %2547 = vmatprep.subr.mxu0 0.0
    %2548 = vmatpush1.msra.mxu0 0.0
    %2549 = vmatprep.subr.mxu0 0.0
    %2550 = vmatpush1.msra.mxu0 0.0
    %2551 = vmatprep.subr.mxu0 0.0
    %2552 = vmatpush1.msra.mxu0 0.0
    %2553 = vmatprep.subr.mxu0 0.0
    %2554 = vmatpush1.msra.mxu0 0.0
    %2555 = vmatprep.subr.mxu0 0.0
    %2556 = vmatpush1.msra.mxu0 0.0
    %2557 = vmatprep.subr.mxu0 0.0
    %2558 = vmatpush1.msra.mxu0 0.0
    %2559 = vmatprep.subr.mxu0 0.0
    %2560 = vmatpush1.msra.mxu0 0.0
    %2561 = vmatprep.subr.mxu0 0.0
    %2562 = vmatpush1.msra.mxu0 0.0
    %2563 = vmatprep.subr.mxu0 0.0
    %2564 = vmatpush1.msra.mxu0 0.0
    %2565 = vmatprep.subr.mxu0 0.0
    %2566 = vmatpush1.msra.mxu0 0.0
    %2567 = vmatprep.subr.mxu0 0.0
    %2568 = vmatpush1.msra.mxu0 0.0
    %2569 = vmatprep.subr.mxu0 0.0
    %2570 = vmatpush1.msra.mxu0 0.0
    %2571 = vmatprep.subr.mxu0 0.0
    %2572 = vmatpush1.msra.mxu0 0.0
    %2573 = vmatprep.subr.mxu0 0.0
    %2574 = vmatpush1.msra.mxu0 0.0
    %2575 = vmatprep.mubr.f32.mxu0 0.0
    %2576 = vmatmul.mubr.f32.gmra.mrb[0].mxu0 %v2509
    %v2577 = vpop.f32.mrb[0].mxu0
    %v2578 = vadd.f32 0.0, %v2577
    %v2579 = vpop.f32.mrb[0].mxu0
    %2580 = vdwg.mxu0
    %v2582 = vrot.slane %v2578, 5
    %v2584 = vadd.f32 %v2148, %v2582
    %v2585 = vxor.u32 %v2584, 2147483648
    %v2586 = vmul.f32 %v2585, 1.442695
    %v2587 = vpow.pop %v2586
    %v2588 = vadd.f32 %v2587, 1.0
    %v2589 = vrcp.pop %v2588
    %v2590 = vmul.f32 1.0, %v2589
    %v2591 = vtanh.pop %v2584
    %v2593 = vrot.slane %v2485, 7
    %v2595 = vmul.f32 %v2590, %v2593
    %2597 = vrot.lane.b32.xlu0 %v2591, 32
    %v2598 = vpop.permute.xlu0 %2597
    %v2600 = vmul.f32 %v2590, %v2598
    %2602 = vrot.lane.b32.xlu0 %v2600, 32
    %v2603 = vpop.permute.xlu0 %2602
    %v2605 = vadd.f32 %v2595, %v2603
    %v2606 = vtanh.pop %v2605
    %2608 = vrot.lane.b32.xlu0 %v2606, 32
    %v2609 = vpop.permute.xlu0 %2608
    %v2611 = vmul.f32 %v2590, %v2609
    %v2612 = vmul.f32 %v2611, %v2254
    %2614 = vrot.lane.b32.xlu0 %v2612, 64
    %v2615 = vpop.permute.xlu0 %2614
    %v2617 = vsel %vm657, %v2615, 0.0
    %2618 = vadd.xlane.f32.xlu0 %v2617
    %v2619 = vpop.xlane.xlu0 %2618
    %vm2620 = vcmp.eq.s32.totalorder %v2152, 3
    %v2622 = vrot.slane %v2504, 7
    %v2624 = vsel %vm2620, %v2619, %v2622
    %v2626 = vrot.slane %v2611, 3
    %2627 = vrot.lane.b32.xlu0 %v2626, 64
    %v2628 = vpop.permute.xlu0 %2627
    %v2629 = vsel %vm221, %v2628, 0
    %2631 = vmatprep.subr.mxu0 0.0
    %2632 = vmatpush1.msra.mxu0 %v131
    %2633 = vmatprep.subr.mxu0 0.0
    %2634 = vmatpush1.msra.mxu0 %v132
    %2635 = vmatprep.subr.mxu0 0.0
    %2636 = vmatpush1.msra.mxu0 %v133
    %2637 = vmatprep.subr.mxu0 0.0
    %2638 = vmatpush1.msra.mxu0 %v134
    %2639 = vmatprep.subr.mxu0 0.0
    %2640 = vmatpush1.msra.mxu0 0.0
    %2641 = vmatprep.subr.mxu0 0.0
    %2642 = vmatpush1.msra.mxu0 0.0
    %2643 = vmatprep.subr.mxu0 0.0
    %2644 = vmatpush1.msra.mxu0 0.0
    %2645 = vmatprep.subr.mxu0 0.0
    %2646 = vmatpush1.msra.mxu0 0.0
    %2647 = vmatprep.subr.mxu0 0.0
    %2648 = vmatpush1.msra.mxu0 0.0
    %2649 = vmatprep.subr.mxu0 0.0
    %2650 = vmatpush1.msra.mxu0 0.0
    %2651 = vmatprep.subr.mxu0 0.0
    %2652 = vmatpush1.msra.mxu0 0.0
    %2653 = vmatprep.subr.mxu0 0.0
    %2654 = vmatpush1.msra.mxu0 0.0
    %2655 = vmatprep.subr.mxu0 0.0
    %2656 = vmatpush1.msra.mxu0 0.0
    %2657 = vmatprep.subr.mxu0 0.0
    %2658 = vmatpush1.msra.mxu0 0.0
    %2659 = vmatprep.subr.mxu0 0.0
    %2660 = vmatpush1.msra.mxu0 0.0
    %2661 = vmatprep.subr.mxu0 0.0
    %2662 = vmatpush1.msra.mxu0 0.0
    %2663 = vmatprep.subr.mxu0 0.0
    %2664 = vmatpush1.msra.mxu0 0.0
    %2665 = vmatprep.subr.mxu0 0.0
    %2666 = vmatpush1.msra.mxu0 0.0
    %2667 = vmatprep.subr.mxu0 0.0
    %2668 = vmatpush1.msra.mxu0 0.0
    %2669 = vmatprep.subr.mxu0 0.0
    %2670 = vmatpush1.msra.mxu0 0.0
    %2671 = vmatprep.subr.mxu0 0.0
    %2672 = vmatpush1.msra.mxu0 0.0
    %2673 = vmatprep.subr.mxu0 0.0
    %2674 = vmatpush1.msra.mxu0 0.0
    %2675 = vmatprep.subr.mxu0 0.0
    %2676 = vmatpush1.msra.mxu0 0.0
    %2677 = vmatprep.subr.mxu0 0.0
    %2678 = vmatpush1.msra.mxu0 0.0
    %2679 = vmatprep.subr.mxu0 0.0
    %2680 = vmatpush1.msra.mxu0 0.0
    %2681 = vmatprep.subr.mxu0 0.0
    %2682 = vmatpush1.msra.mxu0 0.0
    %2683 = vmatprep.subr.mxu0 0.0
    %2684 = vmatpush1.msra.mxu0 0.0
    %2685 = vmatprep.subr.mxu0 0.0
    %2686 = vmatpush1.msra.mxu0 0.0
    %2687 = vmatprep.subr.mxu0 0.0
    %2688 = vmatpush1.msra.mxu0 0.0
    %2689 = vmatprep.subr.mxu0 0.0
    %2690 = vmatpush1.msra.mxu0 0.0
    %2691 = vmatprep.subr.mxu0 0.0
    %2692 = vmatpush1.msra.mxu0 0.0
    %2693 = vmatprep.subr.mxu0 0.0
    %2694 = vmatpush1.msra.mxu0 0.0
    %2695 = vmatprep.mubr.f32.mxu0 0.0
    %2696 = vmatmul.mubr.f32.gmra.mrb[0].mxu0 %v2629
    %v2697 = vpop.f32.mrb[0].mxu0
    %v2698 = vadd.f32 0.0, %v2697
    %v2699 = vpop.f32.mrb[0].mxu0
    %2700 = vdwg.mxu0
    %v2702 = vrot.slane %v2698, 4
    %v2704 = vadd.f32 %v2148, %v2702
    %v2705 = vxor.u32 %v2704, 2147483648
    %v2706 = vmul.f32 %v2705, 1.442695
    %v2707 = vpow.pop %v2706
    %v2708 = vadd.f32 %v2707, 1.0
    %v2709 = vrcp.pop %v2708
    %v2710 = vmul.f32 1.0, %v2709
    %v2711 = vtanh.pop %v2704
    %v2713 = vrot.slane %v2605, 7
    %v2715 = vmul.f32 %v2710, %v2713
    %2717 = vrot.lane.b32.xlu0 %v2711, 32
    %v2718 = vpop.permute.xlu0 %2717
    %v2720 = vmul.f32 %v2710, %v2718
    %2722 = vrot.lane.b32.xlu0 %v2720, 32
    %v2723 = vpop.permute.xlu0 %2722
    %v2725 = vadd.f32 %v2715, %v2723
    %v2726 = vtanh.pop %v2725
    %2728 = vrot.lane.b32.xlu0 %v2726, 32
    %v2729 = vpop.permute.xlu0 %2728
    %v2731 = vmul.f32 %v2710, %v2729
    %v2732 = vmul.f32 %v2731, %v2254
    %2734 = vrot.lane.b32.xlu0 %v2732, 64
    %v2735 = vpop.permute.xlu0 %2734
    %v2737 = vsel %vm769, %v2735, 0.0
    %2738 = vadd.xlane.f32.xlu0 %v2737
    %v2739 = vpop.xlane.xlu0 %2738
    %vm2740 = vcmp.eq.s32.totalorder %v2152, 4
    %v2742 = vrot.slane %v2624, 7
    %v2744 = vsel %vm2740, %v2739, %v2742
    %v2746 = vrot.slane %v2731, 4
    %2747 = vrot.lane.b32.xlu0 %v2746, 64
    %v2748 = vpop.permute.xlu0 %2747
    %v2749 = vsel %vm221, %v2748, 0
    %2751 = vmatprep.subr.mxu0 0.0
    %2752 = vmatpush1.msra.mxu0 %v131
    %2753 = vmatprep.subr.mxu0 0.0
    %2754 = vmatpush1.msra.mxu0 %v132
    %2755 = vmatprep.subr.mxu0 0.0
    %2756 = vmatpush1.msra.mxu0 %v133
    %2757 = vmatprep.subr.mxu0 0.0
    %2758 = vmatpush1.msra.mxu0 %v134
    %2759 = vmatprep.subr.mxu0 0.0
    %2760 = vmatpush1.msra.mxu0 0.0
    %2761 = vmatprep.subr.mxu0 0.0
    %2762 = vmatpush1.msra.mxu0 0.0
    %2763 = vmatprep.subr.mxu0 0.0
    %2764 = vmatpush1.msra.mxu0 0.0
    %2765 = vmatprep.subr.mxu0 0.0
    %2766 = vmatpush1.msra.mxu0 0.0
    %2767 = vmatprep.subr.mxu0 0.0
    %2768 = vmatpush1.msra.mxu0 0.0
    %2769 = vmatprep.subr.mxu0 0.0
    %2770 = vmatpush1.msra.mxu0 0.0
    %2771 = vmatprep.subr.mxu0 0.0
    %2772 = vmatpush1.msra.mxu0 0.0
    %2773 = vmatprep.subr.mxu0 0.0
    %2774 = vmatpush1.msra.mxu0 0.0
    %2775 = vmatprep.subr.mxu0 0.0
    %2776 = vmatpush1.msra.mxu0 0.0
    %2777 = vmatprep.subr.mxu0 0.0
    %2778 = vmatpush1.msra.mxu0 0.0
    %2779 = vmatprep.subr.mxu0 0.0
    %2780 = vmatpush1.msra.mxu0 0.0
    %2781 = vmatprep.subr.mxu0 0.0
    %2782 = vmatpush1.msra.mxu0 0.0
    %2783 = vmatprep.subr.mxu0 0.0
    %2784 = vmatpush1.msra.mxu0 0.0
    %2785 = vmatprep.subr.mxu0 0.0
    %2786 = vmatpush1.msra.mxu0 0.0
    %2787 = vmatprep.subr.mxu0 0.0
    %2788 = vmatpush1.msra.mxu0 0.0
    %2789 = vmatprep.subr.mxu0 0.0
    %2790 = vmatpush1.msra.mxu0 0.0
    %2791 = vmatprep.subr.mxu0 0.0
    %2792 = vmatpush1.msra.mxu0 0.0
    %2793 = vmatprep.subr.mxu0 0.0
    %2794 = vmatpush1.msra.mxu0 0.0
    %2795 = vmatprep.subr.mxu0 0.0
    %2796 = vmatpush1.msra.mxu0 0.0
    %2797 = vmatprep.subr.mxu0 0.0
    %2798 = vmatpush1.msra.mxu0 0.0
    %2799 = vmatprep.subr.mxu0 0.0
    %2800 = vmatpush1.msra.mxu0 0.0
    %2801 = vmatprep.subr.mxu0 0.0
    %2802 = vmatpush1.msra.mxu0 0.0
    %2803 = vmatprep.subr.mxu0 0.0
    %2804 = vmatpush1.msra.mxu0 0.0
    %2805 = vmatprep.subr.mxu0 0.0
    %2806 = vmatpush1.msra.mxu0 0.0
    %2807 = vmatprep.subr.mxu0 0.0
    %2808 = vmatpush1.msra.mxu0 0.0
    %2809 = vmatprep.subr.mxu0 0.0
    %2810 = vmatpush1.msra.mxu0 0.0
    %2811 = vmatprep.subr.mxu0 0.0
    %2812 = vmatpush1.msra.mxu0 0.0
    %2813 = vmatprep.subr.mxu0 0.0
    %2814 = vmatpush1.msra.mxu0 0.0
    %2815 = vmatprep.mubr.f32.mxu0 0.0
    %2816 = vmatmul.mubr.f32.gmra.mrb[0].mxu0 %v2749
    %v2817 = vpop.f32.mrb[0].mxu0
    %v2818 = vadd.f32 0.0, %v2817
    %v2819 = vpop.f32.mrb[0].mxu0
    %2820 = vdwg.mxu0
    %v2822 = vrot.slane %v2818, 3
    %v2824 = vadd.f32 %v2148, %v2822
    %v2825 = vxor.u32 %v2824, 2147483648
    %v2826 = vmul.f32 %v2825, 1.442695
    %v2827 = vpow.pop %v2826
    %v2828 = vadd.f32 %v2827, 1.0
    %v2829 = vrcp.pop %v2828
    %v2830 = vmul.f32 1.0, %v2829
    %v2831 = vtanh.pop %v2824
    %v2833 = vrot.slane %v2725, 7
    %v2835 = vmul.f32 %v2830, %v2833
    %2837 = vrot.lane.b32.xlu0 %v2831, 32
    %v2838 = vpop.permute.xlu0 %2837
    %v2840 = vmul.f32 %v2830, %v2838
    %2842 = vrot.lane.b32.xlu0 %v2840, 32
    %v2843 = vpop.permute.xlu0 %2842
    %v2845 = vadd.f32 %v2835, %v2843
    %v2846 = vtanh.pop %v2845
    %2848 = vrot.lane.b32.xlu0 %v2846, 32
    %v2849 = vpop.permute.xlu0 %2848
    %v2851 = vmul.f32 %v2830, %v2849
    %v2852 = vmul.f32 %v2851, %v2254
    %2854 = vrot.lane.b32.xlu0 %v2852, 64
    %v2855 = vpop.permute.xlu0 %2854
    %v2857 = vsel %vm881, %v2855, 0.0
    %2858 = vadd.xlane.f32.xlu0 %v2857
    %v2859 = vpop.xlane.xlu0 %2858
    %vm2860 = vcmp.eq.s32.totalorder %v2152, 5
    %v2862 = vrot.slane %v2744, 7
    %v2864 = vsel %vm2860, %v2859, %v2862
    %v2866 = vrot.slane %v2851, 5
    %2867 = vrot.lane.b32.xlu0 %v2866, 64
    %v2868 = vpop.permute.xlu0 %2867
    %v2869 = vsel %vm221, %v2868, 0
    %2871 = vmatprep.subr.mxu0 0.0
    %2872 = vmatpush1.msra.mxu0 %v131
    %2873 = vmatprep.subr.mxu0 0.0
    %2874 = vmatpush1.msra.mxu0 %v132
    %2875 = vmatprep.subr.mxu0 0.0
    %2876 = vmatpush1.msra.mxu0 %v133
    %2877 = vmatprep.subr.mxu0 0.0
    %2878 = vmatpush1.msra.mxu0 %v134
    %2879 = vmatprep.subr.mxu0 0.0
    %2880 = vmatpush1.msra.mxu0 0.0
    %2881 = vmatprep.subr.mxu0 0.0
    %2882 = vmatpush1.msra.mxu0 0.0
    %2883 = vmatprep.subr.mxu0 0.0
    %2884 = vmatpush1.msra.mxu0 0.0
    %2885 = vmatprep.subr.mxu0 0.0
    %2886 = vmatpush1.msra.mxu0 0.0
    %2887 = vmatprep.subr.mxu0 0.0
    %2888 = vmatpush1.msra.mxu0 0.0
    %2889 = vmatprep.subr.mxu0 0.0
    %2890 = vmatpush1.msra.mxu0 0.0
    %2891 = vmatprep.subr.mxu0 0.0
    %2892 = vmatpush1.msra.mxu0 0.0
    %2893 = vmatprep.subr.mxu0 0.0
    %2894 = vmatpush1.msra.mxu0 0.0
    %2895 = vmatprep.subr.mxu0 0.0
    %2896 = vmatpush1.msra.mxu0 0.0
    %2897 = vmatprep.subr.mxu0 0.0
    %2898 = vmatpush1.msra.mxu0 0.0
    %2899 = vmatprep.subr.mxu0 0.0
    %2900 = vmatpush1.msra.mxu0 0.0
    %2901 = vmatprep.subr.mxu0 0.0
    %2902 = vmatpush1.msra.mxu0 0.0
    %2903 = vmatprep.subr.mxu0 0.0
    %2904 = vmatpush1.msra.mxu0 0.0
    %2905 = vmatprep.subr.mxu0 0.0
    %2906 = vmatpush1.msra.mxu0 0.0
    %2907 = vmatprep.subr.mxu0 0.0
    %2908 = vmatpush1.msra.mxu0 0.0
    %2909 = vmatprep.subr.mxu0 0.0
    %2910 = vmatpush1.msra.mxu0 0.0
    %2911 = vmatprep.subr.mxu0 0.0
    %2912 = vmatpush1.msra.mxu0 0.0
    %2913 = vmatprep.subr.mxu0 0.0
    %2914 = vmatpush1.msra.mxu0 0.0
    %2915 = vmatprep.subr.mxu0 0.0
    %2916 = vmatpush1.msra.mxu0 0.0
    %2917 = vmatprep.subr.mxu0 0.0
    %2918 = vmatpush1.msra.mxu0 0.0
    %2919 = vmatprep.subr.mxu0 0.0
    %2920 = vmatpush1.msra.mxu0 0.0
    %2921 = vmatprep.subr.mxu0 0.0
    %2922 = vmatpush1.msra.mxu0 0.0
    %2923 = vmatprep.subr.mxu0 0.0
    %2924 = vmatpush1.msra.mxu0 0.0
    %2925 = vmatprep.subr.mxu0 0.0
    %2926 = vmatpush1.msra.mxu0 0.0
    %2927 = vmatprep.subr.mxu0 0.0
    %2928 = vmatpush1.msra.mxu0 0.0
    %2929 = vmatprep.subr.mxu0 0.0
    %2930 = vmatpush1.msra.mxu0 0.0
    %2931 = vmatprep.subr.mxu0 0.0
    %2932 = vmatpush1.msra.mxu0 0.0
    %2933 = vmatprep.subr.mxu0 0.0
    %2934 = vmatpush1.msra.mxu0 0.0
    %2935 = vmatprep.mubr.f32.mxu0 0.0
    %2936 = vmatmul.mubr.f32.gmra.mrb[0].mxu0 %v2869
    %v2937 = vpop.f32.mrb[0].mxu0
    %v2938 = vadd.f32 0.0, %v2937
    %v2939 = vpop.f32.mrb[0].mxu0
    %2940 = vdwg.mxu0
    %v2942 = vrot.slane %v2938, 2
    %v2944 = vadd.f32 %v2148, %v2942
    %v2945 = vxor.u32 %v2944, 2147483648
    %v2946 = vmul.f32 %v2945, 1.442695
    %v2947 = vpow.pop %v2946
    %v2948 = vadd.f32 %v2947, 1.0
    %v2949 = vrcp.pop %v2948
    %v2950 = vmul.f32 1.0, %v2949
    %v2951 = vtanh.pop %v2944
    %v2953 = vrot.slane %v2845, 7
    %v2955 = vmul.f32 %v2950, %v2953
    %2957 = vrot.lane.b32.xlu0 %v2951, 32
    %v2958 = vpop.permute.xlu0 %2957
    %v2960 = vmul.f32 %v2950, %v2958
    %2962 = vrot.lane.b32.xlu0 %v2960, 32
    %v2963 = vpop.permute.xlu0 %2962
    %v2965 = vadd.f32 %v2955, %v2963
    %v2966 = vtanh.pop %v2965
    %2968 = vrot.lane.b32.xlu0 %v2966, 32
    %v2969 = vpop.permute.xlu0 %2968
    %v2971 = vmul.f32 %v2950, %v2969
    %v2972 = vmul.f32 %v2971, %v2254
    %2974 = vrot.lane.b32.xlu0 %v2972, 64
    %v2975 = vpop.permute.xlu0 %2974
    %v2977 = vsel %vm993, %v2975, 0.0
    %2978 = vadd.xlane.f32.xlu0 %v2977
    %v2979 = vpop.xlane.xlu0 %2978
    %vm2980 = vcmp.eq.s32.totalorder %v2152, 6
    %v2982 = vrot.slane %v2864, 7
    %v2984 = vsel %vm2980, %v2979, %v2982
    %v2986 = vrot.slane %v2971, 6
    %2987 = vrot.lane.b32.xlu0 %v2986, 64
    %v2988 = vpop.permute.xlu0 %2987
    %v2989 = vsel %vm221, %v2988, 0
    %2991 = vmatprep.subr.mxu0 0.0
    %2992 = vmatpush1.msra.mxu0 %v131
    %2993 = vmatprep.subr.mxu0 0.0
    %2994 = vmatpush1.msra.mxu0 %v132
    %2995 = vmatprep.subr.mxu0 0.0
    %2996 = vmatpush1.msra.mxu0 %v133
    %2997 = vmatprep.subr.mxu0 0.0
    %2998 = vmatpush1.msra.mxu0 %v134
    %2999 = vmatprep.subr.mxu0 0.0
    %3000 = vmatpush1.msra.mxu0 0.0
    %3001 = vmatprep.subr.mxu0 0.0
    %3002 = vmatpush1.msra.mxu0 0.0
    %3003 = vmatprep.subr.mxu0 0.0
    %3004 = vmatpush1.msra.mxu0 0.0
    %3005 = vmatprep.subr.mxu0 0.0
    %3006 = vmatpush1.msra.mxu0 0.0
    %3007 = vmatprep.subr.mxu0 0.0
    %3008 = vmatpush1.msra.mxu0 0.0
    %3009 = vmatprep.subr.mxu0 0.0
    %3010 = vmatpush1.msra.mxu0 0.0
    %3011 = vmatprep.subr.mxu0 0.0
    %3012 = vmatpush1.msra.mxu0 0.0
    %3013 = vmatprep.subr.mxu0 0.0
    %3014 = vmatpush1.msra.mxu0 0.0
    %3015 = vmatprep.subr.mxu0 0.0
    %3016 = vmatpush1.msra.mxu0 0.0
    %3017 = vmatprep.subr.mxu0 0.0
    %3018 = vmatpush1.msra.mxu0 0.0
    %3019 = vmatprep.subr.mxu0 0.0
    %3020 = vmatpush1.msra.mxu0 0.0
    %3021 = vmatprep.subr.mxu0 0.0
    %3022 = vmatpush1.msra.mxu0 0.0
    %3023 = vmatprep.subr.mxu0 0.0
    %3024 = vmatpush1.msra.mxu0 0.0
    %3025 = vmatprep.subr.mxu0 0.0
    %3026 = vmatpush1.msra.mxu0 0.0
    %3027 = vmatprep.subr.mxu0 0.0
    %3028 = vmatpush1.msra.mxu0 0.0
    %3029 = vmatprep.subr.mxu0 0.0
    %3030 = vmatpush1.msra.mxu0 0.0
    %3031 = vmatprep.subr.mxu0 0.0
    %3032 = vmatpush1.msra.mxu0 0.0
    %3033 = vmatprep.subr.mxu0 0.0
    %3034 = vmatpush1.msra.mxu0 0.0
    %3035 = vmatprep.subr.mxu0 0.0
    %3036 = vmatpush1.msra.mxu0 0.0
    %3037 = vmatprep.subr.mxu0 0.0
    %3038 = vmatpush1.msra.mxu0 0.0
    %3039 = vmatprep.subr.mxu0 0.0
    %3040 = vmatpush1.msra.mxu0 0.0
    %3041 = vmatprep.subr.mxu0 0.0
    %3042 = vmatpush1.msra.mxu0 0.0
    %3043 = vmatprep.subr.mxu0 0.0
    %3044 = vmatpush1.msra.mxu0 0.0
    %3045 = vmatprep.subr.mxu0 0.0
    %3046 = vmatpush1.msra.mxu0 0.0
    %3047 = vmatprep.subr.mxu0 0.0
    %3048 = vmatpush1.msra.mxu0 0.0
    %3049 = vmatprep.subr.mxu0 0.0
    %3050 = vmatpush1.msra.mxu0 0.0
    %3051 = vmatprep.subr.mxu0 0.0
    %3052 = vmatpush1.msra.mxu0 0.0
    %3053 = vmatprep.subr.mxu0 0.0
    %3054 = vmatpush1.msra.mxu0 0.0
    %3055 = vmatprep.mubr.f32.mxu0 0.0
    %3056 = vmatmul.mubr.f32.gmra.mrb[0].mxu0 %v2989
    %v3057 = vpop.f32.mrb[0].mxu0
    %v3058 = vadd.f32 0.0, %v3057
    %v3059 = vpop.f32.mrb[0].mxu0
    %3060 = vdwg.mxu0
    %v3062 = vrot.slane %v3058, 1
    %v3064 = vadd.f32 %v2148, %v3062
    %v3065 = vxor.u32 %v3064, 2147483648
    %v3066 = vmul.f32 %v3065, 1.442695
    %v3067 = vpow.pop %v3066
    %v3068 = vadd.f32 %v3067, 1.0
    %v3069 = vrcp.pop %v3068
    %v3070 = vmul.f32 1.0, %v3069
    %v3071 = vtanh.pop %v3064
    %v3073 = vrot.slane %v2965, 7
    %v3075 = vmul.f32 %v3070, %v3073
    %3077 = vrot.lane.b32.xlu0 %v3071, 32
    %v3078 = vpop.permute.xlu0 %3077
    %v3080 = vmul.f32 %v3070, %v3078
    %3082 = vrot.lane.b32.xlu0 %v3080, 32
    %v3083 = vpop.permute.xlu0 %3082
    %v3085 = vadd.f32 %v3075, %v3083
    %v3086 = vtanh.pop %v3085
    %3088 = vrot.lane.b32.xlu0 %v3086, 32
    %v3089 = vpop.permute.xlu0 %3088
    %v3091 = vmul.f32 %v3070, %v3089
    %v3092 = vmul.f32 %v3091, %v2254
    %3094 = vrot.lane.b32.xlu0 %v3092, 64
    %v3095 = vpop.permute.xlu0 %3094
    %v3097 = vsel %vm1105, %v3095, 0.0
    %3098 = vadd.xlane.f32.xlu0 %v3097
    %v3099 = vpop.xlane.xlu0 %3098
    %vm3100 = vcmp.eq.s32.totalorder %v2152, 7
    %v3102 = vrot.slane %v2984, 7
    %v3104 = vsel %vm3100, %v3099, %v3102
    %v3105 = vstv %s136
    %v3106 = vadd.f32 %v3104, %v3105
    %vm3107 = vcmask 64519
    %3108 = vst.msk [vmem:[#allocation16 - $0x7] sm:$0x80] %vm3107, %v3106
    // Predicated region
    $region74: #{tpu_custom_call.1} parent=1 // pred_check
      _
    $region75: #{tpu_custom_call.1} parent=1 // pred_check_branch
      %3110 = sbr.rel (0) target = $region77
    $region76: #{tpu_custom_call.1} parent=1 // pred_region
      %s3112 = ssub.s32 16, 16
      %3113 = vsyncadd [#allocation7], %s3112
      %s3115 = sshll.u32 [#allocation16], 4
      %s3116 = int_to_ptr.vmem [resolvable:$true] %s3115
      %3118 = dma.vmem_to_hbm [thread:$0]  %s3116, 16, %s12, [#allocation7]
    $region77: #{tpu_custom_call.1} parent=1 // pred_fallthru
      _
    // Predicated region
    $region78: #{tpu_custom_call.1} parent=1 // pred_check
      _
    $region79: #{tpu_custom_call.1} parent=1 // pred_check_branch
      %3120 = sbr.rel (0) target = $region81
    $region80: #{tpu_custom_call.1} parent=1 // pred_region
      %3121 = dma.done [#allocation7], 16
    $region81: #{tpu_custom_call.1} parent=1 // pred_fallthru
      _
    %3122 = vsyncpa [#allocation6], 1
    %3123 = vsyncpa [#allocation9], 1
    %3124 = vsyncpa [#allocation12], 1
    %3125 = vsyncpa [#allocation15], 1
    %3126 = vsyncpa [#allocation7], 1

</llo_original>
